<compile_context>
chip_gen: v5e
topology: v5e:2x2
jax: 0.10.0
libtpu: 0.0.40
codegen_flags: <defaults>
</compile_context>

<pallas_src>
import functools
from typing import NamedTuple

import jax
import jax.numpy as jnp
import numpy as np
from jax import lax
from jax.experimental import pallas as pl
from jax.experimental.pallas import tpu as pltpu

_EPS = 1e-5


class _Cfg(NamedTuple):
    k1: tuple
    k2: tuple
    p1: int
    p2: int
    stride: int
    cin: int
    cexp: int
    cout: int
    wo1: int
    wf: int
    wo2: int
    plain_pw1: bool
    plain_pw2: bool
    mxu_bf16: bool
    inv_cnt1: float
    inv_cnt2: float
    inv_cnt3: float
    inv_cnt4: float


# ----------------------------- kernel helpers -----------------------------
def _pad_folded(x, pad, c):
    """Zero-pad `pad` rows (sublanes) and `pad` spatial cols (lane blocks of c)."""
    if pad == 0:
        return x
    h, wc = x.shape
    zrow = jnp.zeros((pad, wc), x.dtype)
    x = jnp.concatenate([zrow, x, zrow], axis=0)
    zcol = jnp.zeros((h + 2 * pad, pad * c), x.dtype)
    # TODO(synk): at aligned channel counts (pad*c % 128 == 0) this lane concat
    # is free; at toy widths it costs one relayout copy -- could instead bake
    # the W-boundary zeros into the pre-tiled depthwise taps.
    return jnp.concatenate([zcol, x, zcol], axis=1)


def _dwconv_folded(xp, w, kh, kw, c, wo):
    """Depthwise conv (stride 1) in folded (H, W*C) layout.

    xp: (Hp, Wp*C) f32, spatially pre-padded.
    w:  (kh*kw, Wo*C) f32 -- per-tap weights pre-tiled across W.
    Returns (Ho, Wo*C), Ho = Hp - kh + 1.
    """
    hp = xp.shape[0]
    ho = hp - kh + 1
    woc = wo * c
    # W-direction (lane) shifts hoisted: one slice per tap column, shared
    # across all kh row offsets.
    cols = [xp[:, j * c:j * c + woc] for j in range(kw)]
    # Round-robin accumulators: 4-way ILP for the 4 VALUs while keeping only
    # ~4 live full-size intermediates (instead of kh*kw).
    n_acc = min(4, kh * kw)
    accs = [None] * n_acc
    t = 0
    for i in range(kh):
        for j in range(kw):
            term = cols[j][i:i + ho, :] * w[i * kw + j:i * kw + j + 1, :]
            k = t % n_acc
            accs[k] = term if accs[k] is None else accs[k] + term
            t += 1
    while len(accs) > 1:
        nxt = [accs[k] + accs[k + 1] for k in range(0, len(accs) - 1, 2)]
        if len(accs) % 2:
            nxt.append(accs[-1])
        accs = nxt
    return accs[0]


def _gn_silu_folded(x, m, mt, gamma, beta, inv_cnt):
    """GroupNorm + SiLU on a folded (H, Wo*C) activation.

    m:  (Wo*C, G) one-hot lane->group matrix (precomputed in the wrapper).
    mt: (G, Wo*C) its transpose (precomputed; avoids an in-kernel transpose).
    gamma/beta: (1, Wo*C) per-channel affine, tiled across W in the wrapper.
    """
    s = jnp.sum(x, axis=0, keepdims=True)                 # (1, WoC)
    ss = jnp.sum(x * x, axis=0, keepdims=True)            # (1, WoC)
    stacked = jnp.concatenate([s, ss], axis=0)            # (2, WoC)
    gstats = jnp.dot(stacked, m,
                     preferred_element_type=jnp.float32) * inv_cnt   # (2, G)
    stats = jnp.dot(gstats, mt,
                    preferred_element_type=jnp.float32)              # (2, WoC)
    mean = stats[0:1, :]
    var = jnp.maximum(stats[1:2, :] - mean * mean, 0.0)   # clamp f32 cancellation
    inv = lax.rsqrt(var + _EPS)
    # Fused per-lane coefficients: y = x*a + b (2 VALU ops / element).
    a = inv * gamma
    b = beta - mean * a
    y = x * a + b
    # Exact SiLU with a single EUP op: sigmoid(y) = 0.5*tanh(0.5*y) + 0.5.
    return y * (0.5 * jnp.tanh(0.5 * y) + 0.5)


def _pointwise(x, pw, c_in, c_out, wo, plain, mxu_bf16):
    """1x1 conv on a folded (H, Wo*C_in) activation -> (H, Wo*C_out)."""
    h = x.shape[0]
    lhs = x.astype(jnp.bfloat16) if mxu_bf16 else x
    if plain:
        # Tile-aligned channels: free reshape to (H*Wo, C) + dense matmul
        # (full K/N density on the MXU; no kron(I_W, pw) zero-FLOPs).
        y = jnp.dot(lhs.reshape(h * wo, c_in), pw,
                    preferred_element_type=jnp.float32)
        return y.reshape(h, wo * c_out)
    # Toy channel counts: block-diagonal kron(I_Wo, pw) keeps the lane axis dense.
    return jnp.dot(lhs, pw, preferred_element_type=jnp.float32)


# --------------------------------- kernel ---------------------------------
def _extra_dw_kernel(cfg: _Cfg, *refs):
    (x_ref, w1_ref, m1_ref, mt1_ref, g1_ref, b1_ref, pw1_ref,
     m2_ref, mt2_ref, g2_ref, b2_ref,
     w2_ref, m3_ref, mt3_ref, g3_ref, b3_ref,
     pw2_ref, m4_ref, mt4_ref, g4_ref, b4_ref) = refs[:21]
    rest = refs[21:]
    if cfg.stride > 1:
        rsel_ref, csel_ref, o_ref = rest
    else:
        (o_ref,) = rest

    k1h, k1w = cfg.k1
    k2h, k2w = cfg.k2
    f32 = jnp.float32

    # ---- depthwise conv #1 (value-padded in VMEM; no HBM pad round-trip) ----
    x = x_ref[0].astype(f32)                               # (H, W*Cin)
    xp = _pad_folded(x, cfg.p1, cfg.cin)
    t1 = _dwconv_folded(xp, w1_ref[...], k1h, k1w, cfg.cin, cfg.wo1)
    t1 = _gn_silu_folded(t1, m1_ref[...], mt1_ref[...],
                         g1_ref[...], b1_ref[...], cfg.inv_cnt1)

    # ---- 1x1 expansion ----
    t2 = _pointwise(t1, pw1_ref[...], cfg.cin, cfg.cexp, cfg.wo1,
                    cfg.plain_pw1, cfg.mxu_bf16)
    t2 = _gn_silu_folded(t2, m2_ref[...], mt2_ref[...],
                         g2_ref[...], b2_ref[...], cfg.inv_cnt2)

    # ---- depthwise conv #2 (stride-1 result, deinterleave once if stride>1) ----
    t2p = _pad_folded(t2, cfg.p2, cfg.cexp)
    y = _dwconv_folded(t2p, w2_ref[...], k2h, k2w, cfg.cexp, cfg.wf)
    if cfg.stride > 1:
        # Precomputed one-hot selectors (hoisted out of the kernel).
        y = jnp.dot(rsel_ref[...], y, preferred_element_type=f32)
        y = jnp.dot(y, csel_ref[...], preferred_element_type=f32)
    t3 = _gn_silu_folded(y, m3_ref[...], mt3_ref[...],
                         g3_ref[...], b3_ref[...], cfg.inv_cnt3)

    # ---- 1x1 projection ----
    t4 = _pointwise(t3, pw2_ref[...], cfg.cexp, cfg.cout, cfg.wo2,
                    cfg.plain_pw2, cfg.mxu_bf16)
    t4 = _gn_silu_folded(t4, m4_ref[...], mt4_ref[...],
                         g4_ref[...], b4_ref[...], cfg.inv_cnt4)

    # Lane-dense (Ho2, Wo2*Cout) output slab.
    o_ref[0] = t4.astype(o_ref.dtype)


# ------------------------------ host wrapper -------------------------------
def _group_onehot(c, wo):
    """(Wo*C, C//8) one-hot lane->GroupNorm-group matrix (lane = w*C + ch)."""
    groups = c // 8
    ch = np.arange(wo * c) % c
    return ((ch // 8)[:, None] == np.arange(groups)[None, :]).astype(np.float32)


def _stride_selectors(hf, wf, ho2, wo2, c, stride):
    rsel = (np.arange(hf)[None, :] ==
            stride * np.arange(ho2)[:, None]).astype(np.float32)        # (Ho2, Hf)
    src = np.arange(wf * c)
    dst = np.arange(wo2 * c)
    csel = ((src[:, None] // c == stride * (dst[None, :] // c)) &
            (src[:, None] % c == dst[None, :] % c)).astype(np.float32)  # (WfC, Wo2C)
    return jnp.asarray(rsel), jnp.asarray(csel)


def _vmem_limit_bytes():
    """Generation-aware VMEM budget: ~3/4 of physical capacity, safe fallback."""
    try:
        cap = getattr(pltpu.get_tpu_info(), "vmem_capacity_bytes", 0)
        if cap and cap > 0:
            return int(cap) * 3 // 4
    except Exception:
        pass
    return 48 * 1024 * 1024


def extra_dw(x, params, *, kernel_size_1st, kernel_size_2nd,
             stride=1, padding_1st=0, padding_2nd=0, mxu_bf16=False):
    """x: (N, H, W, Cin) float32 (NHWC; the PyTorch module is NCHW)."""
    N, H, W, Cin = x.shape
    k1h, k1w = kernel_size_1st
    k2h, k2w = kernel_size_2nd
    Cexp = params["pw1"].shape[1]
    Cout = params["pw2"].shape[1]
    assert Cin % 8 == 0 and Cexp % 8 == 0 and Cout % 8 == 0, \
        "GroupNorm(C//8) requires channel counts divisible by 8"

    p1, p2 = padding_1st, padding_2nd
    Hp1, Wp1 = H + 2 * p1, W + 2 * p1
    Ho1, Wo1 = Hp1 - k1h + 1, Wp1 - k1w + 1
    Hp2, Wp2 = Ho1 + 2 * p2, Wo1 + 2 * p2
    Hf, Wf = Hp2 - k2h + 1, Wp2 - k2w + 1          # stride-1 dw2 output size
    Ho2 = (Hp2 - k2h) // stride + 1
    Wo2 = (Wp2 - k2w) // stride + 1
    assert Ho1 > 0 and Wo1 > 0 and Ho2 > 0 and Wo2 > 0

    f32 = jnp.float32
    mxu_dt = jnp.bfloat16 if mxu_bf16 else f32

    # fold the (unpadded) input to (N, H, W*Cin); spatial padding is in-kernel
    xf = x.reshape(N, H, W * Cin)

    # depthwise weights tiled across the folded W axis: (kh*kw, W*C)
    w1t = jnp.tile(params["dw1"].astype(f32).reshape(k1h * k1w, 1, Cin),
                   (1, Wo1, 1)).reshape(k1h * k1w, Wo1 * Cin)
    w2t = jnp.tile(params["dw2"].astype(f32).reshape(k2h * k2w, 1, Cexp),
                   (1, Wf, 1)).reshape(k2h * k2w, Wf * Cexp)

    # 1x1 conv weights: plain (C_in, C_out) when tile-aligned, else kron(I_W, pw)
    plain_pw1 = (Cin % 128 == 0) and (Cexp % 128 == 0)
    plain_pw2 = (Cexp % 128 == 0) and (Cout % 128 == 0)
    pw1 = (params["pw1"].astype(mxu_dt) if plain_pw1 else
           jnp.kron(jnp.eye(Wo1, dtype=f32),
                    params["pw1"].astype(f32)).astype(mxu_dt))
    pw2 = (params["pw2"].astype(mxu_dt) if plain_pw2 else
           jnp.kron(jnp.eye(Wo2, dtype=f32),
                    params["pw2"].astype(f32)).astype(mxu_dt))

    # GroupNorm one-hot lane->group matrices (grid-invariant, hoisted here)
    m1n, m2n = _group_onehot(Cin, Wo1), _group_onehot(Cexp, Wo1)
    m3n, m4n = _group_onehot(Cexp, Wo2), _group_onehot(Cout, Wo2)
    m1, mt1 = jnp.asarray(m1n), jnp.asarray(m1n.T)
    m2, mt2 = jnp.asarray(m2n), jnp.asarray(m2n.T)
    m3, mt3 = jnp.asarray(m3n), jnp.asarray(m3n.T)
    m4, mt4 = jnp.asarray(m4n), jnp.asarray(m4n.T)

    def tile_cw(v, wo):
        return jnp.tile(v.astype(f32).reshape(1, -1), (1, wo))

    g1f, b1f = tile_cw(params["g1"], Wo1), tile_cw(params["b1"], Wo1)
    g2f, b2f = tile_cw(params["g2"], Wo1), tile_cw(params["b2"], Wo1)
    g3f, b3f = tile_cw(params["g3"], Wo2), tile_cw(params["b3"], Wo2)
    g4f, b4f = tile_cw(params["g4"], Wo2), tile_cw(params["b4"], Wo2)

    inputs = [xf, w1t, m1, mt1, g1f, b1f, pw1,
              m2, mt2, g2f, b2f,
              w2t, m3, mt3, g3f, b3f,
              pw2, m4, mt4, g4f, b4f]
    if stride > 1:
        rsel, csel = _stride_selectors(Hf, Wf, Ho2, Wo2, Cexp, stride)
        inputs += [rsel, csel]

    cfg = _Cfg(k1=(k1h, k1w), k2=(k2h, k2w), p1=p1, p2=p2, stride=stride,
               cin=Cin, cexp=Cexp, cout=Cout, wo1=Wo1, wf=Wf, wo2=Wo2,
               plain_pw1=plain_pw1, plain_pw2=plain_pw2, mxu_bf16=mxu_bf16,
               inv_cnt1=1.0 / (Ho1 * Wo1 * 8), inv_cnt2=1.0 / (Ho1 * Wo1 * 8),
               inv_cnt3=1.0 / (Ho2 * Wo2 * 8), inv_cnt4=1.0 / (Ho2 * Wo2 * 8))
    kernel = functools.partial(_extra_dw_kernel, cfg)

    def build(const_pipeline_mode):
        def const_spec(a):
            nd = a.ndim
            imap = lambda n, _nd=nd: (0,) * _nd
            if const_pipeline_mode is None:
                return pl.BlockSpec(a.shape, imap)
            return pl.BlockSpec(a.shape, imap, pipeline_mode=const_pipeline_mode)

        in_specs = [pl.BlockSpec((1, H, W * Cin), lambda n: (n, 0, 0))]
        in_specs += [const_spec(a) for a in inputs[1:]]
        out_spec = pl.BlockSpec((1, Ho2, Wo2 * Cout), lambda n: (n, 0, 0))
        return pl.pallas_call(
            kernel,
            out_shape=jax.ShapeDtypeStruct((N, Ho2, Wo2 * Cout), x.dtype),
            grid_spec=pltpu.PrefetchScalarGridSpec(
                num_scalar_prefetch=0,
                grid=(N,),
                in_specs=in_specs,
                out_specs=out_spec),
            compiler_params=pltpu.CompilerParams(
                dimension_semantics=("parallel",),      # megacore sharding
                vmem_limit_bytes=_vmem_limit_bytes()),
        )

    try:
        # Grid-invariant operands are single-buffered to halve their VMEM cost.
        out = build(pl.Buffered(1))(*inputs)
    except Exception:
        out = build(None)(*inputs)   # conservative fallback for older jax
    return out.reshape(N, Ho2, Wo2, Cout)


# -------------------- pure-JAX reference (for verification) --------------------
def _ref_dwconv(x, w, stride, pad):
    C = x.shape[-1]
    wf = w[:, :, None, :]                               # (kh, kw, 1, C) HWIO
    return lax.conv_general_dilated(
        x, wf, (stride, stride), [(pad, pad), (pad, pad)],
        dimension_numbers=("NHWC", "HWIO", "NHWC"), feature_group_count=C,
        precision=lax.Precision.HIGHEST)


def _ref_gn_silu(x, gamma, beta, groups):
    N, H, W, C = x.shape
    xg = x.reshape(N, H, W, groups, C // groups)
    mean = xg.mean(axis=(1, 2, 4), keepdims=True)
    var = xg.var(axis=(1, 2, 4), keepdims=True)
    xg = (xg - mean) / jnp.sqrt(var + _EPS)
    y = xg.reshape(N, H, W, C) * gamma.reshape(1, 1, 1, C) + beta.reshape(1, 1, 1, C)
    return jax.nn.silu(y)


def extra_dw_reference(x, params, *, kernel_size_1st, kernel_size_2nd,
                       stride=1, padding_1st=0, padding_2nd=0):
    Cin = x.shape[-1]
    Cexp = params["pw1"].shape[1]
    Cout = params["pw2"].shape[1]
    hi = lax.Precision.HIGHEST
    y = _ref_dwconv(x, params["dw1"], 1, padding_1st)
    y = _ref_gn_silu(y, params["g1"], params["b1"], Cin // 8)
    y = jnp.einsum("nhwc,cd->nhwd", y, params["pw1"], precision=hi)
    y = _ref_gn_silu(y, params["g2"], params["b2"], Cexp // 8)
    y = _ref_dwconv(y, params["dw2"], stride, padding_2nd)
    y = _ref_gn_silu(y, params["g3"], params["b3"], Cexp // 8)
    y = jnp.einsum("nhwc,cd->nhwd", y, params["pw2"], precision=hi)
    y = _ref_gn_silu(y, params["g4"], params["b4"], Cout // 8)
    return y


# ----------------------------------- demo -----------------------------------
def _make_params(key, cin, cexp, cout, k1, k2):
    ks = jax.random.split(key, 12)
    return {
        "dw1": jax.random.normal(ks[0], (k1[0], k1[1], cin), jnp.float32) * 0.2,
        "g1":  1.0 + 0.1 * jax.random.normal(ks[1], (1, cin), jnp.float32),
        "b1":  0.1 * jax.random.normal(ks[2], (1, cin), jnp.float32),
        "pw1": jax.random.normal(ks[3], (cin, cexp), jnp.float32) / np.sqrt(cin),
        "g2":  1.0 + 0.1 * jax.random.normal(ks[4], (1, cexp), jnp.float32),
        "b2":  0.1 * jax.random.normal(ks[5], (1, cexp), jnp.float32),
        "dw2": jax.random.normal(ks[6], (k2[0], k2[1], cexp), jnp.float32) * 0.2,
        "g3":  1.0 + 0.1 * jax.random.normal(ks[7], (1, cexp), jnp.float32),
        "b3":  0.1 * jax.random.normal(ks[8], (1, cexp), jnp.float32),
        "pw2": jax.random.normal(ks[9], (cexp, cout), jnp.float32) / np.sqrt(cexp),
        "g4":  1.0 + 0.1 * jax.random.normal(ks[10], (1, cout), jnp.float32),
        "b4":  0.1 * jax.random.normal(ks[11], (1, cout), jnp.float32),
    }


def _run_case(name, *, n, h, w, cin, cexp, cout, k1, k2, stride, p1, p2,
              mxu_bf16, tol):
    key = jax.random.PRNGKey(0)
    kp, kx = jax.random.split(key)
    params = _make_params(kp, cin, cexp, cout, k1, k2)
    x = jax.random.normal(kx, (n, h, w, cin), jnp.float32)

    out = extra_dw(x, params, kernel_size_1st=k1, kernel_size_2nd=k2,
                   stride=stride, padding_1st=p1, padding_2nd=p2,
                   mxu_bf16=mxu_bf16)
    out = jax.block_until_ready(out)
    ref = extra_dw_reference(x, params, kernel_size_1st=k1, kernel_size_2nd=k2,
                             stride=stride, padding_1st=p1, padding_2nd=p2)
    ref = jax.block_until_ready(ref)

    assert out.shape == ref.shape, (name, out.shape, ref.shape)
    err = float(np.max(np.abs(np.asarray(out) - np.asarray(ref))))
    assert np.allclose(np.asarray(out), np.asarray(ref), atol=tol, rtol=tol), \
        (name, "max abs err", err)


if __name__ == "__main__":
    # Tolerances: logic/layout errors show up as O(0.1)+; 1e-2 covers EUP
    # transcendental / accumulation differences vs the XLA reference, and the
    # bf16 case reflects bf16 MXU input rounding.
    _run_case("base", n=2, h=16, w=16, cin=8, cexp=16, cout=8,
              k1=(3, 3), k2=(3, 3), stride=1, p1=1, p2=1,
              mxu_bf16=False, tol=1e-2)
    _run_case("stride2", n=2, h=16, w=16, cin=8, cexp=16, cout=8,
              k1=(3, 3), k2=(3, 3), stride=2, p1=1, p2=1,
              mxu_bf16=False, tol=1e-2)
    _run_case("aligned_bf16", n=1, h=8, w=8, cin=128, cexp=128, cout=128,
              k1=(3, 3), k2=(3, 3), stride=1, p1=1, p2=1,
              mxu_bf16=True, tol=5e-2)
    print("KERNEL_OK")
</pallas_src>

<mosaic_0001>
module attributes {stable_mosaic.version = 11 : i64} {
  func.func @_extra_dw_kernel(%arg0: i32, %arg1: memref<1x16x128xf32, #tpu.memory_space<vmem>>, %arg2: memref<9x128xf32, #tpu.memory_space<vmem>>, %arg3: memref<128x1xf32, #tpu.memory_space<vmem>>, %arg4: memref<1x128xf32, #tpu.memory_space<vmem>>, %arg5: memref<1x128xf32, #tpu.memory_space<vmem>>, %arg6: memref<1x128xf32, #tpu.memory_space<vmem>>, %arg7: memref<128x256xf32, #tpu.memory_space<vmem>>, %arg8: memref<256x2xf32, #tpu.memory_space<vmem>>, %arg9: memref<2x256xf32, #tpu.memory_space<vmem>>, %arg10: memref<1x256xf32, #tpu.memory_space<vmem>>, %arg11: memref<1x256xf32, #tpu.memory_space<vmem>>, %arg12: memref<9x256xf32, #tpu.memory_space<vmem>>, %arg13: memref<256x2xf32, #tpu.memory_space<vmem>>, %arg14: memref<2x256xf32, #tpu.memory_space<vmem>>, %arg15: memref<1x256xf32, #tpu.memory_space<vmem>>, %arg16: memref<1x256xf32, #tpu.memory_space<vmem>>, %arg17: memref<256x128xf32, #tpu.memory_space<vmem>>, %arg18: memref<128x1xf32, #tpu.memory_space<vmem>>, %arg19: memref<1x128xf32, #tpu.memory_space<vmem>>, %arg20: memref<1x128xf32, #tpu.memory_space<vmem>>, %arg21: memref<1x128xf32, #tpu.memory_space<vmem>>, %arg22: memref<1x16x128xf32, #tpu.memory_space<vmem>>) attributes {dimension_semantics = [#tpu.dimension_semantics<parallel>], iteration_bounds = array<i64: 2>, scalar_prefetch = 0 : i64, scratch_operands = 0 : i64, tpu.core_type = #tpu.core_type<tc>, window_params = [{transform_indices = @transform_0, window_bounds = array<i64: 1, 16, 128>}, {pipeline_mode = #tpu.pipeline_mode<synchronous>, transform_indices = @transform_1, window_bounds = array<i64: 9, 128>}, {pipeline_mode = #tpu.pipeline_mode<synchronous>, transform_indices = @transform_2, window_bounds = array<i64: 128, 1>}, {pipeline_mode = #tpu.pipeline_mode<synchronous>, transform_indices = @transform_3, window_bounds = array<i64: 1, 128>}, {pipeline_mode = #tpu.pipeline_mode<synchronous>, transform_indices = @transform_4, window_bounds = array<i64: 1, 128>}, {pipeline_mode = #tpu.pipeline_mode<synchronous>, transform_indices = @transform_5, window_bounds = array<i64: 1, 128>}, {pipeline_mode = #tpu.pipeline_mode<synchronous>, transform_indices = @transform_6, window_bounds = array<i64: 128, 256>}, {pipeline_mode = #tpu.pipeline_mode<synchronous>, transform_indices = @transform_7, window_bounds = array<i64: 256, 2>}, {pipeline_mode = #tpu.pipeline_mode<synchronous>, transform_indices = @transform_8, window_bounds = array<i64: 2, 256>}, {pipeline_mode = #tpu.pipeline_mode<synchronous>, transform_indices = @transform_9, window_bounds = array<i64: 1, 256>}, {pipeline_mode = #tpu.pipeline_mode<synchronous>, transform_indices = @transform_10, window_bounds = array<i64: 1, 256>}, {pipeline_mode = #tpu.pipeline_mode<synchronous>, transform_indices = @transform_11, window_bounds = array<i64: 9, 256>}, {pipeline_mode = #tpu.pipeline_mode<synchronous>, transform_indices = @transform_12, window_bounds = array<i64: 256, 2>}, {pipeline_mode = #tpu.pipeline_mode<synchronous>, transform_indices = @transform_13, window_bounds = array<i64: 2, 256>}, {pipeline_mode = #tpu.pipeline_mode<synchronous>, transform_indices = @transform_14, window_bounds = array<i64: 1, 256>}, {pipeline_mode = #tpu.pipeline_mode<synchronous>, transform_indices = @transform_15, window_bounds = array<i64: 1, 256>}, {pipeline_mode = #tpu.pipeline_mode<synchronous>, transform_indices = @transform_16, window_bounds = array<i64: 256, 128>}, {pipeline_mode = #tpu.pipeline_mode<synchronous>, transform_indices = @transform_17, window_bounds = array<i64: 128, 1>}, {pipeline_mode = #tpu.pipeline_mode<synchronous>, transform_indices = @transform_18, window_bounds = array<i64: 1, 128>}, {pipeline_mode = #tpu.pipeline_mode<synchronous>, transform_indices = @transform_19, window_bounds = array<i64: 1, 128>}, {pipeline_mode = #tpu.pipeline_mode<synchronous>, transform_indices = @transform_20, window_bounds = array<i64: 1, 128>}, {transform_indices = @transform_21, window_bounds = array<i64: 1, 16, 128>}]} {
    %c0 = arith.constant 0 : index
    %c0_0 = arith.constant 0 : index
    %c0_1 = arith.constant 0 : index
    %0 = vector.load %arg1[%c0, %c0_0, %c0_1] : memref<1x16x128xf32, #tpu.memory_space<vmem>>, vector<1x16x128xf32>
    %1 = vector.shape_cast %0 : vector<1x16x128xf32> to vector<16x128xf32>
    %cst = arith.constant 0.000000e+00 : f32
    %2 = vector.broadcast %cst : f32 to vector<1x128xf32>
    %3 = tpu.concatenate %2, %1, %2 in 0 : vector<1x128xf32>, vector<16x128xf32>, vector<1x128xf32> -> vector<18x128xf32>
    %cst_2 = arith.constant 0.000000e+00 : f32
    %4 = vector.broadcast %cst_2 : f32 to vector<18x8xf32>
    %5 = tpu.concatenate %4, %3, %4 in 1 : vector<18x8xf32>, vector<18x128xf32>, vector<18x8xf32> -> vector<18x144xf32>
    %c0_3 = arith.constant 0 : index
    %c0_4 = arith.constant 0 : index
    %6 = vector.load %arg2[%c0_3, %c0_4] : memref<9x128xf32, #tpu.memory_space<vmem>>, vector<9x128xf32>
    %7 = vector.extract_strided_slice %5 {offsets = [0, 0], sizes = [18, 128], strides = [1, 1]} : vector<18x144xf32> to vector<18x128xf32>
    %8 = vector.extract_strided_slice %5 {offsets = [0, 8], sizes = [18, 128], strides = [1, 1]} : vector<18x144xf32> to vector<18x128xf32>
    %9 = vector.extract_strided_slice %5 {offsets = [0, 16], sizes = [18, 128], strides = [1, 1]} : vector<18x144xf32> to vector<18x128xf32>
    %10 = vector.extract_strided_slice %7 {offsets = [0, 0], sizes = [16, 128], strides = [1, 1]} : vector<18x128xf32> to vector<16x128xf32>
    %11 = vector.extract_strided_slice %6 {offsets = [0, 0], sizes = [1, 128], strides = [1, 1]} : vector<9x128xf32> to vector<1x128xf32>
    %12 = vector.broadcast %11 : vector<1x128xf32> to vector<16x128xf32>
    %13 = arith.mulf %10, %12 : vector<16x128xf32>
    %14 = vector.extract_strided_slice %8 {offsets = [0, 0], sizes = [16, 128], strides = [1, 1]} : vector<18x128xf32> to vector<16x128xf32>
    %15 = vector.extract_strided_slice %6 {offsets = [1, 0], sizes = [1, 128], strides = [1, 1]} : vector<9x128xf32> to vector<1x128xf32>
    %16 = vector.broadcast %15 : vector<1x128xf32> to vector<16x128xf32>
    %17 = arith.mulf %14, %16 : vector<16x128xf32>
    %18 = vector.extract_strided_slice %9 {offsets = [0, 0], sizes = [16, 128], strides = [1, 1]} : vector<18x128xf32> to vector<16x128xf32>
    %19 = vector.extract_strided_slice %6 {offsets = [2, 0], sizes = [1, 128], strides = [1, 1]} : vector<9x128xf32> to vector<1x128xf32>
    %20 = vector.broadcast %19 : vector<1x128xf32> to vector<16x128xf32>
    %21 = arith.mulf %18, %20 : vector<16x128xf32>
    %22 = vector.extract_strided_slice %7 {offsets = [1, 0], sizes = [16, 128], strides = [1, 1]} : vector<18x128xf32> to vector<16x128xf32>
    %23 = vector.extract_strided_slice %6 {offsets = [3, 0], sizes = [1, 128], strides = [1, 1]} : vector<9x128xf32> to vector<1x128xf32>
    %24 = vector.broadcast %23 : vector<1x128xf32> to vector<16x128xf32>
    %25 = arith.mulf %22, %24 : vector<16x128xf32>
    %26 = vector.extract_strided_slice %8 {offsets = [1, 0], sizes = [16, 128], strides = [1, 1]} : vector<18x128xf32> to vector<16x128xf32>
    %27 = vector.extract_strided_slice %6 {offsets = [4, 0], sizes = [1, 128], strides = [1, 1]} : vector<9x128xf32> to vector<1x128xf32>
    %28 = vector.broadcast %27 : vector<1x128xf32> to vector<16x128xf32>
    %29 = arith.mulf %26, %28 : vector<16x128xf32>
    %30 = arith.addf %13, %29 : vector<16x128xf32>
    %31 = vector.extract_strided_slice %9 {offsets = [1, 0], sizes = [16, 128], strides = [1, 1]} : vector<18x128xf32> to vector<16x128xf32>
    %32 = vector.extract_strided_slice %6 {offsets = [5, 0], sizes = [1, 128], strides = [1, 1]} : vector<9x128xf32> to vector<1x128xf32>
    %33 = vector.broadcast %32 : vector<1x128xf32> to vector<16x128xf32>
    %34 = arith.mulf %31, %33 : vector<16x128xf32>
    %35 = arith.addf %17, %34 : vector<16x128xf32>
    %36 = vector.extract_strided_slice %7 {offsets = [2, 0], sizes = [16, 128], strides = [1, 1]} : vector<18x128xf32> to vector<16x128xf32>
    %37 = vector.extract_strided_slice %6 {offsets = [6, 0], sizes = [1, 128], strides = [1, 1]} : vector<9x128xf32> to vector<1x128xf32>
    %38 = vector.broadcast %37 : vector<1x128xf32> to vector<16x128xf32>
    %39 = arith.mulf %36, %38 : vector<16x128xf32>
    %40 = arith.addf %21, %39 : vector<16x128xf32>
    %41 = vector.extract_strided_slice %8 {offsets = [2, 0], sizes = [16, 128], strides = [1, 1]} : vector<18x128xf32> to vector<16x128xf32>
    %42 = vector.extract_strided_slice %6 {offsets = [7, 0], sizes = [1, 128], strides = [1, 1]} : vector<9x128xf32> to vector<1x128xf32>
    %43 = vector.broadcast %42 : vector<1x128xf32> to vector<16x128xf32>
    %44 = arith.mulf %41, %43 : vector<16x128xf32>
    %45 = arith.addf %25, %44 : vector<16x128xf32>
    %46 = vector.extract_strided_slice %9 {offsets = [2, 0], sizes = [16, 128], strides = [1, 1]} : vector<18x128xf32> to vector<16x128xf32>
    %47 = vector.extract_strided_slice %6 {offsets = [8, 0], sizes = [1, 128], strides = [1, 1]} : vector<9x128xf32> to vector<1x128xf32>
    %48 = vector.broadcast %47 : vector<1x128xf32> to vector<16x128xf32>
    %49 = arith.mulf %46, %48 : vector<16x128xf32>
    %50 = arith.addf %30, %49 : vector<16x128xf32>
    %51 = arith.addf %50, %35 : vector<16x128xf32>
    %52 = arith.addf %40, %45 : vector<16x128xf32>
    %53 = arith.addf %51, %52 : vector<16x128xf32>
    %c0_5 = arith.constant 0 : index
    %c0_6 = arith.constant 0 : index
    %54 = vector.load %arg3[%c0_5, %c0_6] : memref<128x1xf32, #tpu.memory_space<vmem>>, vector<128x1xf32>
    %c0_7 = arith.constant 0 : index
    %c0_8 = arith.constant 0 : index
    %55 = vector.load %arg4[%c0_7, %c0_8] : memref<1x128xf32, #tpu.memory_space<vmem>>, vector<1x128xf32>
    %c0_9 = arith.constant 0 : index
    %c0_10 = arith.constant 0 : index
    %56 = vector.load %arg5[%c0_9, %c0_10] : memref<1x128xf32, #tpu.memory_space<vmem>>, vector<1x128xf32>
    %c0_11 = arith.constant 0 : index
    %c0_12 = arith.constant 0 : index
    %57 = vector.load %arg6[%c0_11, %c0_12] : memref<1x128xf32, #tpu.memory_space<vmem>>, vector<1x128xf32>
    %cst_13 = arith.constant dense<0.000000e+00> : vector<128xf32>
    %58 = vector.multi_reduction <add>, %53, %cst_13 [0] : vector<16x128xf32> to vector<128xf32>
    %59 = vector.shape_cast %58 : vector<128xf32> to vector<1x128xf32>
    %60 = arith.mulf %53, %53 : vector<16x128xf32>
    %cst_14 = arith.constant dense<0.000000e+00> : vector<128xf32>
    %61 = vector.multi_reduction <add>, %60, %cst_14 [0] : vector<16x128xf32> to vector<128xf32>
    %62 = vector.shape_cast %61 : vector<128xf32> to vector<1x128xf32>
    %63 = tpu.concatenate %59, %62 in 0 : vector<1x128xf32>, vector<1x128xf32> -> vector<2x128xf32>
    %cst_15 = arith.constant dense<0.000000e+00> : vector<2x1xf32>
    %64 = tpu.matmul %63, %54, %cst_15 {dimension_numbers = #tpu.dot_dimension_numbers<[1], [0], [0], [1], [0, 0, 1, 1], [], []>} : vector<2x128xf32>, vector<128x1xf32>, vector<2x1xf32> -> vector<2x1xf32>
    %cst_16 = arith.constant 4.8828125E-4 : f32
    %65 = vector.broadcast %cst_16 : f32 to vector<2x1xf32>
    %66 = arith.mulf %64, %65 : vector<2x1xf32>
    %cst_17 = arith.constant dense<0.000000e+00> : vector<2x128xf32>
    %67 = tpu.matmul %66, %55, %cst_17 {dimension_numbers = #tpu.dot_dimension_numbers<[1], [0], [0], [1], [0, 0, 1, 1], [], []>} : vector<2x1xf32>, vector<1x128xf32>, vector<2x128xf32> -> vector<2x128xf32>
    %68 = vector.extract_strided_slice %67 {offsets = [0, 0], sizes = [1, 128], strides = [1, 1]} : vector<2x128xf32> to vector<1x128xf32>
    %69 = vector.extract_strided_slice %67 {offsets = [1, 0], sizes = [1, 128], strides = [1, 1]} : vector<2x128xf32> to vector<1x128xf32>
    %70 = arith.mulf %68, %68 : vector<1x128xf32>
    %71 = arith.subf %69, %70 : vector<1x128xf32>
    %cst_18 = arith.constant 0.000000e+00 : f32
    %72 = vector.broadcast %cst_18 : f32 to vector<1x128xf32>
    %73 = arith.maximumf %71, %72 : vector<1x128xf32>
    %cst_19 = arith.constant 9.99999974E-6 : f32
    %74 = vector.broadcast %cst_19 : f32 to vector<1x128xf32>
    %75 = arith.addf %73, %74 : vector<1x128xf32>
    %76 = math.rsqrt %75 : vector<1x128xf32>
    %77 = arith.mulf %76, %56 : vector<1x128xf32>
    %78 = arith.mulf %68, %77 : vector<1x128xf32>
    %79 = arith.subf %57, %78 : vector<1x128xf32>
    %80 = vector.broadcast %77 : vector<1x128xf32> to vector<16x128xf32>
    %81 = arith.mulf %53, %80 : vector<16x128xf32>
    %82 = vector.broadcast %79 : vector<1x128xf32> to vector<16x128xf32>
    %83 = arith.addf %81, %82 : vector<16x128xf32>
    %cst_20 = arith.constant 5.000000e-01 : f32
    %84 = vector.broadcast %cst_20 : f32 to vector<16x128xf32>
    %85 = arith.mulf %84, %83 : vector<16x128xf32>
    %86 = math.tanh %85 : vector<16x128xf32>
    %cst_21 = arith.constant 5.000000e-01 : f32
    %87 = vector.broadcast %cst_21 : f32 to vector<16x128xf32>
    %88 = arith.mulf %87, %86 : vector<16x128xf32>
    %cst_22 = arith.constant 5.000000e-01 : f32
    %89 = vector.broadcast %cst_22 : f32 to vector<16x128xf32>
    %90 = arith.addf %88, %89 : vector<16x128xf32>
    %91 = arith.mulf %83, %90 : vector<16x128xf32>
    %c0_23 = arith.constant 0 : index
    %c0_24 = arith.constant 0 : index
    %92 = vector.load %arg7[%c0_23, %c0_24] : memref<128x256xf32, #tpu.memory_space<vmem>>, vector<128x256xf32>
    %cst_25 = arith.constant dense<0.000000e+00> : vector<16x256xf32>
    %93 = tpu.matmul %91, %92, %cst_25 {dimension_numbers = #tpu.dot_dimension_numbers<[1], [0], [0], [1], [0, 0, 1, 1], [], []>} : vector<16x128xf32>, vector<128x256xf32>, vector<16x256xf32> -> vector<16x256xf32>
    %c0_26 = arith.constant 0 : index
    %c0_27 = arith.constant 0 : index
    %94 = vector.load %arg8[%c0_26, %c0_27] : memref<256x2xf32, #tpu.memory_space<vmem>>, vector<256x2xf32>
    %c0_28 = arith.constant 0 : index
    %c0_29 = arith.constant 0 : index
    %95 = vector.load %arg9[%c0_28, %c0_29] : memref<2x256xf32, #tpu.memory_space<vmem>>, vector<2x256xf32>
    %c0_30 = arith.constant 0 : index
    %c0_31 = arith.constant 0 : index
    %96 = vector.load %arg10[%c0_30, %c0_31] : memref<1x256xf32, #tpu.memory_space<vmem>>, vector<1x256xf32>
    %c0_32 = arith.constant 0 : index
    %c0_33 = arith.constant 0 : index
    %97 = vector.load %arg11[%c0_32, %c0_33] : memref<1x256xf32, #tpu.memory_space<vmem>>, vector<1x256xf32>
    %cst_34 = arith.constant dense<0.000000e+00> : vector<256xf32>
    %98 = vector.multi_reduction <add>, %93, %cst_34 [0] : vector<16x256xf32> to vector<256xf32>
    %99 = vector.shape_cast %98 : vector<256xf32> to vector<1x256xf32>
    %100 = arith.mulf %93, %93 : vector<16x256xf32>
    %cst_35 = arith.constant dense<0.000000e+00> : vector<256xf32>
    %101 = vector.multi_reduction <add>, %100, %cst_35 [0] : vector<16x256xf32> to vector<256xf32>
    %102 = vector.shape_cast %101 : vector<256xf32> to vector<1x256xf32>
    %103 = tpu.concatenate %99, %102 in 0 : vector<1x256xf32>, vector<1x256xf32> -> vector<2x256xf32>
    %cst_36 = arith.constant dense<0.000000e+00> : vector<2x2xf32>
    %104 = tpu.matmul %103, %94, %cst_36 {dimension_numbers = #tpu.dot_dimension_numbers<[1], [0], [0], [1], [0, 0, 1, 1], [], []>} : vector<2x256xf32>, vector<256x2xf32>, vector<2x2xf32> -> vector<2x2xf32>
    %cst_37 = arith.constant 4.8828125E-4 : f32
    %105 = vector.broadcast %cst_37 : f32 to vector<2x2xf32>
    %106 = arith.mulf %104, %105 : vector<2x2xf32>
    %cst_38 = arith.constant dense<0.000000e+00> : vector<2x256xf32>
    %107 = tpu.matmul %106, %95, %cst_38 {dimension_numbers = #tpu.dot_dimension_numbers<[1], [0], [0], [1], [0, 0, 1, 1], [], []>} : vector<2x2xf32>, vector<2x256xf32>, vector<2x256xf32> -> vector<2x256xf32>
    %108 = vector.extract_strided_slice %107 {offsets = [0, 0], sizes = [1, 256], strides = [1, 1]} : vector<2x256xf32> to vector<1x256xf32>
    %109 = vector.extract_strided_slice %107 {offsets = [1, 0], sizes = [1, 256], strides = [1, 1]} : vector<2x256xf32> to vector<1x256xf32>
    %110 = arith.mulf %108, %108 : vector<1x256xf32>
    %111 = arith.subf %109, %110 : vector<1x256xf32>
    %cst_39 = arith.constant 0.000000e+00 : f32
    %112 = vector.broadcast %cst_39 : f32 to vector<1x256xf32>
    %113 = arith.maximumf %111, %112 : vector<1x256xf32>
    %cst_40 = arith.constant 9.99999974E-6 : f32
    %114 = vector.broadcast %cst_40 : f32 to vector<1x256xf32>
    %115 = arith.addf %113, %114 : vector<1x256xf32>
    %116 = math.rsqrt %115 : vector<1x256xf32>
    %117 = arith.mulf %116, %96 : vector<1x256xf32>
    %118 = arith.mulf %108, %117 : vector<1x256xf32>
    %119 = arith.subf %97, %118 : vector<1x256xf32>
    %120 = vector.broadcast %117 : vector<1x256xf32> to vector<16x256xf32>
    %121 = arith.mulf %93, %120 : vector<16x256xf32>
    %122 = vector.broadcast %119 : vector<1x256xf32> to vector<16x256xf32>
    %123 = arith.addf %121, %122 : vector<16x256xf32>
    %cst_41 = arith.constant 5.000000e-01 : f32
    %124 = vector.broadcast %cst_41 : f32 to vector<16x256xf32>
    %125 = arith.mulf %124, %123 : vector<16x256xf32>
    %126 = math.tanh %125 : vector<16x256xf32>
    %cst_42 = arith.constant 5.000000e-01 : f32
    %127 = vector.broadcast %cst_42 : f32 to vector<16x256xf32>
    %128 = arith.mulf %127, %126 : vector<16x256xf32>
    %cst_43 = arith.constant 5.000000e-01 : f32
    %129 = vector.broadcast %cst_43 : f32 to vector<16x256xf32>
    %130 = arith.addf %128, %129 : vector<16x256xf32>
    %131 = arith.mulf %123, %130 : vector<16x256xf32>
    %cst_44 = arith.constant 0.000000e+00 : f32
    %132 = vector.broadcast %cst_44 : f32 to vector<1x256xf32>
    %133 = tpu.concatenate %132, %131, %132 in 0 : vector<1x256xf32>, vector<16x256xf32>, vector<1x256xf32> -> vector<18x256xf32>
    %cst_45 = arith.constant 0.000000e+00 : f32
    %134 = vector.broadcast %cst_45 : f32 to vector<18x16xf32>
    %135 = tpu.concatenate %134, %133, %134 in 1 : vector<18x16xf32>, vector<18x256xf32>, vector<18x16xf32> -> vector<18x288xf32>
    %c0_46 = arith.constant 0 : index
    %c0_47 = arith.constant 0 : index
    %136 = vector.load %arg12[%c0_46, %c0_47] : memref<9x256xf32, #tpu.memory_space<vmem>>, vector<9x256xf32>
    %137 = vector.extract_strided_slice %135 {offsets = [0, 0], sizes = [18, 256], strides = [1, 1]} : vector<18x288xf32> to vector<18x256xf32>
    %138 = vector.extract_strided_slice %135 {offsets = [0, 16], sizes = [18, 256], strides = [1, 1]} : vector<18x288xf32> to vector<18x256xf32>
    %139 = vector.extract_strided_slice %135 {offsets = [0, 32], sizes = [18, 256], strides = [1, 1]} : vector<18x288xf32> to vector<18x256xf32>
    %140 = vector.extract_strided_slice %137 {offsets = [0, 0], sizes = [16, 256], strides = [1, 1]} : vector<18x256xf32> to vector<16x256xf32>
    %141 = vector.extract_strided_slice %136 {offsets = [0, 0], sizes = [1, 256], strides = [1, 1]} : vector<9x256xf32> to vector<1x256xf32>
    %142 = vector.broadcast %141 : vector<1x256xf32> to vector<16x256xf32>
    %143 = arith.mulf %140, %142 : vector<16x256xf32>
    %144 = vector.extract_strided_slice %138 {offsets = [0, 0], sizes = [16, 256], strides = [1, 1]} : vector<18x256xf32> to vector<16x256xf32>
    %145 = vector.extract_strided_slice %136 {offsets = [1, 0], sizes = [1, 256], strides = [1, 1]} : vector<9x256xf32> to vector<1x256xf32>
    %146 = vector.broadcast %145 : vector<1x256xf32> to vector<16x256xf32>
    %147 = arith.mulf %144, %146 : vector<16x256xf32>
    %148 = vector.extract_strided_slice %139 {offsets = [0, 0], sizes = [16, 256], strides = [1, 1]} : vector<18x256xf32> to vector<16x256xf32>
    %149 = vector.extract_strided_slice %136 {offsets = [2, 0], sizes = [1, 256], strides = [1, 1]} : vector<9x256xf32> to vector<1x256xf32>
    %150 = vector.broadcast %149 : vector<1x256xf32> to vector<16x256xf32>
    %151 = arith.mulf %148, %150 : vector<16x256xf32>
    %152 = vector.extract_strided_slice %137 {offsets = [1, 0], sizes = [16, 256], strides = [1, 1]} : vector<18x256xf32> to vector<16x256xf32>
    %153 = vector.extract_strided_slice %136 {offsets = [3, 0], sizes = [1, 256], strides = [1, 1]} : vector<9x256xf32> to vector<1x256xf32>
    %154 = vector.broadcast %153 : vector<1x256xf32> to vector<16x256xf32>
    %155 = arith.mulf %152, %154 : vector<16x256xf32>
    %156 = vector.extract_strided_slice %138 {offsets = [1, 0], sizes = [16, 256], strides = [1, 1]} : vector<18x256xf32> to vector<16x256xf32>
    %157 = vector.extract_strided_slice %136 {offsets = [4, 0], sizes = [1, 256], strides = [1, 1]} : vector<9x256xf32> to vector<1x256xf32>
    %158 = vector.broadcast %157 : vector<1x256xf32> to vector<16x256xf32>
    %159 = arith.mulf %156, %158 : vector<16x256xf32>
    %160 = arith.addf %143, %159 : vector<16x256xf32>
    %161 = vector.extract_strided_slice %139 {offsets = [1, 0], sizes = [16, 256], strides = [1, 1]} : vector<18x256xf32> to vector<16x256xf32>
    %162 = vector.extract_strided_slice %136 {offsets = [5, 0], sizes = [1, 256], strides = [1, 1]} : vector<9x256xf32> to vector<1x256xf32>
    %163 = vector.broadcast %162 : vector<1x256xf32> to vector<16x256xf32>
    %164 = arith.mulf %161, %163 : vector<16x256xf32>
    %165 = arith.addf %147, %164 : vector<16x256xf32>
    %166 = vector.extract_strided_slice %137 {offsets = [2, 0], sizes = [16, 256], strides = [1, 1]} : vector<18x256xf32> to vector<16x256xf32>
    %167 = vector.extract_strided_slice %136 {offsets = [6, 0], sizes = [1, 256], strides = [1, 1]} : vector<9x256xf32> to vector<1x256xf32>
    %168 = vector.broadcast %167 : vector<1x256xf32> to vector<16x256xf32>
    %169 = arith.mulf %166, %168 : vector<16x256xf32>
    %170 = arith.addf %151, %169 : vector<16x256xf32>
    %171 = vector.extract_strided_slice %138 {offsets = [2, 0], sizes = [16, 256], strides = [1, 1]} : vector<18x256xf32> to vector<16x256xf32>
    %172 = vector.extract_strided_slice %136 {offsets = [7, 0], sizes = [1, 256], strides = [1, 1]} : vector<9x256xf32> to vector<1x256xf32>
    %173 = vector.broadcast %172 : vector<1x256xf32> to vector<16x256xf32>
    %174 = arith.mulf %171, %173 : vector<16x256xf32>
    %175 = arith.addf %155, %174 : vector<16x256xf32>
    %176 = vector.extract_strided_slice %139 {offsets = [2, 0], sizes = [16, 256], strides = [1, 1]} : vector<18x256xf32> to vector<16x256xf32>
    %177 = vector.extract_strided_slice %136 {offsets = [8, 0], sizes = [1, 256], strides = [1, 1]} : vector<9x256xf32> to vector<1x256xf32>
    %178 = vector.broadcast %177 : vector<1x256xf32> to vector<16x256xf32>
    %179 = arith.mulf %176, %178 : vector<16x256xf32>
    %180 = arith.addf %160, %179 : vector<16x256xf32>
    %181 = arith.addf %180, %165 : vector<16x256xf32>
    %182 = arith.addf %170, %175 : vector<16x256xf32>
    %183 = arith.addf %181, %182 : vector<16x256xf32>
    %c0_48 = arith.constant 0 : index
    %c0_49 = arith.constant 0 : index
    %184 = vector.load %arg13[%c0_48, %c0_49] : memref<256x2xf32, #tpu.memory_space<vmem>>, vector<256x2xf32>
    %c0_50 = arith.constant 0 : index
    %c0_51 = arith.constant 0 : index
    %185 = vector.load %arg14[%c0_50, %c0_51] : memref<2x256xf32, #tpu.memory_space<vmem>>, vector<2x256xf32>
    %c0_52 = arith.constant 0 : index
    %c0_53 = arith.constant 0 : index
    %186 = vector.load %arg15[%c0_52, %c0_53] : memref<1x256xf32, #tpu.memory_space<vmem>>, vector<1x256xf32>
    %c0_54 = arith.constant 0 : index
    %c0_55 = arith.constant 0 : index
    %187 = vector.load %arg16[%c0_54, %c0_55] : memref<1x256xf32, #tpu.memory_space<vmem>>, vector<1x256xf32>
    %cst_56 = arith.constant dense<0.000000e+00> : vector<256xf32>
    %188 = vector.multi_reduction <add>, %183, %cst_56 [0] : vector<16x256xf32> to vector<256xf32>
    %189 = vector.shape_cast %188 : vector<256xf32> to vector<1x256xf32>
    %190 = arith.mulf %183, %183 : vector<16x256xf32>
    %cst_57 = arith.constant dense<0.000000e+00> : vector<256xf32>
    %191 = vector.multi_reduction <add>, %190, %cst_57 [0] : vector<16x256xf32> to vector<256xf32>
    %192 = vector.shape_cast %191 : vector<256xf32> to vector<1x256xf32>
    %193 = tpu.concatenate %189, %192 in 0 : vector<1x256xf32>, vector<1x256xf32> -> vector<2x256xf32>
    %cst_58 = arith.constant dense<0.000000e+00> : vector<2x2xf32>
    %194 = tpu.matmul %193, %184, %cst_58 {dimension_numbers = #tpu.dot_dimension_numbers<[1], [0], [0], [1], [0, 0, 1, 1], [], []>} : vector<2x256xf32>, vector<256x2xf32>, vector<2x2xf32> -> vector<2x2xf32>
    %cst_59 = arith.constant 4.8828125E-4 : f32
    %195 = vector.broadcast %cst_59 : f32 to vector<2x2xf32>
    %196 = arith.mulf %194, %195 : vector<2x2xf32>
    %cst_60 = arith.constant dense<0.000000e+00> : vector<2x256xf32>
    %197 = tpu.matmul %196, %185, %cst_60 {dimension_numbers = #tpu.dot_dimension_numbers<[1], [0], [0], [1], [0, 0, 1, 1], [], []>} : vector<2x2xf32>, vector<2x256xf32>, vector<2x256xf32> -> vector<2x256xf32>
    %198 = vector.extract_strided_slice %197 {offsets = [0, 0], sizes = [1, 256], strides = [1, 1]} : vector<2x256xf32> to vector<1x256xf32>
    %199 = vector.extract_strided_slice %197 {offsets = [1, 0], sizes = [1, 256], strides = [1, 1]} : vector<2x256xf32> to vector<1x256xf32>
    %200 = arith.mulf %198, %198 : vector<1x256xf32>
    %201 = arith.subf %199, %200 : vector<1x256xf32>
    %cst_61 = arith.constant 0.000000e+00 : f32
    %202 = vector.broadcast %cst_61 : f32 to vector<1x256xf32>
    %203 = arith.maximumf %201, %202 : vector<1x256xf32>
    %cst_62 = arith.constant 9.99999974E-6 : f32
    %204 = vector.broadcast %cst_62 : f32 to vector<1x256xf32>
    %205 = arith.addf %203, %204 : vector<1x256xf32>
    %206 = math.rsqrt %205 : vector<1x256xf32>
    %207 = arith.mulf %206, %186 : vector<1x256xf32>
    %208 = arith.mulf %198, %207 : vector<1x256xf32>
    %209 = arith.subf %187, %208 : vector<1x256xf32>
    %210 = vector.broadcast %207 : vector<1x256xf32> to vector<16x256xf32>
    %211 = arith.mulf %183, %210 : vector<16x256xf32>
    %212 = vector.broadcast %209 : vector<1x256xf32> to vector<16x256xf32>
    %213 = arith.addf %211, %212 : vector<16x256xf32>
    %cst_63 = arith.constant 5.000000e-01 : f32
    %214 = vector.broadcast %cst_63 : f32 to vector<16x256xf32>
    %215 = arith.mulf %214, %213 : vector<16x256xf32>
    %216 = math.tanh %215 : vector<16x256xf32>
    %cst_64 = arith.constant 5.000000e-01 : f32
    %217 = vector.broadcast %cst_64 : f32 to vector<16x256xf32>
    %218 = arith.mulf %217, %216 : vector<16x256xf32>
    %cst_65 = arith.constant 5.000000e-01 : f32
    %219 = vector.broadcast %cst_65 : f32 to vector<16x256xf32>
    %220 = arith.addf %218, %219 : vector<16x256xf32>
    %221 = arith.mulf %213, %220 : vector<16x256xf32>
    %c0_66 = arith.constant 0 : index
    %c0_67 = arith.constant 0 : index
    %222 = vector.load %arg17[%c0_66, %c0_67] : memref<256x128xf32, #tpu.memory_space<vmem>>, vector<256x128xf32>
    %cst_68 = arith.constant dense<0.000000e+00> : vector<16x128xf32>
    %223 = tpu.matmul %221, %222, %cst_68 {dimension_numbers = #tpu.dot_dimension_numbers<[1], [0], [0], [1], [0, 0, 1, 1], [], []>} : vector<16x256xf32>, vector<256x128xf32>, vector<16x128xf32> -> vector<16x128xf32>
    %c0_69 = arith.constant 0 : index
    %c0_70 = arith.constant 0 : index
    %224 = vector.load %arg18[%c0_69, %c0_70] : memref<128x1xf32, #tpu.memory_space<vmem>>, vector<128x1xf32>
    %c0_71 = arith.constant 0 : index
    %c0_72 = arith.constant 0 : index
    %225 = vector.load %arg19[%c0_71, %c0_72] : memref<1x128xf32, #tpu.memory_space<vmem>>, vector<1x128xf32>
    %c0_73 = arith.constant 0 : index
    %c0_74 = arith.constant 0 : index
    %226 = vector.load %arg20[%c0_73, %c0_74] : memref<1x128xf32, #tpu.memory_space<vmem>>, vector<1x128xf32>
    %c0_75 = arith.constant 0 : index
    %c0_76 = arith.constant 0 : index
    %227 = vector.load %arg21[%c0_75, %c0_76] : memref<1x128xf32, #tpu.memory_space<vmem>>, vector<1x128xf32>
    %cst_77 = arith.constant dense<0.000000e+00> : vector<128xf32>
    %228 = vector.multi_reduction <add>, %223, %cst_77 [0] : vector<16x128xf32> to vector<128xf32>
    %229 = vector.shape_cast %228 : vector<128xf32> to vector<1x128xf32>
    %230 = arith.mulf %223, %223 : vector<16x128xf32>
    %cst_78 = arith.constant dense<0.000000e+00> : vector<128xf32>
    %231 = vector.multi_reduction <add>, %230, %cst_78 [0] : vector<16x128xf32> to vector<128xf32>
    %232 = vector.shape_cast %231 : vector<128xf32> to vector<1x128xf32>
    %233 = tpu.concatenate %229, %232 in 0 : vector<1x128xf32>, vector<1x128xf32> -> vector<2x128xf32>
    %cst_79 = arith.constant dense<0.000000e+00> : vector<2x1xf32>
    %234 = tpu.matmul %233, %224, %cst_79 {dimension_numbers = #tpu.dot_dimension_numbers<[1], [0], [0], [1], [0, 0, 1, 1], [], []>} : vector<2x128xf32>, vector<128x1xf32>, vector<2x1xf32> -> vector<2x1xf32>
    %cst_80 = arith.constant 4.8828125E-4 : f32
    %235 = vector.broadcast %cst_80 : f32 to vector<2x1xf32>
    %236 = arith.mulf %234, %235 : vector<2x1xf32>
    %cst_81 = arith.constant dense<0.000000e+00> : vector<2x128xf32>
    %237 = tpu.matmul %236, %225, %cst_81 {dimension_numbers = #tpu.dot_dimension_numbers<[1], [0], [0], [1], [0, 0, 1, 1], [], []>} : vector<2x1xf32>, vector<1x128xf32>, vector<2x128xf32> -> vector<2x128xf32>
    %238 = vector.extract_strided_slice %237 {offsets = [0, 0], sizes = [1, 128], strides = [1, 1]} : vector<2x128xf32> to vector<1x128xf32>
    %239 = vector.extract_strided_slice %237 {offsets = [1, 0], sizes = [1, 128], strides = [1, 1]} : vector<2x128xf32> to vector<1x128xf32>
    %240 = arith.mulf %238, %238 : vector<1x128xf32>
    %241 = arith.subf %239, %240 : vector<1x128xf32>
    %cst_82 = arith.constant 0.000000e+00 : f32
    %242 = vector.broadcast %cst_82 : f32 to vector<1x128xf32>
    %243 = arith.maximumf %241, %242 : vector<1x128xf32>
    %cst_83 = arith.constant 9.99999974E-6 : f32
    %244 = vector.broadcast %cst_83 : f32 to vector<1x128xf32>
    %245 = arith.addf %243, %244 : vector<1x128xf32>
    %246 = math.rsqrt %245 : vector<1x128xf32>
    %247 = arith.mulf %246, %226 : vector<1x128xf32>
    %248 = arith.mulf %238, %247 : vector<1x128xf32>
    %249 = arith.subf %227, %248 : vector<1x128xf32>
    %250 = vector.broadcast %247 : vector<1x128xf32> to vector<16x128xf32>
    %251 = arith.mulf %223, %250 : vector<16x128xf32>
    %252 = vector.broadcast %249 : vector<1x128xf32> to vector<16x128xf32>
    %253 = arith.addf %251, %252 : vector<16x128xf32>
    %cst_84 = arith.constant 5.000000e-01 : f32
    %254 = vector.broadcast %cst_84 : f32 to vector<16x128xf32>
    %255 = arith.mulf %254, %253 : vector<16x128xf32>
    %256 = math.tanh %255 : vector<16x128xf32>
    %cst_85 = arith.constant 5.000000e-01 : f32
    %257 = vector.broadcast %cst_85 : f32 to vector<16x128xf32>
    %258 = arith.mulf %257, %256 : vector<16x128xf32>
    %cst_86 = arith.constant 5.000000e-01 : f32
    %259 = vector.broadcast %cst_86 : f32 to vector<16x128xf32>
    %260 = arith.addf %258, %259 : vector<16x128xf32>
    %261 = arith.mulf %253, %260 : vector<16x128xf32>
    %c0_87 = arith.constant 0 : index
    %c0_88 = arith.constant 0 : index
    %c0_89 = arith.constant 0 : index
    %262 = vector.load %arg22[%c0_87, %c0_88, %c0_89] : memref<1x16x128xf32, #tpu.memory_space<vmem>>, vector<1x16x128xf32>
    %263 = vector.shape_cast %262 : vector<1x16x128xf32> to vector<16x128xf32>
    %264 = vector.shape_cast %261 : vector<16x128xf32> to vector<1x16x128xf32>
    tpu.vector_store %arg22[%c0_87, %c0_88, %c0_89], %264 {strides = array<i32>} : memref<1x16x128xf32, #tpu.memory_space<vmem>>, vector<1x16x128xf32>,
    return
  }
  func.func @transform_0(%arg0: i32) -> (i32, i32, i32) {
    %c0_i32 = arith.constant 0 : i32
    %c0_i32_0 = arith.constant 0 : i32
    %c0_i32_1 = arith.constant 0 : i32
    return %arg0, %c0_i32, %c0_i32_0 : i32, i32, i32
  }
  func.func @transform_1(%arg0: i32) -> (i32, i32) {
    %c0_i32 = arith.constant 0 : i32
    %c0_i32_0 = arith.constant 0 : i32
    %c0_i32_1 = arith.constant 0 : i32
    return %c0_i32, %c0_i32_0 : i32, i32
  }
  func.func @transform_2(%arg0: i32) -> (i32, i32) {
    %c0_i32 = arith.constant 0 : i32
    %c0_i32_0 = arith.constant 0 : i32
    %c0_i32_1 = arith.constant 0 : i32
    return %c0_i32, %c0_i32_0 : i32, i32
  }
  func.func @transform_3(%arg0: i32) -> (i32, i32) {
    %c0_i32 = arith.constant 0 : i32
    %c0_i32_0 = arith.constant 0 : i32
    %c0_i32_1 = arith.constant 0 : i32
    return %c0_i32, %c0_i32_0 : i32, i32
  }
  func.func @transform_4(%arg0: i32) -> (i32, i32) {
    %c0_i32 = arith.constant 0 : i32
    %c0_i32_0 = arith.constant 0 : i32
    %c0_i32_1 = arith.constant 0 : i32
    return %c0_i32, %c0_i32_0 : i32, i32
  }
  func.func @transform_5(%arg0: i32) -> (i32, i32) {
    %c0_i32 = arith.constant 0 : i32
    %c0_i32_0 = arith.constant 0 : i32
    %c0_i32_1 = arith.constant 0 : i32
    return %c0_i32, %c0_i32_0 : i32, i32
  }
  func.func @transform_6(%arg0: i32) -> (i32, i32) {
    %c0_i32 = arith.constant 0 : i32
    %c0_i32_0 = arith.constant 0 : i32
    %c0_i32_1 = arith.constant 0 : i32
    return %c0_i32, %c0_i32_0 : i32, i32
  }
  func.func @transform_7(%arg0: i32) -> (i32, i32) {
    %c0_i32 = arith.constant 0 : i32
    %c0_i32_0 = arith.constant 0 : i32
    %c0_i32_1 = arith.constant 0 : i32
    return %c0_i32, %c0_i32_0 : i32, i32
  }
  func.func @transform_8(%arg0: i32) -> (i32, i32) {
    %c0_i32 = arith.constant 0 : i32
    %c0_i32_0 = arith.constant 0 : i32
    %c0_i32_1 = arith.constant 0 : i32
    return %c0_i32, %c0_i32_0 : i32, i32
  }
  func.func @transform_9(%arg0: i32) -> (i32, i32) {
    %c0_i32 = arith.constant 0 : i32
    %c0_i32_0 = arith.constant 0 : i32
    %c0_i32_1 = arith.constant 0 : i32
    return %c0_i32, %c0_i32_0 : i32, i32
  }
  func.func @transform_10(%arg0: i32) -> (i32, i32) {
    %c0_i32 = arith.constant 0 : i32
    %c0_i32_0 = arith.constant 0 : i32
    %c0_i32_1 = arith.constant 0 : i32
    return %c0_i32, %c0_i32_0 : i32, i32
  }
  func.func @transform_11(%arg0: i32) -> (i32, i32) {
    %c0_i32 = arith.constant 0 : i32
    %c0_i32_0 = arith.constant 0 : i32
    %c0_i32_1 = arith.constant 0 : i32
    return %c0_i32, %c0_i32_0 : i32, i32
  }
  func.func @transform_12(%arg0: i32) -> (i32, i32) {
    %c0_i32 = arith.constant 0 : i32
    %c0_i32_0 = arith.constant 0 : i32
    %c0_i32_1 = arith.constant 0 : i32
    return %c0_i32, %c0_i32_0 : i32, i32
  }
  func.func @transform_13(%arg0: i32) -> (i32, i32) {
    %c0_i32 = arith.constant 0 : i32
    %c0_i32_0 = arith.constant 0 : i32
    %c0_i32_1 = arith.constant 0 : i32
    return %c0_i32, %c0_i32_0 : i32, i32
  }
  func.func @transform_14(%arg0: i32) -> (i32, i32) {
    %c0_i32 = arith.constant 0 : i32
    %c0_i32_0 = arith.constant 0 : i32
    %c0_i32_1 = arith.constant 0 : i32
    return %c0_i32, %c0_i32_0 : i32, i32
  }
  func.func @transform_15(%arg0: i32) -> (i32, i32) {
    %c0_i32 = arith.constant 0 : i32
    %c0_i32_0 = arith.constant 0 : i32
    %c0_i32_1 = arith.constant 0 : i32
    return %c0_i32, %c0_i32_0 : i32, i32
  }
  func.func @transform_16(%arg0: i32) -> (i32, i32) {
    %c0_i32 = arith.constant 0 : i32
    %c0_i32_0 = arith.constant 0 : i32
    %c0_i32_1 = arith.constant 0 : i32
    return %c0_i32, %c0_i32_0 : i32, i32
  }
  func.func @transform_17(%arg0: i32) -> (i32, i32) {
    %c0_i32 = arith.constant 0 : i32
    %c0_i32_0 = arith.constant 0 : i32
    %c0_i32_1 = arith.constant 0 : i32
    return %c0_i32, %c0_i32_0 : i32, i32
  }
  func.func @transform_18(%arg0: i32) -> (i32, i32) {
    %c0_i32 = arith.constant 0 : i32
    %c0_i32_0 = arith.constant 0 : i32
    %c0_i32_1 = arith.constant 0 : i32
    return %c0_i32, %c0_i32_0 : i32, i32
  }
  func.func @transform_19(%arg0: i32) -> (i32, i32) {
    %c0_i32 = arith.constant 0 : i32
    %c0_i32_0 = arith.constant 0 : i32
    %c0_i32_1 = arith.constant 0 : i32
    return %c0_i32, %c0_i32_0 : i32, i32
  }
  func.func @transform_20(%arg0: i32) -> (i32, i32) {
    %c0_i32 = arith.constant 0 : i32
    %c0_i32_0 = arith.constant 0 : i32
    %c0_i32_1 = arith.constant 0 : i32
    return %c0_i32, %c0_i32_0 : i32, i32
  }
  func.func @transform_21(%arg0: i32) -> (i32, i32, i32) {
    %c0_i32 = arith.constant 0 : i32
    %c0_i32_0 = arith.constant 0 : i32
    %c0_i32_1 = arith.constant 0 : i32
    return %arg0, %c0_i32, %c0_i32_0 : i32, i32, i32
  }
}

module attributes {stable_mosaic.version = 11 : i64} {
  func.func @_extra_dw_kernel(%arg0: i32, %arg1: memref<1x16x128xf32, #tpu.memory_space<vmem>>, %arg2: memref<9x128xf32, #tpu.memory_space<vmem>>, %arg3: memref<128x1xf32, #tpu.memory_space<vmem>>, %arg4: memref<1x128xf32, #tpu.memory_space<vmem>>, %arg5: memref<1x128xf32, #tpu.memory_space<vmem>>, %arg6: memref<1x128xf32, #tpu.memory_space<vmem>>, %arg7: memref<128x256xf32, #tpu.memory_space<vmem>>, %arg8: memref<256x2xf32, #tpu.memory_space<vmem>>, %arg9: memref<2x256xf32, #tpu.memory_space<vmem>>, %arg10: memref<1x256xf32, #tpu.memory_space<vmem>>, %arg11: memref<1x256xf32, #tpu.memory_space<vmem>>, %arg12: memref<9x256xf32, #tpu.memory_space<vmem>>, %arg13: memref<256x2xf32, #tpu.memory_space<vmem>>, %arg14: memref<2x256xf32, #tpu.memory_space<vmem>>, %arg15: memref<1x256xf32, #tpu.memory_space<vmem>>, %arg16: memref<1x256xf32, #tpu.memory_space<vmem>>, %arg17: memref<256x128xf32, #tpu.memory_space<vmem>>, %arg18: memref<128x1xf32, #tpu.memory_space<vmem>>, %arg19: memref<1x128xf32, #tpu.memory_space<vmem>>, %arg20: memref<1x128xf32, #tpu.memory_space<vmem>>, %arg21: memref<1x128xf32, #tpu.memory_space<vmem>>, %arg22: memref<1x16x128xf32, #tpu.memory_space<vmem>>) attributes {dimension_semantics = [#tpu.dimension_semantics<parallel>], iteration_bounds = array<i64: 2>, scalar_prefetch = 0 : i64, scratch_operands = 0 : i64, tpu.core_type = #tpu.core_type<tc>, window_params = [{transform_indices = @transform_0, window_bounds = array<i64: 1, 16, 128>}, {pipeline_mode = #tpu.pipeline_mode<synchronous>, transform_indices = @transform_1, window_bounds = array<i64: 9, 128>}, {pipeline_mode = #tpu.pipeline_mode<synchronous>, transform_indices = @transform_2, window_bounds = array<i64: 128, 1>}, {pipeline_mode = #tpu.pipeline_mode<synchronous>, transform_indices = @transform_3, window_bounds = array<i64: 1, 128>}, {pipeline_mode = #tpu.pipeline_mode<synchronous>, transform_indices = @transform_4, window_bounds = array<i64: 1, 128>}, {pipeline_mode = #tpu.pipeline_mode<synchronous>, transform_indices = @transform_5, window_bounds = array<i64: 1, 128>}, {pipeline_mode = #tpu.pipeline_mode<synchronous>, transform_indices = @transform_6, window_bounds = array<i64: 128, 256>}, {pipeline_mode = #tpu.pipeline_mode<synchronous>, transform_indices = @transform_7, window_bounds = array<i64: 256, 2>}, {pipeline_mode = #tpu.pipeline_mode<synchronous>, transform_indices = @transform_8, window_bounds = array<i64: 2, 256>}, {pipeline_mode = #tpu.pipeline_mode<synchronous>, transform_indices = @transform_9, window_bounds = array<i64: 1, 256>}, {pipeline_mode = #tpu.pipeline_mode<synchronous>, transform_indices = @transform_10, window_bounds = array<i64: 1, 256>}, {pipeline_mode = #tpu.pipeline_mode<synchronous>, transform_indices = @transform_11, window_bounds = array<i64: 9, 256>}, {pipeline_mode = #tpu.pipeline_mode<synchronous>, transform_indices = @transform_12, window_bounds = array<i64: 256, 2>}, {pipeline_mode = #tpu.pipeline_mode<synchronous>, transform_indices = @transform_13, window_bounds = array<i64: 2, 256>}, {pipeline_mode = #tpu.pipeline_mode<synchronous>, transform_indices = @transform_14, window_bounds = array<i64: 1, 256>}, {pipeline_mode = #tpu.pipeline_mode<synchronous>, transform_indices = @transform_15, window_bounds = array<i64: 1, 256>}, {pipeline_mode = #tpu.pipeline_mode<synchronous>, transform_indices = @transform_16, window_bounds = array<i64: 256, 128>}, {pipeline_mode = #tpu.pipeline_mode<synchronous>, transform_indices = @transform_17, window_bounds = array<i64: 128, 1>}, {pipeline_mode = #tpu.pipeline_mode<synchronous>, transform_indices = @transform_18, window_bounds = array<i64: 1, 128>}, {pipeline_mode = #tpu.pipeline_mode<synchronous>, transform_indices = @transform_19, window_bounds = array<i64: 1, 128>}, {pipeline_mode = #tpu.pipeline_mode<synchronous>, transform_indices = @transform_20, window_bounds = array<i64: 1, 128>}, {transform_indices = @transform_21, window_bounds = array<i64: 1, 16, 128>}]} {
    %c0 = arith.constant 0 : index
    %c0_0 = arith.constant 0 : index
    %c0_1 = arith.constant 0 : index
    %0 = vector.load %arg1[%c0, %c0_0, %c0_1] : memref<1x16x128xf32, #tpu.memory_space<vmem>>, vector<1x16x128xf32>
    %1 = vector.shape_cast %0 : vector<1x16x128xf32> to vector<16x128xf32>
    %cst = arith.constant 0.000000e+00 : f32
    %2 = vector.broadcast %cst : f32 to vector<1x128xf32>
    %3 = tpu.concatenate %2, %1, %2 in 0 : vector<1x128xf32>, vector<16x128xf32>, vector<1x128xf32> -> vector<18x128xf32>
    %cst_2 = arith.constant 0.000000e+00 : f32
    %4 = vector.broadcast %cst_2 : f32 to vector<18x8xf32>
    %5 = tpu.concatenate %4, %3, %4 in 1 : vector<18x8xf32>, vector<18x128xf32>, vector<18x8xf32> -> vector<18x144xf32>
    %c0_3 = arith.constant 0 : index
    %c0_4 = arith.constant 0 : index
    %6 = vector.load %arg2[%c0_3, %c0_4] : memref<9x128xf32, #tpu.memory_space<vmem>>, vector<9x128xf32>
    %7 = vector.extract_strided_slice %5 {offsets = [0, 0], sizes = [18, 128], strides = [1, 1]} : vector<18x144xf32> to vector<18x128xf32>
    %8 = vector.extract_strided_slice %5 {offsets = [0, 8], sizes = [18, 128], strides = [1, 1]} : vector<18x144xf32> to vector<18x128xf32>
    %9 = vector.extract_strided_slice %5 {offsets = [0, 16], sizes = [18, 128], strides = [1, 1]} : vector<18x144xf32> to vector<18x128xf32>
    %10 = vector.extract_strided_slice %7 {offsets = [0, 0], sizes = [16, 128], strides = [1, 1]} : vector<18x128xf32> to vector<16x128xf32>
    %11 = vector.extract_strided_slice %6 {offsets = [0, 0], sizes = [1, 128], strides = [1, 1]} : vector<9x128xf32> to vector<1x128xf32>
    %12 = vector.broadcast %11 : vector<1x128xf32> to vector<16x128xf32>
    %13 = arith.mulf %10, %12 : vector<16x128xf32>
    %14 = vector.extract_strided_slice %8 {offsets = [0, 0], sizes = [16, 128], strides = [1, 1]} : vector<18x128xf32> to vector<16x128xf32>
    %15 = vector.extract_strided_slice %6 {offsets = [1, 0], sizes = [1, 128], strides = [1, 1]} : vector<9x128xf32> to vector<1x128xf32>
    %16 = vector.broadcast %15 : vector<1x128xf32> to vector<16x128xf32>
    %17 = arith.mulf %14, %16 : vector<16x128xf32>
    %18 = vector.extract_strided_slice %9 {offsets = [0, 0], sizes = [16, 128], strides = [1, 1]} : vector<18x128xf32> to vector<16x128xf32>
    %19 = vector.extract_strided_slice %6 {offsets = [2, 0], sizes = [1, 128], strides = [1, 1]} : vector<9x128xf32> to vector<1x128xf32>
    %20 = vector.broadcast %19 : vector<1x128xf32> to vector<16x128xf32>
    %21 = arith.mulf %18, %20 : vector<16x128xf32>
    %22 = vector.extract_strided_slice %7 {offsets = [1, 0], sizes = [16, 128], strides = [1, 1]} : vector<18x128xf32> to vector<16x128xf32>
    %23 = vector.extract_strided_slice %6 {offsets = [3, 0], sizes = [1, 128], strides = [1, 1]} : vector<9x128xf32> to vector<1x128xf32>
    %24 = vector.broadcast %23 : vector<1x128xf32> to vector<16x128xf32>
    %25 = arith.mulf %22, %24 : vector<16x128xf32>
    %26 = vector.extract_strided_slice %8 {offsets = [1, 0], sizes = [16, 128], strides = [1, 1]} : vector<18x128xf32> to vector<16x128xf32>
    %27 = vector.extract_strided_slice %6 {offsets = [4, 0], sizes = [1, 128], strides = [1, 1]} : vector<9x128xf32> to vector<1x128xf32>
    %28 = vector.broadcast %27 : vector<1x128xf32> to vector<16x128xf32>
    %29 = arith.mulf %26, %28 : vector<16x128xf32>
    %30 = arith.addf %13, %29 : vector<16x128xf32>
    %31 = vector.extract_strided_slice %9 {offsets = [1, 0], sizes = [16, 128], strides = [1, 1]} : vector<18x128xf32> to vector<16x128xf32>
    %32 = vector.extract_strided_slice %6 {offsets = [5, 0], sizes = [1, 128], strides = [1, 1]} : vector<9x128xf32> to vector<1x128xf32>
    %33 = vector.broadcast %32 : vector<1x128xf32> to vector<16x128xf32>
    %34 = arith.mulf %31, %33 : vector<16x128xf32>
    %35 = arith.addf %17, %34 : vector<16x128xf32>
    %36 = vector.extract_strided_slice %7 {offsets = [2, 0], sizes = [16, 128], strides = [1, 1]} : vector<18x128xf32> to vector<16x128xf32>
    %37 = vector.extract_strided_slice %6 {offsets = [6, 0], sizes = [1, 128], strides = [1, 1]} : vector<9x128xf32> to vector<1x128xf32>
    %38 = vector.broadcast %37 : vector<1x128xf32> to vector<16x128xf32>
    %39 = arith.mulf %36, %38 : vector<16x128xf32>
    %40 = arith.addf %21, %39 : vector<16x128xf32>
    %41 = vector.extract_strided_slice %8 {offsets = [2, 0], sizes = [16, 128], strides = [1, 1]} : vector<18x128xf32> to vector<16x128xf32>
    %42 = vector.extract_strided_slice %6 {offsets = [7, 0], sizes = [1, 128], strides = [1, 1]} : vector<9x128xf32> to vector<1x128xf32>
    %43 = vector.broadcast %42 : vector<1x128xf32> to vector<16x128xf32>
    %44 = arith.mulf %41, %43 : vector<16x128xf32>
    %45 = arith.addf %25, %44 : vector<16x128xf32>
    %46 = vector.extract_strided_slice %9 {offsets = [2, 0], sizes = [16, 128], strides = [1, 1]} : vector<18x128xf32> to vector<16x128xf32>
    %47 = vector.extract_strided_slice %6 {offsets = [8, 0], sizes = [1, 128], strides = [1, 1]} : vector<9x128xf32> to vector<1x128xf32>
    %48 = vector.broadcast %47 : vector<1x128xf32> to vector<16x128xf32>
    %49 = arith.mulf %46, %48 : vector<16x128xf32>
    %50 = arith.addf %30, %49 : vector<16x128xf32>
    %51 = arith.addf %50, %35 : vector<16x128xf32>
    %52 = arith.addf %40, %45 : vector<16x128xf32>
    %53 = arith.addf %51, %52 : vector<16x128xf32>
    %c0_5 = arith.constant 0 : index
    %c0_6 = arith.constant 0 : index
    %54 = vector.load %arg3[%c0_5, %c0_6] : memref<128x1xf32, #tpu.memory_space<vmem>>, vector<128x1xf32>
    %c0_7 = arith.constant 0 : index
    %c0_8 = arith.constant 0 : index
    %55 = vector.load %arg4[%c0_7, %c0_8] : memref<1x128xf32, #tpu.memory_space<vmem>>, vector<1x128xf32>
    %c0_9 = arith.constant 0 : index
    %c0_10 = arith.constant 0 : index
    %56 = vector.load %arg5[%c0_9, %c0_10] : memref<1x128xf32, #tpu.memory_space<vmem>>, vector<1x128xf32>
    %c0_11 = arith.constant 0 : index
    %c0_12 = arith.constant 0 : index
    %57 = vector.load %arg6[%c0_11, %c0_12] : memref<1x128xf32, #tpu.memory_space<vmem>>, vector<1x128xf32>
    %cst_13 = arith.constant dense<0.000000e+00> : vector<128xf32>
    %58 = vector.multi_reduction <add>, %53, %cst_13 [0] : vector<16x128xf32> to vector<128xf32>
    %59 = vector.shape_cast %58 : vector<128xf32> to vector<1x128xf32>
    %60 = arith.mulf %53, %53 : vector<16x128xf32>
    %cst_14 = arith.constant dense<0.000000e+00> : vector<128xf32>
    %61 = vector.multi_reduction <add>, %60, %cst_14 [0] : vector<16x128xf32> to vector<128xf32>
    %62 = vector.shape_cast %61 : vector<128xf32> to vector<1x128xf32>
    %63 = tpu.concatenate %59, %62 in 0 : vector<1x128xf32>, vector<1x128xf32> -> vector<2x128xf32>
    %cst_15 = arith.constant dense<0.000000e+00> : vector<2x1xf32>
    %64 = tpu.matmul %63, %54, %cst_15 {dimension_numbers = #tpu.dot_dimension_numbers<[1], [0], [0], [1], [0, 0, 1, 1], [], []>} : vector<2x128xf32>, vector<128x1xf32>, vector<2x1xf32> -> vector<2x1xf32>
    %cst_16 = arith.constant 4.8828125E-4 : f32
    %65 = vector.broadcast %cst_16 : f32 to vector<2x1xf32>
    %66 = arith.mulf %64, %65 : vector<2x1xf32>
    %cst_17 = arith.constant dense<0.000000e+00> : vector<2x128xf32>
    %67 = tpu.matmul %66, %55, %cst_17 {dimension_numbers = #tpu.dot_dimension_numbers<[1], [0], [0], [1], [0, 0, 1, 1], [], []>} : vector<2x1xf32>, vector<1x128xf32>, vector<2x128xf32> -> vector<2x128xf32>
    %68 = vector.extract_strided_slice %67 {offsets = [0, 0], sizes = [1, 128], strides = [1, 1]} : vector<2x128xf32> to vector<1x128xf32>
    %69 = vector.extract_strided_slice %67 {offsets = [1, 0], sizes = [1, 128], strides = [1, 1]} : vector<2x128xf32> to vector<1x128xf32>
    %70 = arith.mulf %68, %68 : vector<1x128xf32>
    %71 = arith.subf %69, %70 : vector<1x128xf32>
    %cst_18 = arith.constant 0.000000e+00 : f32
    %72 = vector.broadcast %cst_18 : f32 to vector<1x128xf32>
    %73 = arith.maximumf %71, %72 : vector<1x128xf32>
    %cst_19 = arith.constant 9.99999974E-6 : f32
    %74 = vector.broadcast %cst_19 : f32 to vector<1x128xf32>
    %75 = arith.addf %73, %74 : vector<1x128xf32>
    %76 = math.rsqrt %75 : vector<1x128xf32>
    %77 = arith.mulf %76, %56 : vector<1x128xf32>
    %78 = arith.mulf %68, %77 : vector<1x128xf32>
    %79 = arith.subf %57, %78 : vector<1x128xf32>
    %80 = vector.broadcast %77 : vector<1x128xf32> to vector<16x128xf32>
    %81 = arith.mulf %53, %80 : vector<16x128xf32>
    %82 = vector.broadcast %79 : vector<1x128xf32> to vector<16x128xf32>
    %83 = arith.addf %81, %82 : vector<16x128xf32>
    %cst_20 = arith.constant 5.000000e-01 : f32
    %84 = vector.broadcast %cst_20 : f32 to vector<16x128xf32>
    %85 = arith.mulf %84, %83 : vector<16x128xf32>
    %86 = math.tanh %85 : vector<16x128xf32>
    %cst_21 = arith.constant 5.000000e-01 : f32
    %87 = vector.broadcast %cst_21 : f32 to vector<16x128xf32>
    %88 = arith.mulf %87, %86 : vector<16x128xf32>
    %cst_22 = arith.constant 5.000000e-01 : f32
    %89 = vector.broadcast %cst_22 : f32 to vector<16x128xf32>
    %90 = arith.addf %88, %89 : vector<16x128xf32>
    %91 = arith.mulf %83, %90 : vector<16x128xf32>
    %c0_23 = arith.constant 0 : index
    %c0_24 = arith.constant 0 : index
    %92 = vector.load %arg7[%c0_23, %c0_24] : memref<128x256xf32, #tpu.memory_space<vmem>>, vector<128x256xf32>
    %cst_25 = arith.constant dense<0.000000e+00> : vector<16x256xf32>
    %93 = tpu.matmul %91, %92, %cst_25 {dimension_numbers = #tpu.dot_dimension_numbers<[1], [0], [0], [1], [0, 0, 1, 1], [], []>} : vector<16x128xf32>, vector<128x256xf32>, vector<16x256xf32> -> vector<16x256xf32>
    %c0_26 = arith.constant 0 : index
    %c0_27 = arith.constant 0 : index
    %94 = vector.load %arg8[%c0_26, %c0_27] : memref<256x2xf32, #tpu.memory_space<vmem>>, vector<256x2xf32>
    %c0_28 = arith.constant 0 : index
    %c0_29 = arith.constant 0 : index
    %95 = vector.load %arg9[%c0_28, %c0_29] : memref<2x256xf32, #tpu.memory_space<vmem>>, vector<2x256xf32>
    %c0_30 = arith.constant 0 : index
    %c0_31 = arith.constant 0 : index
    %96 = vector.load %arg10[%c0_30, %c0_31] : memref<1x256xf32, #tpu.memory_space<vmem>>, vector<1x256xf32>
    %c0_32 = arith.constant 0 : index
    %c0_33 = arith.constant 0 : index
    %97 = vector.load %arg11[%c0_32, %c0_33] : memref<1x256xf32, #tpu.memory_space<vmem>>, vector<1x256xf32>
    %cst_34 = arith.constant dense<0.000000e+00> : vector<256xf32>
    %98 = vector.multi_reduction <add>, %93, %cst_34 [0] : vector<16x256xf32> to vector<256xf32>
    %99 = vector.shape_cast %98 : vector<256xf32> to vector<1x256xf32>
    %100 = arith.mulf %93, %93 : vector<16x256xf32>
    %cst_35 = arith.constant dense<0.000000e+00> : vector<256xf32>
    %101 = vector.multi_reduction <add>, %100, %cst_35 [0] : vector<16x256xf32> to vector<256xf32>
    %102 = vector.shape_cast %101 : vector<256xf32> to vector<1x256xf32>
    %103 = tpu.concatenate %99, %102 in 0 : vector<1x256xf32>, vector<1x256xf32> -> vector<2x256xf32>
    %cst_36 = arith.constant dense<0.000000e+00> : vector<2x2xf32>
    %104 = tpu.matmul %103, %94, %cst_36 {dimension_numbers = #tpu.dot_dimension_numbers<[1], [0], [0], [1], [0, 0, 1, 1], [], []>} : vector<2x256xf32>, vector<256x2xf32>, vector<2x2xf32> -> vector<2x2xf32>
    %cst_37 = arith.constant 4.8828125E-4 : f32
    %105 = vector.broadcast %cst_37 : f32 to vector<2x2xf32>
    %106 = arith.mulf %104, %105 : vector<2x2xf32>
    %cst_38 = arith.constant dense<0.000000e+00> : vector<2x256xf32>
    %107 = tpu.matmul %106, %95, %cst_38 {dimension_numbers = #tpu.dot_dimension_numbers<[1], [0], [0], [1], [0, 0, 1, 1], [], []>} : vector<2x2xf32>, vector<2x256xf32>, vector<2x256xf32> -> vector<2x256xf32>
    %108 = vector.extract_strided_slice %107 {offsets = [0, 0], sizes = [1, 256], strides = [1, 1]} : vector<2x256xf32> to vector<1x256xf32>
    %109 = vector.extract_strided_slice %107 {offsets = [1, 0], sizes = [1, 256], strides = [1, 1]} : vector<2x256xf32> to vector<1x256xf32>
    %110 = arith.mulf %108, %108 : vector<1x256xf32>
    %111 = arith.subf %109, %110 : vector<1x256xf32>
    %cst_39 = arith.constant 0.000000e+00 : f32
    %112 = vector.broadcast %cst_39 : f32 to vector<1x256xf32>
    %113 = arith.maximumf %111, %112 : vector<1x256xf32>
    %cst_40 = arith.constant 9.99999974E-6 : f32
    %114 = vector.broadcast %cst_40 : f32 to vector<1x256xf32>
    %115 = arith.addf %113, %114 : vector<1x256xf32>
    %116 = math.rsqrt %115 : vector<1x256xf32>
    %117 = arith.mulf %116, %96 : vector<1x256xf32>
    %118 = arith.mulf %108, %117 : vector<1x256xf32>
    %119 = arith.subf %97, %118 : vector<1x256xf32>
    %120 = vector.broadcast %117 : vector<1x256xf32> to vector<16x256xf32>
    %121 = arith.mulf %93, %120 : vector<16x256xf32>
    %122 = vector.broadcast %119 : vector<1x256xf32> to vector<16x256xf32>
    %123 = arith.addf %121, %122 : vector<16x256xf32>
    %cst_41 = arith.constant 5.000000e-01 : f32
    %124 = vector.broadcast %cst_41 : f32 to vector<16x256xf32>
    %125 = arith.mulf %124, %123 : vector<16x256xf32>
    %126 = math.tanh %125 : vector<16x256xf32>
    %cst_42 = arith.constant 5.000000e-01 : f32
    %127 = vector.broadcast %cst_42 : f32 to vector<16x256xf32>
    %128 = arith.mulf %127, %126 : vector<16x256xf32>
    %cst_43 = arith.constant 5.000000e-01 : f32
    %129 = vector.broadcast %cst_43 : f32 to vector<16x256xf32>
    %130 = arith.addf %128, %129 : vector<16x256xf32>
    %131 = arith.mulf %123, %130 : vector<16x256xf32>
    %cst_44 = arith.constant 0.000000e+00 : f32
    %132 = vector.broadcast %cst_44 : f32 to vector<1x256xf32>
    %133 = tpu.concatenate %132, %131, %132 in 0 : vector<1x256xf32>, vector<16x256xf32>, vector<1x256xf32> -> vector<18x256xf32>
    %cst_45 = arith.constant 0.000000e+00 : f32
    %134 = vector.broadcast %cst_45 : f32 to vector<18x16xf32>
    %135 = tpu.concatenate %134, %133, %134 in 1 : vector<18x16xf32>, vector<18x256xf32>, vector<18x16xf32> -> vector<18x288xf32>
    %c0_46 = arith.constant 0 : index
    %c0_47 = arith.constant 0 : index
    %136 = vector.load %arg12[%c0_46, %c0_47] : memref<9x256xf32, #tpu.memory_space<vmem>>, vector<9x256xf32>
    %137 = vector.extract_strided_slice %135 {offsets = [0, 0], sizes = [18, 256], strides = [1, 1]} : vector<18x288xf32> to vector<18x256xf32>
    %138 = vector.extract_strided_slice %135 {offsets = [0, 16], sizes = [18, 256], strides = [1, 1]} : vector<18x288xf32> to vector<18x256xf32>
    %139 = vector.extract_strided_slice %135 {offsets = [0, 32], sizes = [18, 256], strides = [1, 1]} : vector<18x288xf32> to vector<18x256xf32>
    %140 = vector.extract_strided_slice %137 {offsets = [0, 0], sizes = [16, 256], strides = [1, 1]} : vector<18x256xf32> to vector<16x256xf32>
    %141 = vector.extract_strided_slice %136 {offsets = [0, 0], sizes = [1, 256], strides = [1, 1]} : vector<9x256xf32> to vector<1x256xf32>
    %142 = vector.broadcast %141 : vector<1x256xf32> to vector<16x256xf32>
    %143 = arith.mulf %140, %142 : vector<16x256xf32>
    %144 = vector.extract_strided_slice %138 {offsets = [0, 0], sizes = [16, 256], strides = [1, 1]} : vector<18x256xf32> to vector<16x256xf32>
    %145 = vector.extract_strided_slice %136 {offsets = [1, 0], sizes = [1, 256], strides = [1, 1]} : vector<9x256xf32> to vector<1x256xf32>
    %146 = vector.broadcast %145 : vector<1x256xf32> to vector<16x256xf32>
    %147 = arith.mulf %144, %146 : vector<16x256xf32>
    %148 = vector.extract_strided_slice %139 {offsets = [0, 0], sizes = [16, 256], strides = [1, 1]} : vector<18x256xf32> to vector<16x256xf32>
    %149 = vector.extract_strided_slice %136 {offsets = [2, 0], sizes = [1, 256], strides = [1, 1]} : vector<9x256xf32> to vector<1x256xf32>
    %150 = vector.broadcast %149 : vector<1x256xf32> to vector<16x256xf32>
    %151 = arith.mulf %148, %150 : vector<16x256xf32>
    %152 = vector.extract_strided_slice %137 {offsets = [1, 0], sizes = [16, 256], strides = [1, 1]} : vector<18x256xf32> to vector<16x256xf32>
    %153 = vector.extract_strided_slice %136 {offsets = [3, 0], sizes = [1, 256], strides = [1, 1]} : vector<9x256xf32> to vector<1x256xf32>
    %154 = vector.broadcast %153 : vector<1x256xf32> to vector<16x256xf32>
    %155 = arith.mulf %152, %154 : vector<16x256xf32>
    %156 = vector.extract_strided_slice %138 {offsets = [1, 0], sizes = [16, 256], strides = [1, 1]} : vector<18x256xf32> to vector<16x256xf32>
    %157 = vector.extract_strided_slice %136 {offsets = [4, 0], sizes = [1, 256], strides = [1, 1]} : vector<9x256xf32> to vector<1x256xf32>
    %158 = vector.broadcast %157 : vector<1x256xf32> to vector<16x256xf32>
    %159 = arith.mulf %156, %158 : vector<16x256xf32>
    %160 = arith.addf %143, %159 : vector<16x256xf32>
    %161 = vector.extract_strided_slice %139 {offsets = [1, 0], sizes = [16, 256], strides = [1, 1]} : vector<18x256xf32> to vector<16x256xf32>
    %162 = vector.extract_strided_slice %136 {offsets = [5, 0], sizes = [1, 256], strides = [1, 1]} : vector<9x256xf32> to vector<1x256xf32>
    %163 = vector.broadcast %162 : vector<1x256xf32> to vector<16x256xf32>
    %164 = arith.mulf %161, %163 : vector<16x256xf32>
    %165 = arith.addf %147, %164 : vector<16x256xf32>
    %166 = vector.extract_strided_slice %137 {offsets = [2, 0], sizes = [16, 256], strides = [1, 1]} : vector<18x256xf32> to vector<16x256xf32>
    %167 = vector.extract_strided_slice %136 {offsets = [6, 0], sizes = [1, 256], strides = [1, 1]} : vector<9x256xf32> to vector<1x256xf32>
    %168 = vector.broadcast %167 : vector<1x256xf32> to vector<16x256xf32>
    %169 = arith.mulf %166, %168 : vector<16x256xf32>
    %170 = arith.addf %151, %169 : vector<16x256xf32>
    %171 = vector.extract_strided_slice %138 {offsets = [2, 0], sizes = [16, 256], strides = [1, 1]} : vector<18x256xf32> to vector<16x256xf32>
    %172 = vector.extract_strided_slice %136 {offsets = [7, 0], sizes = [1, 256], strides = [1, 1]} : vector<9x256xf32> to vector<1x256xf32>
    %173 = vector.broadcast %172 : vector<1x256xf32> to vector<16x256xf32>
    %174 = arith.mulf %171, %173 : vector<16x256xf32>
    %175 = arith.addf %155, %174 : vector<16x256xf32>
    %176 = vector.extract_strided_slice %139 {offsets = [2, 0], sizes = [16, 256], strides = [1, 1]} : vector<18x256xf32> to vector<16x256xf32>
    %177 = vector.extract_strided_slice %136 {offsets = [8, 0], sizes = [1, 256], strides = [1, 1]} : vector<9x256xf32> to vector<1x256xf32>
    %178 = vector.broadcast %177 : vector<1x256xf32> to vector<16x256xf32>
    %179 = arith.mulf %176, %178 : vector<16x256xf32>
    %180 = arith.addf %160, %179 : vector<16x256xf32>
    %181 = arith.addf %180, %165 : vector<16x256xf32>
    %182 = arith.addf %170, %175 : vector<16x256xf32>
    %183 = arith.addf %181, %182 : vector<16x256xf32>
    %c0_48 = arith.constant 0 : index
    %c0_49 = arith.constant 0 : index
    %184 = vector.load %arg13[%c0_48, %c0_49] : memref<256x2xf32, #tpu.memory_space<vmem>>, vector<256x2xf32>
    %c0_50 = arith.constant 0 : index
    %c0_51 = arith.constant 0 : index
    %185 = vector.load %arg14[%c0_50, %c0_51] : memref<2x256xf32, #tpu.memory_space<vmem>>, vector<2x256xf32>
    %c0_52 = arith.constant 0 : index
    %c0_53 = arith.constant 0 : index
    %186 = vector.load %arg15[%c0_52, %c0_53] : memref<1x256xf32, #tpu.memory_space<vmem>>, vector<1x256xf32>
    %c0_54 = arith.constant 0 : index
    %c0_55 = arith.constant 0 : index
    %187 = vector.load %arg16[%c0_54, %c0_55] : memref<1x256xf32, #tpu.memory_space<vmem>>, vector<1x256xf32>
    %cst_56 = arith.constant dense<0.000000e+00> : vector<256xf32>
    %188 = vector.multi_reduction <add>, %183, %cst_56 [0] : vector<16x256xf32> to vector<256xf32>
    %189 = vector.shape_cast %188 : vector<256xf32> to vector<1x256xf32>
    %190 = arith.mulf %183, %183 : vector<16x256xf32>
    %cst_57 = arith.constant dense<0.000000e+00> : vector<256xf32>
    %191 = vector.multi_reduction <add>, %190, %cst_57 [0] : vector<16x256xf32> to vector<256xf32>
    %192 = vector.shape_cast %191 : vector<256xf32> to vector<1x256xf32>
    %193 = tpu.concatenate %189, %192 in 0 : vector<1x256xf32>, vector<1x256xf32> -> vector<2x256xf32>
    %cst_58 = arith.constant dense<0.000000e+00> : vector<2x2xf32>
    %194 = tpu.matmul %193, %184, %cst_58 {dimension_numbers = #tpu.dot_dimension_numbers<[1], [0], [0], [1], [0, 0, 1, 1], [], []>} : vector<2x256xf32>, vector<256x2xf32>, vector<2x2xf32> -> vector<2x2xf32>
    %cst_59 = arith.constant 4.8828125E-4 : f32
    %195 = vector.broadcast %cst_59 : f32 to vector<2x2xf32>
    %196 = arith.mulf %194, %195 : vector<2x2xf32>
    %cst_60 = arith.constant dense<0.000000e+00> : vector<2x256xf32>
    %197 = tpu.matmul %196, %185, %cst_60 {dimension_numbers = #tpu.dot_dimension_numbers<[1], [0], [0], [1], [0, 0, 1, 1], [], []>} : vector<2x2xf32>, vector<2x256xf32>, vector<2x256xf32> -> vector<2x256xf32>
    %198 = vector.extract_strided_slice %197 {offsets = [0, 0], sizes = [1, 256], strides = [1, 1]} : vector<2x256xf32> to vector<1x256xf32>
    %199 = vector.extract_strided_slice %197 {offsets = [1, 0], sizes = [1, 256], strides = [1, 1]} : vector<2x256xf32> to vector<1x256xf32>
    %200 = arith.mulf %198, %198 : vector<1x256xf32>
    %201 = arith.subf %199, %200 : vector<1x256xf32>
    %cst_61 = arith.constant 0.000000e+00 : f32
    %202 = vector.broadcast %cst_61 : f32 to vector<1x256xf32>
    %203 = arith.maximumf %201, %202 : vector<1x256xf32>
    %cst_62 = arith.constant 9.99999974E-6 : f32
    %204 = vector.broadcast %cst_62 : f32 to vector<1x256xf32>
    %205 = arith.addf %203, %204 : vector<1x256xf32>
    %206 = math.rsqrt %205 : vector<1x256xf32>
    %207 = arith.mulf %206, %186 : vector<1x256xf32>
    %208 = arith.mulf %198, %207 : vector<1x256xf32>
    %209 = arith.subf %187, %208 : vector<1x256xf32>
    %210 = vector.broadcast %207 : vector<1x256xf32> to vector<16x256xf32>
    %211 = arith.mulf %183, %210 : vector<16x256xf32>
    %212 = vector.broadcast %209 : vector<1x256xf32> to vector<16x256xf32>
    %213 = arith.addf %211, %212 : vector<16x256xf32>
    %cst_63 = arith.constant 5.000000e-01 : f32
    %214 = vector.broadcast %cst_63 : f32 to vector<16x256xf32>
    %215 = arith.mulf %214, %213 : vector<16x256xf32>
    %216 = math.tanh %215 : vector<16x256xf32>
    %cst_64 = arith.constant 5.000000e-01 : f32
    %217 = vector.broadcast %cst_64 : f32 to vector<16x256xf32>
    %218 = arith.mulf %217, %216 : vector<16x256xf32>
    %cst_65 = arith.constant 5.000000e-01 : f32
    %219 = vector.broadcast %cst_65 : f32 to vector<16x256xf32>
    %220 = arith.addf %218, %219 : vector<16x256xf32>
    %221 = arith.mulf %213, %220 : vector<16x256xf32>
    %c0_66 = arith.constant 0 : index
    %c0_67 = arith.constant 0 : index
    %222 = vector.load %arg17[%c0_66, %c0_67] : memref<256x128xf32, #tpu.memory_space<vmem>>, vector<256x128xf32>
    %cst_68 = arith.constant dense<0.000000e+00> : vector<16x128xf32>
    %223 = tpu.matmul %221, %222, %cst_68 {dimension_numbers = #tpu.dot_dimension_numbers<[1], [0], [0], [1], [0, 0, 1, 1], [], []>} : vector<16x256xf32>, vector<256x128xf32>, vector<16x128xf32> -> vector<16x128xf32>
    %c0_69 = arith.constant 0 : index
    %c0_70 = arith.constant 0 : index
    %224 = vector.load %arg18[%c0_69, %c0_70] : memref<128x1xf32, #tpu.memory_space<vmem>>, vector<128x1xf32>
    %c0_71 = arith.constant 0 : index
    %c0_72 = arith.constant 0 : index
    %225 = vector.load %arg19[%c0_71, %c0_72] : memref<1x128xf32, #tpu.memory_space<vmem>>, vector<1x128xf32>
    %c0_73 = arith.constant 0 : index
    %c0_74 = arith.constant 0 : index
    %226 = vector.load %arg20[%c0_73, %c0_74] : memref<1x128xf32, #tpu.memory_space<vmem>>, vector<1x128xf32>
    %c0_75 = arith.constant 0 : index
    %c0_76 = arith.constant 0 : index
    %227 = vector.load %arg21[%c0_75, %c0_76] : memref<1x128xf32, #tpu.memory_space<vmem>>, vector<1x128xf32>
    %cst_77 = arith.constant dense<0.000000e+00> : vector<128xf32>
    %228 = vector.multi_reduction <add>, %223, %cst_77 [0] : vector<16x128xf32> to vector<128xf32>
    %229 = vector.shape_cast %228 : vector<128xf32> to vector<1x128xf32>
    %230 = arith.mulf %223, %223 : vector<16x128xf32>
    %cst_78 = arith.constant dense<0.000000e+00> : vector<128xf32>
    %231 = vector.multi_reduction <add>, %230, %cst_78 [0] : vector<16x128xf32> to vector<128xf32>
    %232 = vector.shape_cast %231 : vector<128xf32> to vector<1x128xf32>
    %233 = tpu.concatenate %229, %232 in 0 : vector<1x128xf32>, vector<1x128xf32> -> vector<2x128xf32>
    %cst_79 = arith.constant dense<0.000000e+00> : vector<2x1xf32>
    %234 = tpu.matmul %233, %224, %cst_79 {dimension_numbers = #tpu.dot_dimension_numbers<[1], [0], [0], [1], [0, 0, 1, 1], [], []>} : vector<2x128xf32>, vector<128x1xf32>, vector<2x1xf32> -> vector<2x1xf32>
    %cst_80 = arith.constant 4.8828125E-4 : f32
    %235 = vector.broadcast %cst_80 : f32 to vector<2x1xf32>
    %236 = arith.mulf %234, %235 : vector<2x1xf32>
    %cst_81 = arith.constant dense<0.000000e+00> : vector<2x128xf32>
    %237 = tpu.matmul %236, %225, %cst_81 {dimension_numbers = #tpu.dot_dimension_numbers<[1], [0], [0], [1], [0, 0, 1, 1], [], []>} : vector<2x1xf32>, vector<1x128xf32>, vector<2x128xf32> -> vector<2x128xf32>
    %238 = vector.extract_strided_slice %237 {offsets = [0, 0], sizes = [1, 128], strides = [1, 1]} : vector<2x128xf32> to vector<1x128xf32>
    %239 = vector.extract_strided_slice %237 {offsets = [1, 0], sizes = [1, 128], strides = [1, 1]} : vector<2x128xf32> to vector<1x128xf32>
    %240 = arith.mulf %238, %238 : vector<1x128xf32>
    %241 = arith.subf %239, %240 : vector<1x128xf32>
    %cst_82 = arith.constant 0.000000e+00 : f32
    %242 = vector.broadcast %cst_82 : f32 to vector<1x128xf32>
    %243 = arith.maximumf %241, %242 : vector<1x128xf32>
    %cst_83 = arith.constant 9.99999974E-6 : f32
    %244 = vector.broadcast %cst_83 : f32 to vector<1x128xf32>
    %245 = arith.addf %243, %244 : vector<1x128xf32>
    %246 = math.rsqrt %245 : vector<1x128xf32>
    %247 = arith.mulf %246, %226 : vector<1x128xf32>
    %248 = arith.mulf %238, %247 : vector<1x128xf32>
    %249 = arith.subf %227, %248 : vector<1x128xf32>
    %250 = vector.broadcast %247 : vector<1x128xf32> to vector<16x128xf32>
    %251 = arith.mulf %223, %250 : vector<16x128xf32>
    %252 = vector.broadcast %249 : vector<1x128xf32> to vector<16x128xf32>
    %253 = arith.addf %251, %252 : vector<16x128xf32>
    %cst_84 = arith.constant 5.000000e-01 : f32
    %254 = vector.broadcast %cst_84 : f32 to vector<16x128xf32>
    %255 = arith.mulf %254, %253 : vector<16x128xf32>
    %256 = math.tanh %255 : vector<16x128xf32>
    %cst_85 = arith.constant 5.000000e-01 : f32
    %257 = vector.broadcast %cst_85 : f32 to vector<16x128xf32>
    %258 = arith.mulf %257, %256 : vector<16x128xf32>
    %cst_86 = arith.constant 5.000000e-01 : f32
    %259 = vector.broadcast %cst_86 : f32 to vector<16x128xf32>
    %260 = arith.addf %258, %259 : vector<16x128xf32>
    %261 = arith.mulf %253, %260 : vector<16x128xf32>
    %c0_87 = arith.constant 0 : index
    %c0_88 = arith.constant 0 : index
    %c0_89 = arith.constant 0 : index
    %262 = vector.load %arg22[%c0_87, %c0_88, %c0_89] : memref<1x16x128xf32, #tpu.memory_space<vmem>>, vector<1x16x128xf32>
    %263 = vector.shape_cast %262 : vector<1x16x128xf32> to vector<16x128xf32>
    %264 = vector.shape_cast %261 : vector<16x128xf32> to vector<1x16x128xf32>
    tpu.vector_store %arg22[%c0_87, %c0_88, %c0_89], %264 {strides = array<i32>} : memref<1x16x128xf32, #tpu.memory_space<vmem>>, vector<1x16x128xf32>,
    return
  }
  func.func @transform_0(%arg0: i32) -> (i32, i32, i32) {
    %c0_i32 = arith.constant 0 : i32
    %c0_i32_0 = arith.constant 0 : i32
    %c0_i32_1 = arith.constant 0 : i32
    return %arg0, %c0_i32, %c0_i32_0 : i32, i32, i32
  }
  func.func @transform_1(%arg0: i32) -> (i32, i32) {
    %c0_i32 = arith.constant 0 : i32
    %c0_i32_0 = arith.constant 0 : i32
    %c0_i32_1 = arith.constant 0 : i32
    return %c0_i32, %c0_i32_0 : i32, i32
  }
  func.func @transform_2(%arg0: i32) -> (i32, i32) {
    %c0_i32 = arith.constant 0 : i32
    %c0_i32_0 = arith.constant 0 : i32
    %c0_i32_1 = arith.constant 0 : i32
    return %c0_i32, %c0_i32_0 : i32, i32
  }
  func.func @transform_3(%arg0: i32) -> (i32, i32) {
    %c0_i32 = arith.constant 0 : i32
    %c0_i32_0 = arith.constant 0 : i32
    %c0_i32_1 = arith.constant 0 : i32
    return %c0_i32, %c0_i32_0 : i32, i32
  }
  func.func @transform_4(%arg0: i32) -> (i32, i32) {
    %c0_i32 = arith.constant 0 : i32
    %c0_i32_0 = arith.constant 0 : i32
    %c0_i32_1 = arith.constant 0 : i32
    return %c0_i32, %c0_i32_0 : i32, i32
  }
  func.func @transform_5(%arg0: i32) -> (i32, i32) {
    %c0_i32 = arith.constant 0 : i32
    %c0_i32_0 = arith.constant 0 : i32
    %c0_i32_1 = arith.constant 0 : i32
    return %c0_i32, %c0_i32_0 : i32, i32
  }
  func.func @transform_6(%arg0: i32) -> (i32, i32) {
    %c0_i32 = arith.constant 0 : i32
    %c0_i32_0 = arith.constant 0 : i32
    %c0_i32_1 = arith.constant 0 : i32
    return %c0_i32, %c0_i32_0 : i32, i32
  }
  func.func @transform_7(%arg0: i32) -> (i32, i32) {
    %c0_i32 = arith.constant 0 : i32
    %c0_i32_0 = arith.constant 0 : i32
    %c0_i32_1 = arith.constant 0 : i32
    return %c0_i32, %c0_i32_0 : i32, i32
  }
  func.func @transform_8(%arg0: i32) -> (i32, i32) {
    %c0_i32 = arith.constant 0 : i32
    %c0_i32_0 = arith.constant 0 : i32
    %c0_i32_1 = arith.constant 0 : i32
    return %c0_i32, %c0_i32_0 : i32, i32
  }
  func.func @transform_9(%arg0: i32) -> (i32, i32) {
    %c0_i32 = arith.constant 0 : i32
    %c0_i32_0 = arith.constant 0 : i32
    %c0_i32_1 = arith.constant 0 : i32
    return %c0_i32, %c0_i32_0 : i32, i32
  }
  func.func @transform_10(%arg0: i32) -> (i32, i32) {
    %c0_i32 = arith.constant 0 : i32
    %c0_i32_0 = arith.constant 0 : i32
    %c0_i32_1 = arith.constant 0 : i32
    return %c0_i32, %c0_i32_0 : i32, i32
  }
  func.func @transform_11(%arg0: i32) -> (i32, i32) {
    %c0_i32 = arith.constant 0 : i32
    %c0_i32_0 = arith.constant 0 : i32
    %c0_i32_1 = arith.constant 0 : i32
    return %c0_i32, %c0_i32_0 : i32, i32
  }
  func.func @transform_12(%arg0: i32) -> (i32, i32) {
    %c0_i32 = arith.constant 0 : i32
    %c0_i32_0 = arith.constant 0 : i32
    %c0_i32_1 = arith.constant 0 : i32
    return %c0_i32, %c0_i32_0 : i32, i32
  }
  func.func @transform_13(%arg0: i32) -> (i32, i32) {
    %c0_i32 = arith.constant 0 : i32
    %c0_i32_0 = arith.constant 0 : i32
    %c0_i32_1 = arith.constant 0 : i32
    return %c0_i32, %c0_i32_0 : i32, i32
  }
  func.func @transform_14(%arg0: i32) -> (i32, i32) {
    %c0_i32 = arith.constant 0 : i32
    %c0_i32_0 = arith.constant 0 : i32
    %c0_i32_1 = arith.constant 0 : i32
    return %c0_i32, %c0_i32_0 : i32, i32
  }
  func.func @transform_15(%arg0: i32) -> (i32, i32) {
    %c0_i32 = arith.constant 0 : i32
    %c0_i32_0 = arith.constant 0 : i32
    %c0_i32_1 = arith.constant 0 : i32
    return %c0_i32, %c0_i32_0 : i32, i32
  }
  func.func @transform_16(%arg0: i32) -> (i32, i32) {
    %c0_i32 = arith.constant 0 : i32
    %c0_i32_0 = arith.constant 0 : i32
    %c0_i32_1 = arith.constant 0 : i32
    return %c0_i32, %c0_i32_0 : i32, i32
  }
  func.func @transform_17(%arg0: i32) -> (i32, i32) {
    %c0_i32 = arith.constant 0 : i32
    %c0_i32_0 = arith.constant 0 : i32
    %c0_i32_1 = arith.constant 0 : i32
    return %c0_i32, %c0_i32_0 : i32, i32
  }
  func.func @transform_18(%arg0: i32) -> (i32, i32) {
    %c0_i32 = arith.constant 0 : i32
    %c0_i32_0 = arith.constant 0 : i32
    %c0_i32_1 = arith.constant 0 : i32
    return %c0_i32, %c0_i32_0 : i32, i32
  }
  func.func @transform_19(%arg0: i32) -> (i32, i32) {
    %c0_i32 = arith.constant 0 : i32
    %c0_i32_0 = arith.constant 0 : i32
    %c0_i32_1 = arith.constant 0 : i32
    return %c0_i32, %c0_i32_0 : i32, i32
  }
  func.func @transform_20(%arg0: i32) -> (i32, i32) {
    %c0_i32 = arith.constant 0 : i32
    %c0_i32_0 = arith.constant 0 : i32
    %c0_i32_1 = arith.constant 0 : i32
    return %c0_i32, %c0_i32_0 : i32, i32
  }
  func.func @transform_21(%arg0: i32) -> (i32, i32, i32) {
    %c0_i32 = arith.constant 0 : i32
    %c0_i32_0 = arith.constant 0 : i32
    %c0_i32_1 = arith.constant 0 : i32
    return %arg0, %c0_i32, %c0_i32_0 : i32, i32, i32
  }
}

</mosaic_0001>

<llo_original>
// kernel: tpu_custom_call.1
$region0: #{tpu_custom_call.1}
  #allocation0 [shape = 'u32[]', space=smem, size = 0x4, offset = 0x4, fixed_abs, tag = 'smem constant byte address 0x4 - core index']
  #allocation1 [shape = 'u32[72,128]{1,0:T(1,128)}', space=vmem, size = 0x9000, scoped, tag = 'internal scratch']
  %s0 = inlined_call_operand.vmem [shape: f32[2,16,128], index: 0, kind: input, shape index: {}]
  %s1 = inlined_call_operand.vmem [shape: f32[9,128], index: 1, kind: input, shape index: {}]
  %s2 = inlined_call_operand.vmem [shape: f32[128,1], index: 2, kind: input, shape index: {}]
  %s3 = inlined_call_operand.vmem [shape: f32[1,128], index: 3, kind: input, shape index: {}]
  %s4 = inlined_call_operand.vmem [shape: f32[1,128], index: 4, kind: input, shape index: {}]
  %s5 = inlined_call_operand.vmem [shape: f32[1,128], index: 5, kind: input, shape index: {}]
  %s6 = inlined_call_operand.vmem [shape: f32[128,256], index: 6, kind: input, shape index: {}]
  %s7 = inlined_call_operand.vmem [shape: f32[256,2], index: 7, kind: input, shape index: {}]
  %s8 = inlined_call_operand.vmem [shape: f32[2,256], index: 8, kind: input, shape index: {}]
  %s9 = inlined_call_operand.vmem [shape: f32[1,256], index: 9, kind: input, shape index: {}]
  %s10 = inlined_call_operand.vmem [shape: f32[1,256], index: 10, kind: input, shape index: {}]
  %s11 = inlined_call_operand.vmem [shape: f32[9,256], index: 11, kind: input, shape index: {}]
  %s12 = inlined_call_operand.vmem [shape: f32[256,2], index: 12, kind: input, shape index: {}]
  %s13 = inlined_call_operand.vmem [shape: f32[2,256], index: 13, kind: input, shape index: {}]
  %s14 = inlined_call_operand.vmem [shape: f32[1,256], index: 14, kind: input, shape index: {}]
  %s15 = inlined_call_operand.vmem [shape: f32[1,256], index: 15, kind: input, shape index: {}]
  %s16 = inlined_call_operand.vmem [shape: f32[256,128], index: 16, kind: input, shape index: {}]
  %s17 = inlined_call_operand.vmem [shape: f32[128,1], index: 17, kind: input, shape index: {}]
  %s18 = inlined_call_operand.vmem [shape: f32[1,128], index: 18, kind: input, shape index: {}]
  %s19 = inlined_call_operand.vmem [shape: f32[1,128], index: 19, kind: input, shape index: {}]
  %s20 = inlined_call_operand.vmem [shape: f32[1,128], index: 20, kind: input, shape index: {}]
  %s21 = inlined_call_operand.hbm [shape: f32[2,16,128], index: 21, kind: output, shape index: {}]
  %s22 = sld [smem:[#allocation0]]
  $region117: #{tpu_custom_call.1} parent=0
    _
  %s24 = ssub.s32 1, %s22
  %s25 = scalar_select 0, %s24, %s22
  $region1: #{tpu_custom_call.1} parent=0
    #allocation2 [shape = 'u8[16384]{0}', space=vmem, size = 0x4000, scoped, tag = 'output window, operand 0']
    #allocation3 [shape = 's32[2]{0}', space=sflag, size = 0x8, scoped, tag = 'scoped memory for tpu_custom_call.1']
    %26 = vsyncpa [#allocation3], 0
    %s27 = scalar_lea.sflag [#allocation3], 1
    %28 = vsyncpa %s27, 0
    loop: start=0, step=1, limit=4
    $region2: #{tpu_custom_call.1} parent=1 // loop_pre_header
      _
    $region3: #{tpu_custom_call.1} parent=1 // loop_header
      %s30 = sphi 0, %s34
      %p31 = scmp.ge.s32.totalorder %s30, 4
      %s40 = sphi 0, %s42
      %s43 = sphi 0, %s40
      %s44 = sphi 0, %s43
      %s60 = sphi 0, %s44
      %s64 = sphi 0, %s64
      %s66 = sphi 0, %s64
      %s67 = sphi 0, %s66
      %s81 = sphi 0, %s67
      %s85 = sphi 0, %s85
      %s87 = sphi 0, %s85
      %s88 = sphi 0, %s87
      %s102 = sphi 0, %s88
      %s106 = sphi 0, %s106
      %s108 = sphi 0, %s106
      %s109 = sphi 0, %s108
      %s123 = sphi 0, %s109
      %s127 = sphi 0, %s127
      %s129 = sphi 0, %s127
      %s130 = sphi 0, %s129
      %s144 = sphi 0, %s130
      %s148 = sphi 0, %s148
      %s150 = sphi 0, %s148
      %s151 = sphi 0, %s150
      %s165 = sphi 0, %s151
      %s169 = sphi 0, %s169
      %s171 = sphi 0, %s169
      %s172 = sphi 0, %s171
      %s186 = sphi 0, %s172
      %s190 = sphi 0, %s190
      %s192 = sphi 0, %s190
      %s193 = sphi 0, %s192
      %s207 = sphi 0, %s193
      %s211 = sphi 0, %s211
      %s213 = sphi 0, %s211
      %s214 = sphi 0, %s213
      %s228 = sphi 0, %s214
      %s232 = sphi 0, %s232
      %s234 = sphi 0, %s232
      %s235 = sphi 0, %s234
      %s249 = sphi 0, %s235
      %s253 = sphi 0, %s253
      %s255 = sphi 0, %s253
      %s256 = sphi 0, %s255
      %s270 = sphi 0, %s256
      %s274 = sphi 0, %s274
      %s276 = sphi 0, %s274
      %s277 = sphi 0, %s276
      %s291 = sphi 0, %s277
      %s295 = sphi 0, %s295
      %s297 = sphi 0, %s295
      %s298 = sphi 0, %s297
      %s312 = sphi 0, %s298
      %s316 = sphi 0, %s316
      %s318 = sphi 0, %s316
      %s319 = sphi 0, %s318
      %s333 = sphi 0, %s319
      %s337 = sphi 0, %s337
      %s339 = sphi 0, %s337
      %s340 = sphi 0, %s339
      %s354 = sphi 0, %s340
      %s358 = sphi 0, %s358
      %s360 = sphi 0, %s358
      %s361 = sphi 0, %s360
      %s375 = sphi 0, %s361
      %s379 = sphi 0, %s379
      %s381 = sphi 0, %s379
      %s382 = sphi 0, %s381
      %s396 = sphi 0, %s382
      %s400 = sphi 0, %s400
      %s402 = sphi 0, %s400
      %s403 = sphi 0, %s402
      %s417 = sphi 0, %s403
      %s421 = sphi 0, %s421
      %s423 = sphi 0, %s421
      %s424 = sphi 0, %s423
      %s438 = sphi 0, %s424
      %s442 = sphi 0, %s442
      %s444 = sphi 0, %s442
      %s445 = sphi 0, %s444
      %s459 = sphi 0, %s445
      %s463 = sphi 0, %s463
      %s465 = sphi 0, %s463
      %s466 = sphi 0, %s465
      %s480 = sphi 0, %s466
      %s486 = sphi 0, %s488
      %s489 = sphi 0, %s486
      %s490 = sphi 0, %s489
      %s506 = sphi 0, %s490
    $region4: #{tpu_custom_call.1} parent=1 // loop_header_branch
      %33 = sbr.rel (%p31) target = $region8
    $region5: #{tpu_custom_call.1} parent=1 // loop_body
      %s35 = ssub.s32 %s30, 1
      %s36 = ssub.s32 %s30, 2
      %s37 = sadd.s32 %s30, 1
      %s38 = ssub.s32 %s30, %s37
      %p39 = scmp.eq.s32.totalorder %s38, 0
      %s41 = sadd.s32 %s40, 1
      %s42 = scalar_select %p39, %s40, %s41
      %p45 = pneg %p39
      %p46 = scmp.eq.s32.totalorder %s30, 1
      %p47 = por %p45, %p46
      %p48 = scmp.ne.s32.totalorder %s40, %s43
      %p49 = scmp.eq.s32.totalorder %s30, 0
      %p50 = por %p48, %p49
      %p51 = scmp.ne.s32.totalorder %s40, %s43
      %p52 = scmp.eq.s32.totalorder %s35, 1
      %p53 = por %p51, %p52
      %p54 = scmp.ne.s32.totalorder %s43, %s44
      %p55 = scmp.eq.s32.totalorder %s35, 0
      %p56 = por %p54, %p55
      %p57 = scmp.ne.s32.totalorder %s43, %s44
      %p58 = scmp.eq.s32.totalorder %s36, 1
      %p59 = por %p57, %p58
      %p61 = scmp.ne.s32.totalorder %s44, %s60
      %p62 = scmp.eq.s32.totalorder %s36, 0
      %p63 = por %p61, %p62
      %s65 = sadd.s32 %s64, 1
      %p68 = scmp.eq.s32.totalorder %s30, 1
      %p69 = scmp.ne.s32.totalorder %s64, %s66
      %p70 = scmp.eq.s32.totalorder %s30, 0
      %p71 = por %p69, %p70
      %p72 = scmp.ne.s32.totalorder %s64, %s66
      %p73 = scmp.eq.s32.totalorder %s35, 1
      %p74 = por %p72, %p73
      %p75 = scmp.ne.s32.totalorder %s66, %s67
      %p76 = scmp.eq.s32.totalorder %s35, 0
      %p77 = por %p75, %p76
      %p78 = scmp.ne.s32.totalorder %s66, %s67
      %p79 = scmp.eq.s32.totalorder %s36, 1
      %p80 = por %p78, %p79
      %p82 = scmp.ne.s32.totalorder %s67, %s81
      %p83 = scmp.eq.s32.totalorder %s36, 0
      %p84 = por %p82, %p83
      %s86 = sadd.s32 %s85, 1
      %p89 = scmp.eq.s32.totalorder %s30, 1
      %p90 = scmp.ne.s32.totalorder %s85, %s87
      %p91 = scmp.eq.s32.totalorder %s30, 0
      %p92 = por %p90, %p91
      %p93 = scmp.ne.s32.totalorder %s85, %s87
      %p94 = scmp.eq.s32.totalorder %s35, 1
      %p95 = por %p93, %p94
      %p96 = scmp.ne.s32.totalorder %s87, %s88
      %p97 = scmp.eq.s32.totalorder %s35, 0
      %p98 = por %p96, %p97
      %p99 = scmp.ne.s32.totalorder %s87, %s88
      %p100 = scmp.eq.s32.totalorder %s36, 1
      %p101 = por %p99, %p100
      %p103 = scmp.ne.s32.totalorder %s88, %s102
      %p104 = scmp.eq.s32.totalorder %s36, 0
      %p105 = por %p103, %p104
      %s107 = sadd.s32 %s106, 1
      %p110 = scmp.eq.s32.totalorder %s30, 1
      %p111 = scmp.ne.s32.totalorder %s106, %s108
      %p112 = scmp.eq.s32.totalorder %s30, 0
      %p113 = por %p111, %p112
      %p114 = scmp.ne.s32.totalorder %s106, %s108
      %p115 = scmp.eq.s32.totalorder %s35, 1
      %p116 = por %p114, %p115
      %p117 = scmp.ne.s32.totalorder %s108, %s109
      %p118 = scmp.eq.s32.totalorder %s35, 0
      %p119 = por %p117, %p118
      %p120 = scmp.ne.s32.totalorder %s108, %s109
      %p121 = scmp.eq.s32.totalorder %s36, 1
      %p122 = por %p120, %p121
      %p124 = scmp.ne.s32.totalorder %s109, %s123
      %p125 = scmp.eq.s32.totalorder %s36, 0
      %p126 = por %p124, %p125
      %s128 = sadd.s32 %s127, 1
      %p131 = scmp.eq.s32.totalorder %s30, 1
      %p132 = scmp.ne.s32.totalorder %s127, %s129
      %p133 = scmp.eq.s32.totalorder %s30, 0
      %p134 = por %p132, %p133
      %p135 = scmp.ne.s32.totalorder %s127, %s129
      %p136 = scmp.eq.s32.totalorder %s35, 1
      %p137 = por %p135, %p136
      %p138 = scmp.ne.s32.totalorder %s129, %s130
      %p139 = scmp.eq.s32.totalorder %s35, 0
      %p140 = por %p138, %p139
      %p141 = scmp.ne.s32.totalorder %s129, %s130
      %p142 = scmp.eq.s32.totalorder %s36, 1
      %p143 = por %p141, %p142
      %p145 = scmp.ne.s32.totalorder %s130, %s144
      %p146 = scmp.eq.s32.totalorder %s36, 0
      %p147 = por %p145, %p146
      %s149 = sadd.s32 %s148, 1
      %p152 = scmp.eq.s32.totalorder %s30, 1
      %p153 = scmp.ne.s32.totalorder %s148, %s150
      %p154 = scmp.eq.s32.totalorder %s30, 0
      %p155 = por %p153, %p154
      %p156 = scmp.ne.s32.totalorder %s148, %s150
      %p157 = scmp.eq.s32.totalorder %s35, 1
      %p158 = por %p156, %p157
      %p159 = scmp.ne.s32.totalorder %s150, %s151
      %p160 = scmp.eq.s32.totalorder %s35, 0
      %p161 = por %p159, %p160
      %p162 = scmp.ne.s32.totalorder %s150, %s151
      %p163 = scmp.eq.s32.totalorder %s36, 1
      %p164 = por %p162, %p163
      %p166 = scmp.ne.s32.totalorder %s151, %s165
      %p167 = scmp.eq.s32.totalorder %s36, 0
      %p168 = por %p166, %p167
      %s170 = sadd.s32 %s169, 1
      %p173 = scmp.eq.s32.totalorder %s30, 1
      %p174 = scmp.ne.s32.totalorder %s169, %s171
      %p175 = scmp.eq.s32.totalorder %s30, 0
      %p176 = por %p174, %p175
      %p177 = scmp.ne.s32.totalorder %s169, %s171
      %p178 = scmp.eq.s32.totalorder %s35, 1
      %p179 = por %p177, %p178
      %p180 = scmp.ne.s32.totalorder %s171, %s172
      %p181 = scmp.eq.s32.totalorder %s35, 0
      %p182 = por %p180, %p181
      %p183 = scmp.ne.s32.totalorder %s171, %s172
      %p184 = scmp.eq.s32.totalorder %s36, 1
      %p185 = por %p183, %p184
      %p187 = scmp.ne.s32.totalorder %s172, %s186
      %p188 = scmp.eq.s32.totalorder %s36, 0
      %p189 = por %p187, %p188
      %s191 = sadd.s32 %s190, 1
      %p194 = scmp.eq.s32.totalorder %s30, 1
      %p195 = scmp.ne.s32.totalorder %s190, %s192
      %p196 = scmp.eq.s32.totalorder %s30, 0
      %p197 = por %p195, %p196
      %p198 = scmp.ne.s32.totalorder %s190, %s192
      %p199 = scmp.eq.s32.totalorder %s35, 1
      %p200 = por %p198, %p199
      %p201 = scmp.ne.s32.totalorder %s192, %s193
      %p202 = scmp.eq.s32.totalorder %s35, 0
      %p203 = por %p201, %p202
      %p204 = scmp.ne.s32.totalorder %s192, %s193
      %p205 = scmp.eq.s32.totalorder %s36, 1
      %p206 = por %p204, %p205
      %p208 = scmp.ne.s32.totalorder %s193, %s207
      %p209 = scmp.eq.s32.totalorder %s36, 0
      %p210 = por %p208, %p209
      %s212 = sadd.s32 %s211, 1
      %p215 = scmp.eq.s32.totalorder %s30, 1
      %p216 = scmp.ne.s32.totalorder %s211, %s213
      %p217 = scmp.eq.s32.totalorder %s30, 0
      %p218 = por %p216, %p217
      %p219 = scmp.ne.s32.totalorder %s211, %s213
      %p220 = scmp.eq.s32.totalorder %s35, 1
      %p221 = por %p219, %p220
      %p222 = scmp.ne.s32.totalorder %s213, %s214
      %p223 = scmp.eq.s32.totalorder %s35, 0
      %p224 = por %p222, %p223
      %p225 = scmp.ne.s32.totalorder %s213, %s214
      %p226 = scmp.eq.s32.totalorder %s36, 1
      %p227 = por %p225, %p226
      %p229 = scmp.ne.s32.totalorder %s214, %s228
      %p230 = scmp.eq.s32.totalorder %s36, 0
      %p231 = por %p229, %p230
      %s233 = sadd.s32 %s232, 1
      %p236 = scmp.eq.s32.totalorder %s30, 1
      %p237 = scmp.ne.s32.totalorder %s232, %s234
      %p238 = scmp.eq.s32.totalorder %s30, 0
      %p239 = por %p237, %p238
      %p240 = scmp.ne.s32.totalorder %s232, %s234
      %p241 = scmp.eq.s32.totalorder %s35, 1
      %p242 = por %p240, %p241
      %p243 = scmp.ne.s32.totalorder %s234, %s235
      %p244 = scmp.eq.s32.totalorder %s35, 0
      %p245 = por %p243, %p244
      %p246 = scmp.ne.s32.totalorder %s234, %s235
      %p247 = scmp.eq.s32.totalorder %s36, 1
      %p248 = por %p246, %p247
      %p250 = scmp.ne.s32.totalorder %s235, %s249
      %p251 = scmp.eq.s32.totalorder %s36, 0
      %p252 = por %p250, %p251
      %s254 = sadd.s32 %s253, 1
      %p257 = scmp.eq.s32.totalorder %s30, 1
      %p258 = scmp.ne.s32.totalorder %s253, %s255
      %p259 = scmp.eq.s32.totalorder %s30, 0
      %p260 = por %p258, %p259
      %p261 = scmp.ne.s32.totalorder %s253, %s255
      %p262 = scmp.eq.s32.totalorder %s35, 1
      %p263 = por %p261, %p262
      %p264 = scmp.ne.s32.totalorder %s255, %s256
      %p265 = scmp.eq.s32.totalorder %s35, 0
      %p266 = por %p264, %p265
      %p267 = scmp.ne.s32.totalorder %s255, %s256
      %p268 = scmp.eq.s32.totalorder %s36, 1
      %p269 = por %p267, %p268
      %p271 = scmp.ne.s32.totalorder %s256, %s270
      %p272 = scmp.eq.s32.totalorder %s36, 0
      %p273 = por %p271, %p272
      %s275 = sadd.s32 %s274, 1
      %p278 = scmp.eq.s32.totalorder %s30, 1
      %p279 = scmp.ne.s32.totalorder %s274, %s276
      %p280 = scmp.eq.s32.totalorder %s30, 0
      %p281 = por %p279, %p280
      %p282 = scmp.ne.s32.totalorder %s274, %s276
      %p283 = scmp.eq.s32.totalorder %s35, 1
      %p284 = por %p282, %p283
      %p285 = scmp.ne.s32.totalorder %s276, %s277
      %p286 = scmp.eq.s32.totalorder %s35, 0
      %p287 = por %p285, %p286
      %p288 = scmp.ne.s32.totalorder %s276, %s277
      %p289 = scmp.eq.s32.totalorder %s36, 1
      %p290 = por %p288, %p289
      %p292 = scmp.ne.s32.totalorder %s277, %s291
      %p293 = scmp.eq.s32.totalorder %s36, 0
      %p294 = por %p292, %p293
      %s296 = sadd.s32 %s295, 1
      %p299 = scmp.eq.s32.totalorder %s30, 1
      %p300 = scmp.ne.s32.totalorder %s295, %s297
      %p301 = scmp.eq.s32.totalorder %s30, 0
      %p302 = por %p300, %p301
      %p303 = scmp.ne.s32.totalorder %s295, %s297
      %p304 = scmp.eq.s32.totalorder %s35, 1
      %p305 = por %p303, %p304
      %p306 = scmp.ne.s32.totalorder %s297, %s298
      %p307 = scmp.eq.s32.totalorder %s35, 0
      %p308 = por %p306, %p307
      %p309 = scmp.ne.s32.totalorder %s297, %s298
      %p310 = scmp.eq.s32.totalorder %s36, 1
      %p311 = por %p309, %p310
      %p313 = scmp.ne.s32.totalorder %s298, %s312
      %p314 = scmp.eq.s32.totalorder %s36, 0
      %p315 = por %p313, %p314
      %s317 = sadd.s32 %s316, 1
      %p320 = scmp.eq.s32.totalorder %s30, 1
      %p321 = scmp.ne.s32.totalorder %s316, %s318
      %p322 = scmp.eq.s32.totalorder %s30, 0
      %p323 = por %p321, %p322
      %p324 = scmp.ne.s32.totalorder %s316, %s318
      %p325 = scmp.eq.s32.totalorder %s35, 1
      %p326 = por %p324, %p325
      %p327 = scmp.ne.s32.totalorder %s318, %s319
      %p328 = scmp.eq.s32.totalorder %s35, 0
      %p329 = por %p327, %p328
      %p330 = scmp.ne.s32.totalorder %s318, %s319
      %p331 = scmp.eq.s32.totalorder %s36, 1
      %p332 = por %p330, %p331
      %p334 = scmp.ne.s32.totalorder %s319, %s333
      %p335 = scmp.eq.s32.totalorder %s36, 0
      %p336 = por %p334, %p335
      %s338 = sadd.s32 %s337, 1
      %p341 = scmp.eq.s32.totalorder %s30, 1
      %p342 = scmp.ne.s32.totalorder %s337, %s339
      %p343 = scmp.eq.s32.totalorder %s30, 0
      %p344 = por %p342, %p343
      %p345 = scmp.ne.s32.totalorder %s337, %s339
      %p346 = scmp.eq.s32.totalorder %s35, 1
      %p347 = por %p345, %p346
      %p348 = scmp.ne.s32.totalorder %s339, %s340
      %p349 = scmp.eq.s32.totalorder %s35, 0
      %p350 = por %p348, %p349
      %p351 = scmp.ne.s32.totalorder %s339, %s340
      %p352 = scmp.eq.s32.totalorder %s36, 1
      %p353 = por %p351, %p352
      %p355 = scmp.ne.s32.totalorder %s340, %s354
      %p356 = scmp.eq.s32.totalorder %s36, 0
      %p357 = por %p355, %p356
      %s359 = sadd.s32 %s358, 1
      %p362 = scmp.eq.s32.totalorder %s30, 1
      %p363 = scmp.ne.s32.totalorder %s358, %s360
      %p364 = scmp.eq.s32.totalorder %s30, 0
      %p365 = por %p363, %p364
      %p366 = scmp.ne.s32.totalorder %s358, %s360
      %p367 = scmp.eq.s32.totalorder %s35, 1
      %p368 = por %p366, %p367
      %p369 = scmp.ne.s32.totalorder %s360, %s361
      %p370 = scmp.eq.s32.totalorder %s35, 0
      %p371 = por %p369, %p370
      %p372 = scmp.ne.s32.totalorder %s360, %s361
      %p373 = scmp.eq.s32.totalorder %s36, 1
      %p374 = por %p372, %p373
      %p376 = scmp.ne.s32.totalorder %s361, %s375
      %p377 = scmp.eq.s32.totalorder %s36, 0
      %p378 = por %p376, %p377
      %s380 = sadd.s32 %s379, 1
      %p383 = scmp.eq.s32.totalorder %s30, 1
      %p384 = scmp.ne.s32.totalorder %s379, %s381
      %p385 = scmp.eq.s32.totalorder %s30, 0
      %p386 = por %p384, %p385
      %p387 = scmp.ne.s32.totalorder %s379, %s381
      %p388 = scmp.eq.s32.totalorder %s35, 1
      %p389 = por %p387, %p388
      %p390 = scmp.ne.s32.totalorder %s381, %s382
      %p391 = scmp.eq.s32.totalorder %s35, 0
      %p392 = por %p390, %p391
      %p393 = scmp.ne.s32.totalorder %s381, %s382
      %p394 = scmp.eq.s32.totalorder %s36, 1
      %p395 = por %p393, %p394
      %p397 = scmp.ne.s32.totalorder %s382, %s396
      %p398 = scmp.eq.s32.totalorder %s36, 0
      %p399 = por %p397, %p398
      %s401 = sadd.s32 %s400, 1
      %p404 = scmp.eq.s32.totalorder %s30, 1
      %p405 = scmp.ne.s32.totalorder %s400, %s402
      %p406 = scmp.eq.s32.totalorder %s30, 0
      %p407 = por %p405, %p406
      %p408 = scmp.ne.s32.totalorder %s400, %s402
      %p409 = scmp.eq.s32.totalorder %s35, 1
      %p410 = por %p408, %p409
      %p411 = scmp.ne.s32.totalorder %s402, %s403
      %p412 = scmp.eq.s32.totalorder %s35, 0
      %p413 = por %p411, %p412
      %p414 = scmp.ne.s32.totalorder %s402, %s403
      %p415 = scmp.eq.s32.totalorder %s36, 1
      %p416 = por %p414, %p415
      %p418 = scmp.ne.s32.totalorder %s403, %s417
      %p419 = scmp.eq.s32.totalorder %s36, 0
      %p420 = por %p418, %p419
      %s422 = sadd.s32 %s421, 1
      %p425 = scmp.eq.s32.totalorder %s30, 1
      %p426 = scmp.ne.s32.totalorder %s421, %s423
      %p427 = scmp.eq.s32.totalorder %s30, 0
      %p428 = por %p426, %p427
      %p429 = scmp.ne.s32.totalorder %s421, %s423
      %p430 = scmp.eq.s32.totalorder %s35, 1
      %p431 = por %p429, %p430
      %p432 = scmp.ne.s32.totalorder %s423, %s424
      %p433 = scmp.eq.s32.totalorder %s35, 0
      %p434 = por %p432, %p433
      %p435 = scmp.ne.s32.totalorder %s423, %s424
      %p436 = scmp.eq.s32.totalorder %s36, 1
      %p437 = por %p435, %p436
      %p439 = scmp.ne.s32.totalorder %s424, %s438
      %p440 = scmp.eq.s32.totalorder %s36, 0
      %p441 = por %p439, %p440
      %s443 = sadd.s32 %s442, 1
      %p446 = scmp.eq.s32.totalorder %s30, 1
      %p447 = scmp.ne.s32.totalorder %s442, %s444
      %p448 = scmp.eq.s32.totalorder %s30, 0
      %p449 = por %p447, %p448
      %p450 = scmp.ne.s32.totalorder %s442, %s444
      %p451 = scmp.eq.s32.totalorder %s35, 1
      %p452 = por %p450, %p451
      %p453 = scmp.ne.s32.totalorder %s444, %s445
      %p454 = scmp.eq.s32.totalorder %s35, 0
      %p455 = por %p453, %p454
      %p456 = scmp.ne.s32.totalorder %s444, %s445
      %p457 = scmp.eq.s32.totalorder %s36, 1
      %p458 = por %p456, %p457
      %p460 = scmp.ne.s32.totalorder %s445, %s459
      %p461 = scmp.eq.s32.totalorder %s36, 0
      %p462 = por %p460, %p461
      %s464 = sadd.s32 %s463, 1
      %p467 = scmp.eq.s32.totalorder %s30, 1
      %p468 = scmp.ne.s32.totalorder %s463, %s465
      %p469 = scmp.eq.s32.totalorder %s30, 0
      %p470 = por %p468, %p469
      %p471 = scmp.ne.s32.totalorder %s463, %s465
      %p472 = scmp.eq.s32.totalorder %s35, 1
      %p473 = por %p471, %p472
      %p474 = scmp.ne.s32.totalorder %s465, %s466
      %p475 = scmp.eq.s32.totalorder %s35, 0
      %p476 = por %p474, %p475
      %p477 = scmp.ne.s32.totalorder %s465, %s466
      %p478 = scmp.eq.s32.totalorder %s36, 1
      %p479 = por %p477, %p478
      %p481 = scmp.ne.s32.totalorder %s466, %s480
      %p482 = scmp.eq.s32.totalorder %s36, 0
      %p483 = por %p481, %p482
      %s484 = ssub.s32 %s30, %s37
      %p485 = scmp.eq.s32.totalorder %s484, 0
      %s487 = sadd.s32 %s486, 1
      %s488 = scalar_select %p485, %s486, %s487
      %p491 = pneg %p485
      %p492 = scmp.eq.s32.totalorder %s30, 1
      %p493 = por %p491, %p492
      %p494 = scmp.ne.s32.totalorder %s486, %s489
      %p495 = scmp.eq.s32.totalorder %s30, 0
      %p496 = por %p494, %p495
      %p497 = scmp.ne.s32.totalorder %s486, %s489
      %p498 = scmp.eq.s32.totalorder %s35, 1
      %p499 = por %p497, %p498
      %p500 = scmp.ne.s32.totalorder %s489, %s490
      %p501 = scmp.eq.s32.totalorder %s35, 0
      %p502 = por %p500, %p501
      %p503 = scmp.ne.s32.totalorder %s489, %s490
      %p504 = scmp.eq.s32.totalorder %s36, 1
      %p505 = por %p503, %p504
      %p507 = scmp.ne.s32.totalorder %s490, %s506
      %p508 = scmp.eq.s32.totalorder %s36, 0
      %p509 = por %p507, %p508
      %p510 = scmp.le.s32.totalorder 1, %s30
      %p511 = scmp.lt.s32.totalorder %s30, 3
      %p512 = pnand %p510, %p511
      %p513 = pneg %p512
      // Predicated region
      $region9: #{tpu_custom_call.1} parent=5 // pred_check
        _
      $region10: #{tpu_custom_call.1} parent=5 // pred_check_branch
        %515 = sbr.rel (%p512) target = $region12
      $region11: #{tpu_custom_call.1} parent=5 // pred_region
        %s516 = ssub.s32 %s30, 1
        // Predicated region
        $region13: #{tpu_custom_call.1} parent=11 // pred_check
          %p517 = pneg %p77
        $region14: #{tpu_custom_call.1} parent=11 // pred_check_branch
          %519 = sbr.rel (%p517) target = $region16
        $region15: #{tpu_custom_call.1} parent=11 // pred_region
          _
        $region16: #{tpu_custom_call.1} parent=11 // pred_fallthru
          _
        // Predicated region
        $region17: #{tpu_custom_call.1} parent=11 // pred_check
          %p520 = pneg %p98
        $region18: #{tpu_custom_call.1} parent=11 // pred_check_branch
          %522 = sbr.rel (%p520) target = $region20
        $region19: #{tpu_custom_call.1} parent=11 // pred_region
          _
        $region20: #{tpu_custom_call.1} parent=11 // pred_fallthru
          _
        // Predicated region
        $region21: #{tpu_custom_call.1} parent=11 // pred_check
          %p523 = pneg %p119
        $region22: #{tpu_custom_call.1} parent=11 // pred_check_branch
          %525 = sbr.rel (%p523) target = $region24
        $region23: #{tpu_custom_call.1} parent=11 // pred_region
          _
        $region24: #{tpu_custom_call.1} parent=11 // pred_fallthru
          _
        // Predicated region
        $region25: #{tpu_custom_call.1} parent=11 // pred_check
          %p526 = pneg %p140
        $region26: #{tpu_custom_call.1} parent=11 // pred_check_branch
          %528 = sbr.rel (%p526) target = $region28
        $region27: #{tpu_custom_call.1} parent=11 // pred_region
          _
        $region28: #{tpu_custom_call.1} parent=11 // pred_fallthru
          _
        // Predicated region
        $region29: #{tpu_custom_call.1} parent=11 // pred_check
          %p529 = pneg %p161
        $region30: #{tpu_custom_call.1} parent=11 // pred_check_branch
          %531 = sbr.rel (%p529) target = $region32
        $region31: #{tpu_custom_call.1} parent=11 // pred_region
          _
        $region32: #{tpu_custom_call.1} parent=11 // pred_fallthru
          _
        // Predicated region
        $region33: #{tpu_custom_call.1} parent=11 // pred_check
          %p532 = pneg %p182
        $region34: #{tpu_custom_call.1} parent=11 // pred_check_branch
          %534 = sbr.rel (%p532) target = $region36
        $region35: #{tpu_custom_call.1} parent=11 // pred_region
          _
        $region36: #{tpu_custom_call.1} parent=11 // pred_fallthru
          _
        // Predicated region
        $region37: #{tpu_custom_call.1} parent=11 // pred_check
          %p535 = pneg %p203
        $region38: #{tpu_custom_call.1} parent=11 // pred_check_branch
          %537 = sbr.rel (%p535) target = $region40
        $region39: #{tpu_custom_call.1} parent=11 // pred_region
          _
        $region40: #{tpu_custom_call.1} parent=11 // pred_fallthru
          _
        // Predicated region
        $region41: #{tpu_custom_call.1} parent=11 // pred_check
          %p538 = pneg %p224
        $region42: #{tpu_custom_call.1} parent=11 // pred_check_branch
          %540 = sbr.rel (%p538) target = $region44
        $region43: #{tpu_custom_call.1} parent=11 // pred_region
          _
        $region44: #{tpu_custom_call.1} parent=11 // pred_fallthru
          _
        // Predicated region
        $region45: #{tpu_custom_call.1} parent=11 // pred_check
          %p541 = pneg %p245
        $region46: #{tpu_custom_call.1} parent=11 // pred_check_branch
          %543 = sbr.rel (%p541) target = $region48
        $region47: #{tpu_custom_call.1} parent=11 // pred_region
          _
        $region48: #{tpu_custom_call.1} parent=11 // pred_fallthru
          _
        // Predicated region
        $region49: #{tpu_custom_call.1} parent=11 // pred_check
          %p544 = pneg %p266
        $region50: #{tpu_custom_call.1} parent=11 // pred_check_branch
          %546 = sbr.rel (%p544) target = $region52
        $region51: #{tpu_custom_call.1} parent=11 // pred_region
          _
        $region52: #{tpu_custom_call.1} parent=11 // pred_fallthru
          _
        // Predicated region
        $region53: #{tpu_custom_call.1} parent=11 // pred_check
          %p547 = pneg %p287
        $region54: #{tpu_custom_call.1} parent=11 // pred_check_branch
          %549 = sbr.rel (%p547) target = $region56
        $region55: #{tpu_custom_call.1} parent=11 // pred_region
          _
        $region56: #{tpu_custom_call.1} parent=11 // pred_fallthru
          _
        // Predicated region
        $region57: #{tpu_custom_call.1} parent=11 // pred_check
          %p550 = pneg %p308
        $region58: #{tpu_custom_call.1} parent=11 // pred_check_branch
          %552 = sbr.rel (%p550) target = $region60
        $region59: #{tpu_custom_call.1} parent=11 // pred_region
          _
        $region60: #{tpu_custom_call.1} parent=11 // pred_fallthru
          _
        // Predicated region
        $region61: #{tpu_custom_call.1} parent=11 // pred_check
          %p553 = pneg %p329
        $region62: #{tpu_custom_call.1} parent=11 // pred_check_branch
          %555 = sbr.rel (%p553) target = $region64
        $region63: #{tpu_custom_call.1} parent=11 // pred_region
          _
        $region64: #{tpu_custom_call.1} parent=11 // pred_fallthru
          _
        // Predicated region
        $region65: #{tpu_custom_call.1} parent=11 // pred_check
          %p556 = pneg %p350
        $region66: #{tpu_custom_call.1} parent=11 // pred_check_branch
          %558 = sbr.rel (%p556) target = $region68
        $region67: #{tpu_custom_call.1} parent=11 // pred_region
          _
        $region68: #{tpu_custom_call.1} parent=11 // pred_fallthru
          _
        // Predicated region
        $region69: #{tpu_custom_call.1} parent=11 // pred_check
          %p559 = pneg %p371
        $region70: #{tpu_custom_call.1} parent=11 // pred_check_branch
          %561 = sbr.rel (%p559) target = $region72
        $region71: #{tpu_custom_call.1} parent=11 // pred_region
          _
        $region72: #{tpu_custom_call.1} parent=11 // pred_fallthru
          _
        // Predicated region
        $region73: #{tpu_custom_call.1} parent=11 // pred_check
          %p562 = pneg %p392
        $region74: #{tpu_custom_call.1} parent=11 // pred_check_branch
          %564 = sbr.rel (%p562) target = $region76
        $region75: #{tpu_custom_call.1} parent=11 // pred_region
          _
        $region76: #{tpu_custom_call.1} parent=11 // pred_fallthru
          _
        // Predicated region
        $region77: #{tpu_custom_call.1} parent=11 // pred_check
          %p565 = pneg %p413
        $region78: #{tpu_custom_call.1} parent=11 // pred_check_branch
          %567 = sbr.rel (%p565) target = $region80
        $region79: #{tpu_custom_call.1} parent=11 // pred_region
          _
        $region80: #{tpu_custom_call.1} parent=11 // pred_fallthru
          _
        // Predicated region
        $region81: #{tpu_custom_call.1} parent=11 // pred_check
          %p568 = pneg %p434
        $region82: #{tpu_custom_call.1} parent=11 // pred_check_branch
          %570 = sbr.rel (%p568) target = $region84
        $region83: #{tpu_custom_call.1} parent=11 // pred_region
          _
        $region84: #{tpu_custom_call.1} parent=11 // pred_fallthru
          _
        // Predicated region
        $region85: #{tpu_custom_call.1} parent=11 // pred_check
          %p571 = pneg %p455
        $region86: #{tpu_custom_call.1} parent=11 // pred_check_branch
          %573 = sbr.rel (%p571) target = $region88
        $region87: #{tpu_custom_call.1} parent=11 // pred_region
          _
        $region88: #{tpu_custom_call.1} parent=11 // pred_fallthru
          _
        // Predicated region
        $region89: #{tpu_custom_call.1} parent=11 // pred_check
          %p574 = pneg %p476
        $region90: #{tpu_custom_call.1} parent=11 // pred_check_branch
          %576 = sbr.rel (%p574) target = $region92
        $region91: #{tpu_custom_call.1} parent=11 // pred_region
          _
        $region92: #{tpu_custom_call.1} parent=11 // pred_fallthru
          _
      $region12: #{tpu_custom_call.1} parent=5 // pred_fallthru
        _
      %p577 = scmp.lt.s32.totalorder %s30, 2
      // Predicated region
      $region93: #{tpu_custom_call.1} parent=5 // pred_check
        %p578 = pneg %p577
      $region94: #{tpu_custom_call.1} parent=5 // pred_check_branch
        %580 = sbr.rel (%p578) target = $region96
      $region95: #{tpu_custom_call.1} parent=5 // pred_region
        // Predicated region
        $region97: #{tpu_custom_call.1} parent=95 // pred_check
          %p581 = pneg %p50
        $region98: #{tpu_custom_call.1} parent=95 // pred_check_branch
          %583 = sbr.rel (%p581) target = $region100
        $region99: #{tpu_custom_call.1} parent=95 // pred_region
          %p584 = scmp.lt.s32.totalorder %s30, 1
          %s585 = scalar_select %p584, %s30, 1
          %s586 = smul.addr %s585, 2
          %s587 = smul.addr %s586, 8
          %s588 = scalar_lea.vmem %s0, %s587
        $region100: #{tpu_custom_call.1} parent=95 // pred_fallthru
          _
      $region96: #{tpu_custom_call.1} parent=5 // pred_fallthru
        _
      %p589 = scmp.le.s32.totalorder 1, %s30
      %p590 = scmp.lt.s32.totalorder %s30, 3
      %p591 = pnand %p589, %p590
      %p592 = pneg %p591
      // Predicated region
      $region101: #{tpu_custom_call.1} parent=5 // pred_check
        _
      $region102: #{tpu_custom_call.1} parent=5 // pred_check_branch
        %594 = sbr.rel (%p591) target = $region104
      $region103: #{tpu_custom_call.1} parent=5 // pred_region
        %s595 = ssub.s32 %s30, 1
        %p596 = scmp.lt.s32.totalorder %s35, 1
        %s597 = scalar_select %p596, %s35, 1
        %s598 = smul.addr %s597, 2
        %s599 = smul.addr %s598, 8
        %s600 = scalar_lea.vmem %s0, %s599
        %p601 = pneg %p56
        %p602 = pneg %p53
        %p603 = pneg %p77
        %p604 = pneg %p74
        %p605 = pneg %p98
        %p606 = pneg %p95
        %p607 = pneg %p119
        %p608 = pneg %p116
        %p609 = pneg %p140
        %p610 = pneg %p137
        %p611 = pneg %p161
        %p612 = pneg %p158
        %p613 = pneg %p182
        %p614 = pneg %p179
        %p615 = pneg %p203
        %p616 = pneg %p200
        %p617 = pneg %p224
        %p618 = pneg %p221
        %p619 = pneg %p245
        %p620 = pneg %p242
        %p621 = pneg %p266
        %p622 = pneg %p263
        %p623 = pneg %p287
        %p624 = pneg %p284
        %p625 = pneg %p308
        %p626 = pneg %p305
        %p627 = pneg %p329
        %p628 = pneg %p326
        %p629 = pneg %p350
        %p630 = pneg %p347
        %p631 = pneg %p371
        %p632 = pneg %p368
        %p633 = pneg %p392
        %p634 = pneg %p389
        %p635 = pneg %p413
        %p636 = pneg %p410
        %p637 = pneg %p434
        %p638 = pneg %p431
        %p639 = pneg %p455
        %p640 = pneg %p452
        %p641 = pneg %p476
        %p642 = pneg %p473
        %p643 = pneg %p502
        %p644 = pneg %p499
        %s645 = sand.u32 %s489, 1
        %s646 = scalar_lea.sflag [#allocation3], %s645
        %s647 = sand.u32 %s489, 1
        %s648 = smul.addr %s647, 16
        %s649 = scalar_lea.vmem [#allocation2], %s648
        %p650 = scmp.lt.s32.totalorder %s35, 1
        %s651 = scalar_select %p650, %s35, 1
        %s652 = smul.addr %s651, 2
        %s653 = smul.addr %s652, 8
        %s654 = scalar_lea.vmem %s0, %s653
        %v655 = vld [vmem:[%s654] sm:$0xff]
        %v656 = vld [vmem:[%s654 + $0x8] sm:$0xff]
        %vm659 = vcmask 1040384
        %v660 = vrot.slane %v655, 7
        %v661 = vrot.slane %v656, 7
        %v662 = vsel %vm659, %v660, %v661
        %v665 = vsel %vm659, 0.0, %v660
        %v666 = vsel %vm659, %v661, 0.0
        %669 = vrot.lane.b32.xlu0 %v665, 8
        %v670 = vpop.permute.xlu0 %669
        %671 = vrot.lane.b32.xlu0 %v662, 8
        %v672 = vpop.permute.xlu0 %671
        %673 = vrot.lane.b32.xlu0 %v666, 8
        %v674 = vpop.permute.xlu0 %673
        %vm678 = vcmask 64512
        %v679 = vsel %vm678, 0.0, %v670
        %v680 = vsel %vm678, 0.0, %v672
        %v681 = vsel %vm678, 0.0, %v674
        %v682 = vsel %vm678, %v670, 0.0
        %v683 = vsel %vm678, %v672, 0.0
        %v684 = vsel %vm678, %v674, 0.0
        %v685 = vld [vmem:[%s1] sm:$0xff]
        %v686 = vld [vmem:[%s1 + $0x8] sm:$0x1]
        %v687 = vperm.slane %v685, 0
        %v688 = vmul.f32 %v679, %v687
        %v689 = vmul.f32 %v680, %v687
        %v690 = vperm.slane %v685, 1
        %692 = vrot.lane.b32.xlu0 %v690, 8
        %v693 = vpop.permute.xlu0 %692
        %v695 = vmul.f32 %v679, %v693
        %v696 = vmul.f32 %v682, %v693
        %v697 = vmul.f32 %v680, %v693
        %v698 = vmul.f32 %v683, %v693
        %v699 = vperm.slane %v685, 2
        %701 = vrot.lane.b32.xlu0 %v699, 16
        %v702 = vpop.permute.xlu0 %701
        %v704 = vmul.f32 %v679, %v702
        %v705 = vmul.f32 %v682, %v702
        %v706 = vmul.f32 %v680, %v702
        %v707 = vmul.f32 %v683, %v702
        %v708 = vperm.slane %v685, 3
        %v709 = vmul.f32 %v679, %v708
        %v710 = vmul.f32 %v680, %v708
        %v711 = vmul.f32 %v681, %v708
        %v712 = vperm.slane %v685, 4
        %714 = vrot.lane.b32.xlu0 %v712, 8
        %v715 = vpop.permute.xlu0 %714
        %v717 = vmul.f32 %v679, %v715
        %v718 = vmul.f32 %v682, %v715
        %v719 = vmul.f32 %v680, %v715
        %v720 = vmul.f32 %v683, %v715
        %v721 = vmul.f32 %v681, %v715
        %v722 = vmul.f32 %v684, %v715
        %vm729 = vcmask 1046528
        %v730 = vrot.slane %v717, 1
        %v731 = vrot.slane %v719, 1
        %v732 = vsel %vm729, %v730, %v731
        %v733 = vrot.slane %v718, 1
        %v734 = vrot.slane %v720, 1
        %v735 = vsel %vm729, %v733, %v734
        %v736 = vrot.slane %v721, 1
        %v737 = vsel %vm729, %v731, %v736
        %v738 = vrot.slane %v722, 1
        %v739 = vsel %vm729, %v734, %v738
        %740 = vrot.lane.b32.xlu0 %v732, 120
        %v741 = vpop.permute.xlu0 %740
        %742 = vrot.lane.b32.xlu0 %v735, 120
        %v743 = vpop.permute.xlu0 %742
        %744 = vrot.lane.b32.xlu0 %v737, 120
        %v745 = vpop.permute.xlu0 %744
        %746 = vrot.lane.b32.xlu0 %v739, 120
        %v747 = vpop.permute.xlu0 %746
        %vm748 = vcmask 982016
        %v749 = vsel %vm748, %v741, %v743
        %v750 = vsel %vm748, %v745, %v747
        %v753 = vadd.f32 %v688, %v749
        %v754 = vadd.f32 %v689, %v750
        %v755 = vperm.slane %v685, 5
        %757 = vrot.lane.b32.xlu0 %v755, 16
        %v758 = vpop.permute.xlu0 %757
        %v760 = vmul.f32 %v679, %v758
        %v761 = vmul.f32 %v682, %v758
        %v762 = vmul.f32 %v680, %v758
        %v763 = vmul.f32 %v683, %v758
        %v764 = vmul.f32 %v681, %v758
        %v765 = vmul.f32 %v684, %v758
        %v772 = vrot.slane %v760, 1
        %v773 = vrot.slane %v762, 1
        %v774 = vsel %vm729, %v772, %v773
        %v775 = vrot.slane %v761, 1
        %v776 = vrot.slane %v763, 1
        %v777 = vsel %vm729, %v775, %v776
        %v778 = vrot.slane %v764, 1
        %v779 = vsel %vm729, %v773, %v778
        %v780 = vrot.slane %v765, 1
        %v781 = vsel %vm729, %v776, %v780
        %782 = vrot.lane.b32.xlu0 %v774, 120
        %v783 = vpop.permute.xlu0 %782
        %784 = vrot.lane.b32.xlu0 %v777, 120
        %v785 = vpop.permute.xlu0 %784
        %786 = vrot.lane.b32.xlu0 %v779, 120
        %v787 = vpop.permute.xlu0 %786
        %788 = vrot.lane.b32.xlu0 %v781, 120
        %v789 = vpop.permute.xlu0 %788
        %v790 = vsel %vm748, %v783, %v785
        %v791 = vsel %vm748, %v787, %v789
        %v796 = vadd.f32 %v695, %v790
        %v797 = vadd.f32 %v696, %v785
        %v798 = vadd.f32 %v697, %v791
        %v799 = vadd.f32 %v698, %v789
        %v800 = vperm.slane %v685, 6
        %v801 = vmul.f32 %v679, %v800
        %v802 = vmul.f32 %v680, %v800
        %v803 = vmul.f32 %v681, %v800
        %vm807 = vcmask 1045504
        %v808 = vrot.slane %v801, 2
        %v809 = vrot.slane %v802, 2
        %v810 = vsel %vm807, %v808, %v809
        %v811 = vrot.slane %v803, 2
        %v812 = vsel %vm807, %v809, %v811
        %813 = vrot.lane.b32.xlu0 %v810, 16
        %v814 = vpop.permute.xlu0 %813
        %815 = vrot.lane.b32.xlu0 %v812, 16
        %v816 = vpop.permute.xlu0 %815
        %v819 = vadd.f32 %v704, %v814
        %v820 = vadd.f32 %v705, %v814
        %v821 = vadd.f32 %v706, %v816
        %v822 = vadd.f32 %v707, %v816
        %v823 = vperm.slane %v685, 7
        %825 = vrot.lane.b32.xlu0 %v823, 8
        %v826 = vpop.permute.xlu0 %825
        %v828 = vmul.f32 %v679, %v826
        %v829 = vmul.f32 %v682, %v826
        %v830 = vmul.f32 %v680, %v826
        %v831 = vmul.f32 %v683, %v826
        %v832 = vmul.f32 %v681, %v826
        %v833 = vmul.f32 %v684, %v826
        %v840 = vrot.slane %v828, 1
        %v841 = vrot.slane %v830, 1
        %v842 = vsel %vm729, %v840, %v841
        %v843 = vrot.slane %v829, 1
        %v844 = vrot.slane %v831, 1
        %v845 = vsel %vm729, %v843, %v844
        %v846 = vrot.slane %v832, 1
        %v847 = vsel %vm729, %v841, %v846
        %v848 = vrot.slane %v833, 1
        %v849 = vsel %vm729, %v844, %v848
        %850 = vrot.lane.b32.xlu0 %v842, 120
        %v851 = vpop.permute.xlu0 %850
        %852 = vrot.lane.b32.xlu0 %v845, 120
        %v853 = vpop.permute.xlu0 %852
        %854 = vrot.lane.b32.xlu0 %v847, 120
        %v855 = vpop.permute.xlu0 %854
        %856 = vrot.lane.b32.xlu0 %v849, 120
        %v857 = vpop.permute.xlu0 %856
        %858 = vrot.lane.b32.xlu0 %v846, 120
        %v859 = vpop.permute.xlu0 %858
        %860 = vrot.lane.b32.xlu0 %v848, 120
        %v861 = vpop.permute.xlu0 %860
        %v862 = vsel %vm748, %v851, %v853
        %v863 = vsel %vm748, %v855, %v857
        %v864 = vsel %vm748, %v859, %v861
        %v868 = vadd.f32 %v709, %v862
        %v869 = vadd.f32 %v710, %v863
        %v870 = vadd.f32 %v711, %v864
        %v871 = vperm.slane %v686, 0
        %873 = vrot.lane.b32.xlu0 %v871, 16
        %v874 = vpop.permute.xlu0 %873
        %v876 = vmul.f32 %v679, %v874
        %v877 = vmul.f32 %v682, %v874
        %v878 = vmul.f32 %v680, %v874
        %v879 = vmul.f32 %v683, %v874
        %v880 = vmul.f32 %v681, %v874
        %v881 = vmul.f32 %v684, %v874
        %v888 = vrot.slane %v876, 2
        %v889 = vrot.slane %v878, 2
        %v890 = vsel %vm807, %v888, %v889
        %v891 = vrot.slane %v877, 2
        %v892 = vrot.slane %v879, 2
        %v893 = vsel %vm807, %v891, %v892
        %v894 = vrot.slane %v880, 2
        %v895 = vsel %vm807, %v889, %v894
        %v896 = vrot.slane %v881, 2
        %v897 = vsel %vm807, %v892, %v896
        %898 = vrot.lane.b32.xlu0 %v890, 112
        %v899 = vpop.permute.xlu0 %898
        %900 = vrot.lane.b32.xlu0 %v893, 112
        %v901 = vpop.permute.xlu0 %900
        %902 = vrot.lane.b32.xlu0 %v895, 112
        %v903 = vpop.permute.xlu0 %902
        %904 = vrot.lane.b32.xlu0 %v897, 112
        %v905 = vpop.permute.xlu0 %904
        %vm906 = vcmask 916480
        %v907 = vsel %vm906, %v899, %v901
        %v908 = vsel %vm906, %v903, %v905
        %v911 = vadd.f32 %v753, %v907
        %v912 = vadd.f32 %v754, %v908
        %917 = vrot.lane.b32.xlu0 %v796, 120
        %v918 = vpop.permute.xlu0 %917
        %919 = vrot.lane.b32.xlu0 %v797, 120
        %v920 = vpop.permute.xlu0 %919
        %921 = vrot.lane.b32.xlu0 %v798, 120
        %v922 = vpop.permute.xlu0 %921
        %923 = vrot.lane.b32.xlu0 %v799, 120
        %v924 = vpop.permute.xlu0 %923
        %v925 = vsel %vm748, %v918, %v920
        %v926 = vsel %vm748, %v922, %v924
        %v929 = vadd.f32 %v911, %v925
        %v930 = vadd.f32 %v912, %v926
        %v934 = vrot.slane %v868, 1
        %v935 = vrot.slane %v869, 1
        %v936 = vsel %vm729, %v934, %v935
        %v937 = vrot.slane %v870, 1
        %v938 = vsel %vm729, %v935, %v937
        %939 = vrot.lane.b32.xlu0 %v936, 16
        %v940 = vpop.permute.xlu0 %939
        %941 = vrot.lane.b32.xlu0 %v938, 16
        %v942 = vpop.permute.xlu0 %941
        %v945 = vadd.f32 %v819, %v940
        %v946 = vadd.f32 %v820, %v940
        %v947 = vadd.f32 %v821, %v942
        %v948 = vadd.f32 %v822, %v942
        %953 = vrot.lane.b32.xlu0 %v945, 112
        %v954 = vpop.permute.xlu0 %953
        %955 = vrot.lane.b32.xlu0 %v946, 112
        %v956 = vpop.permute.xlu0 %955
        %957 = vrot.lane.b32.xlu0 %v947, 112
        %v958 = vpop.permute.xlu0 %957
        %959 = vrot.lane.b32.xlu0 %v948, 112
        %v960 = vpop.permute.xlu0 %959
        %v961 = vsel %vm906, %v954, %v956
        %v962 = vsel %vm906, %v958, %v960
        %v965 = vadd.f32 %v929, %v961
        %v966 = vadd.f32 %v930, %v962
        %v967 = vld [vmem:[%s2] sm:$0xff]
        %v968 = vld [vmem:[%s2 + $0x8] sm:$0xff]
        %v969 = vld [vmem:[%s2 + $0x10] sm:$0xff]
        %v970 = vld [vmem:[%s2 + $0x18] sm:$0xff]
        %v971 = vld [vmem:[%s2 + $0x20] sm:$0xff]
        %v972 = vld [vmem:[%s2 + $0x28] sm:$0xff]
        %v973 = vld [vmem:[%s2 + $0x30] sm:$0xff]
        %v974 = vld [vmem:[%s2 + $0x38] sm:$0xff]
        %v975 = vld [vmem:[%s2 + $0x40] sm:$0xff]
        %v976 = vld [vmem:[%s2 + $0x48] sm:$0xff]
        %v977 = vld [vmem:[%s2 + $0x50] sm:$0xff]
        %v978 = vld [vmem:[%s2 + $0x58] sm:$0xff]
        %v979 = vld [vmem:[%s2 + $0x60] sm:$0xff]
        %v980 = vld [vmem:[%s2 + $0x68] sm:$0xff]
        %v981 = vld [vmem:[%s2 + $0x70] sm:$0xff]
        %v982 = vld [vmem:[%s2 + $0x78] sm:$0xff]
        %v983 = vld [vmem:[%s3] sm:$0x1]
        %v984 = vld [vmem:[%s4] sm:$0x1]
        %v985 = vld [vmem:[%s5] sm:$0x1]
        %v986 = vadd.f32 %v965, %v966
        %v987 = vrot.slane %v986, 4
        %v988 = vadd.f32 %v986, %v987
        %v989 = vrot.slane %v988, 2
        %v990 = vadd.f32 %v988, %v989
        %v991 = vrot.slane %v990, 1
        %v992 = vadd.f32 %v990, %v991
        %v993 = vmul.f32 %v965, %v965
        %v994 = vmul.f32 %v966, %v966
        %v995 = vadd.f32 %v993, %v994
        %v996 = vrot.slane %v995, 4
        %v997 = vadd.f32 %v995, %v996
        %v998 = vrot.slane %v997, 2
        %v999 = vadd.f32 %v997, %v998
        %v1000 = vrot.slane %v999, 1
        %v1001 = vadd.f32 %v999, %v1000
        %v1002 = vsel %vm659, %v992, %v1001
        %1003 = vmatpush.msra.mxu0 %v982
        %1004 = vmatpush.msra.mxu0 %v981
        %1005 = vmatpush.msra.mxu0 %v980
        %1006 = vmatpush.msra.mxu0 %v979
        %1007 = vmatpush.msra.mxu0 %v978
        %1008 = vmatpush.msra.mxu0 %v977
        %1009 = vmatpush.msra.mxu0 %v976
        %1010 = vmatpush.msra.mxu0 %v975
        %1011 = vmatpush.msra.mxu0 %v974
        %1012 = vmatpush.msra.mxu0 %v973
        %1013 = vmatpush.msra.mxu0 %v972
        %1014 = vmatpush.msra.mxu0 %v971
        %1015 = vmatpush.msra.mxu0 %v970
        %1016 = vmatpush.msra.mxu0 %v969
        %1017 = vmatpush.msra.mxu0 %v968
        %1018 = vmatpush.msra.mxu0 %v967
        %1019 = vmatmul.f32.gmra.mxu0 %v1002
        %v1020 = vpop.f32.mrf.mxu0
        %v1021 = vadd.f32 0.0, %v1020
        %1022 = vdwg.mxu0
        %v1023 = vmul.f32 %v1021, 0.00048828125
        %vm1024 = vcmask 7168
        %v1026 = vsel %vm1024, %v1023, 0
        %v1029 = vsel %vm659, %v983, 0
        %1031 = vmatpush.msra.mxu0 0.0
        %1032 = vmatpush.msra.mxu0 0.0
        %1033 = vmatpush.msra.mxu0 0.0
        %1034 = vmatpush.msra.mxu0 0.0
        %1035 = vmatpush.msra.mxu0 0.0
        %1036 = vmatpush.msra.mxu0 0.0
        %1037 = vmatpush.msra.mxu0 0.0
        %1038 = vmatpush.msra.mxu0 0.0
        %1039 = vmatpush.msra.mxu0 0.0
        %1040 = vmatpush.msra.mxu0 0.0
        %1041 = vmatpush.msra.mxu0 0.0
        %1042 = vmatpush.msra.mxu0 0.0
        %1043 = vmatpush.msra.mxu0 0.0
        %1044 = vmatpush.msra.mxu0 0.0
        %1045 = vmatpush.msra.mxu0 0.0
        %1046 = vmatpush.msra.mxu0 %v1029
        %1047 = vmatmul.f32.gmra.mxu0 %v1026
        %v1048 = vpop.f32.mrf.mxu0
        %v1049 = vadd.f32 0.0, %v1048
        %1050 = vdwg.mxu0
        %v1051 = vmul.f32 %v1049, %v1049
        %v1053 = vrot.slane %v1051, 7
        %v1055 = vsub.f32 %v1049, %v1053
        %v1056 = vmax.f32 %v1055, 0.0
        %v1057 = vadd.f32 %v1056, 1e-05
        %v1058 = vrsqrt.pop %v1057
        %v1059 = vmul.f32 %v1058, %v1057
        %v1060 = vmul.f32 %v1059, %v1058
        %v1061 = vmul.f32 0.5, %v1060
        %v1062 = vsub.f32 1.5, %v1061
        %v1063 = vmul.f32 %v1058, %v1062
        %vm1064 = vweird.f32 %v1057
        %vm1065 = vweird.f32 %v1058
        %vm1066 = vmor %vm1064, %vm1065
        %v1067 = vsel %vm1066, %v1058, %v1063
        %v1069 = vperm.slane %v984, 0
        %v1071 = vmul.f32 %v1067, %v1069
        %v1073 = vrot.slane %v1071, 1
        %v1075 = vmul.f32 %v1049, %v1073
        %v1076 = vsub.f32 %v985, %v1075
        %v1077 = vperm.slane %v1071, 1
        %v1078 = vmul.f32 %v965, %v1077
        %v1079 = vmul.f32 %v966, %v1077
        %v1081 = vperm.slane %v1076, 0
        %v1083 = vadd.f32 %v1078, %v1081
        %v1084 = vadd.f32 %v1079, %v1081
        %v1085 = vmul.f32 %v1083, 0.5
        %v1086 = vmul.f32 %v1084, 0.5
        %v1087 = vtanh.pop %v1085
        %v1088 = vtanh.pop %v1086
        %v1089 = vmul.f32 %v1087, 0.5
        %v1090 = vmul.f32 %v1088, 0.5
        %v1091 = vadd.f32 %v1089, 0.5
        %v1092 = vadd.f32 %v1090, 0.5
        %v1093 = vmul.f32 %v1083, %v1091
        %v1094 = vmul.f32 %v1084, %v1092
        %v1095 = vld [vmem:[%s6] sm:$0xff]
        %v1096 = vld [vmem:[%s6 + $0x8] sm:$0xff]
        %v1097 = vld [vmem:[%s6 + $0x10] sm:$0xff]
        %v1098 = vld [vmem:[%s6 + $0x18] sm:$0xff]
        %v1099 = vld [vmem:[%s6 + $0x20] sm:$0xff]
        %v1100 = vld [vmem:[%s6 + $0x28] sm:$0xff]
        %v1101 = vld [vmem:[%s6 + $0x30] sm:$0xff]
        %v1102 = vld [vmem:[%s6 + $0x38] sm:$0xff]
        %v1103 = vld [vmem:[%s6 + $0x40] sm:$0xff]
        %v1104 = vld [vmem:[%s6 + $0x48] sm:$0xff]
        %v1105 = vld [vmem:[%s6 + $0x50] sm:$0xff]
        %v1106 = vld [vmem:[%s6 + $0x58] sm:$0xff]
        %v1107 = vld [vmem:[%s6 + $0x60] sm:$0xff]
        %v1108 = vld [vmem:[%s6 + $0x68] sm:$0xff]
        %v1109 = vld [vmem:[%s6 + $0x70] sm:$0xff]
        %v1110 = vld [vmem:[%s6 + $0x78] sm:$0xff]
        %v1111 = vld [vmem:[%s6 + $0x80] sm:$0xff]
        %v1112 = vld [vmem:[%s6 + $0x88] sm:$0xff]
        %v1113 = vld [vmem:[%s6 + $0x90] sm:$0xff]
        %v1114 = vld [vmem:[%s6 + $0x98] sm:$0xff]
        %v1115 = vld [vmem:[%s6 + $0xa0] sm:$0xff]
        %v1116 = vld [vmem:[%s6 + $0xa8] sm:$0xff]
        %v1117 = vld [vmem:[%s6 + $0xb0] sm:$0xff]
        %v1118 = vld [vmem:[%s6 + $0xb8] sm:$0xff]
        %v1119 = vld [vmem:[%s6 + $0xc0] sm:$0xff]
        %v1120 = vld [vmem:[%s6 + $0xc8] sm:$0xff]
        %v1121 = vld [vmem:[%s6 + $0xd0] sm:$0xff]
        %v1122 = vld [vmem:[%s6 + $0xd8] sm:$0xff]
        %v1123 = vld [vmem:[%s6 + $0xe0] sm:$0xff]
        %v1124 = vld [vmem:[%s6 + $0xe8] sm:$0xff]
        %v1125 = vld [vmem:[%s6 + $0xf0] sm:$0xff]
        %v1126 = vld [vmem:[%s6 + $0xf8] sm:$0xff]
        %1127 = vmatpush.msra.mxu0 %v1125
        %1128 = vmatpush.msra.mxu0 %v1123
        %1129 = vmatpush.msra.mxu0 %v1121
        %1130 = vmatpush.msra.mxu0 %v1119
        %1131 = vmatpush.msra.mxu0 %v1117
        %1132 = vmatpush.msra.mxu0 %v1115
        %1133 = vmatpush.msra.mxu0 %v1113
        %1134 = vmatpush.msra.mxu0 %v1111
        %1135 = vmatpush.msra.mxu0 %v1109
        %1136 = vmatpush.msra.mxu0 %v1107
        %1137 = vmatpush.msra.mxu0 %v1105
        %1138 = vmatpush.msra.mxu0 %v1103
        %1139 = vmatpush.msra.mxu0 %v1101
        %1140 = vmatpush.msra.mxu0 %v1099
        %1141 = vmatpush.msra.mxu0 %v1097
        %1142 = vmatpush.msra.mxu0 %v1095
        %1143 = vmatmul.f32.gmra.mxu0 %v1093
        %v1144 = vpop.f32.mrf.mxu0
        %v1145 = vadd.f32 0.0, %v1144
        %1146 = vmatmul.f32.gmra.mxu0 %v1094
        %v1147 = vpop.f32.mrf.mxu0
        %v1148 = vadd.f32 0.0, %v1147
        %1149 = vdwg.mxu0
        %1150 = vmatpush.msra.mxu0 %v1126
        %1151 = vmatpush.msra.mxu0 %v1124
        %1152 = vmatpush.msra.mxu0 %v1122
        %1153 = vmatpush.msra.mxu0 %v1120
        %1154 = vmatpush.msra.mxu0 %v1118
        %1155 = vmatpush.msra.mxu0 %v1116
        %1156 = vmatpush.msra.mxu0 %v1114
        %1157 = vmatpush.msra.mxu0 %v1112
        %1158 = vmatpush.msra.mxu0 %v1110
        %1159 = vmatpush.msra.mxu0 %v1108
        %1160 = vmatpush.msra.mxu0 %v1106
        %1161 = vmatpush.msra.mxu0 %v1104
        %1162 = vmatpush.msra.mxu0 %v1102
        %1163 = vmatpush.msra.mxu0 %v1100
        %1164 = vmatpush.msra.mxu0 %v1098
        %1165 = vmatpush.msra.mxu0 %v1096
        %1166 = vmatmul.f32.gmra.mxu0 %v1093
        %v1167 = vpop.f32.mrf.mxu0
        %v1168 = vadd.f32 0.0, %v1167
        %1169 = vmatmul.f32.gmra.mxu0 %v1094
        %v1170 = vpop.f32.mrf.mxu0
        %v1171 = vadd.f32 0.0, %v1170
        %1172 = vdwg.mxu0
        %v1173 = vld [vmem:[%s7] sm:$0xff]
        %v1174 = vld [vmem:[%s7 + $0x8] sm:$0xff]
        %v1175 = vld [vmem:[%s7 + $0x10] sm:$0xff]
        %v1176 = vld [vmem:[%s7 + $0x18] sm:$0xff]
        %v1177 = vld [vmem:[%s7 + $0x20] sm:$0xff]
        %v1178 = vld [vmem:[%s7 + $0x28] sm:$0xff]
        %v1179 = vld [vmem:[%s7 + $0x30] sm:$0xff]
        %v1180 = vld [vmem:[%s7 + $0x38] sm:$0xff]
        %v1181 = vld [vmem:[%s7 + $0x40] sm:$0xff]
        %v1182 = vld [vmem:[%s7 + $0x48] sm:$0xff]
        %v1183 = vld [vmem:[%s7 + $0x50] sm:$0xff]
        %v1184 = vld [vmem:[%s7 + $0x58] sm:$0xff]
        %v1185 = vld [vmem:[%s7 + $0x60] sm:$0xff]
        %v1186 = vld [vmem:[%s7 + $0x68] sm:$0xff]
        %v1187 = vld [vmem:[%s7 + $0x70] sm:$0xff]
        %v1188 = vld [vmem:[%s7 + $0x78] sm:$0xff]
        %v1189 = vld [vmem:[%s7 + $0x80] sm:$0xff]
        %v1190 = vld [vmem:[%s7 + $0x88] sm:$0xff]
        %v1191 = vld [vmem:[%s7 + $0x90] sm:$0xff]
        %v1192 = vld [vmem:[%s7 + $0x98] sm:$0xff]
        %v1193 = vld [vmem:[%s7 + $0xa0] sm:$0xff]
        %v1194 = vld [vmem:[%s7 + $0xa8] sm:$0xff]
        %v1195 = vld [vmem:[%s7 + $0xb0] sm:$0xff]
        %v1196 = vld [vmem:[%s7 + $0xb8] sm:$0xff]
        %v1197 = vld [vmem:[%s7 + $0xc0] sm:$0xff]
        %v1198 = vld [vmem:[%s7 + $0xc8] sm:$0xff]
        %v1199 = vld [vmem:[%s7 + $0xd0] sm:$0xff]
        %v1200 = vld [vmem:[%s7 + $0xd8] sm:$0xff]
        %v1201 = vld [vmem:[%s7 + $0xe0] sm:$0xff]
        %v1202 = vld [vmem:[%s7 + $0xe8] sm:$0xff]
        %v1203 = vld [vmem:[%s7 + $0xf0] sm:$0xff]
        %v1204 = vld [vmem:[%s7 + $0xf8] sm:$0xff]
        %v1205 = vld [vmem:[%s8] sm:$0xf]
        %v1206 = vld [vmem:[%s9] sm:$0x3]
        %v1207 = vld [vmem:[%s10] sm:$0x3]
        %v1208 = vadd.f32 %v1145, %v1148
        %v1209 = vrot.slane %v1208, 4
        %v1210 = vadd.f32 %v1208, %v1209
        %v1211 = vrot.slane %v1210, 2
        %v1212 = vadd.f32 %v1210, %v1211
        %v1213 = vrot.slane %v1212, 1
        %v1214 = vadd.f32 %v1212, %v1213
        %v1215 = vadd.f32 %v1168, %v1171
        %v1216 = vrot.slane %v1215, 4
        %v1217 = vadd.f32 %v1215, %v1216
        %v1218 = vrot.slane %v1217, 2
        %v1219 = vadd.f32 %v1217, %v1218
        %v1220 = vrot.slane %v1219, 1
        %v1221 = vadd.f32 %v1219, %v1220
        %v1222 = vmul.f32 %v1145, %v1145
        %v1223 = vmul.f32 %v1168, %v1168
        %v1224 = vmul.f32 %v1148, %v1148
        %v1225 = vmul.f32 %v1171, %v1171
        %v1226 = vadd.f32 %v1222, %v1224
        %v1227 = vrot.slane %v1226, 4
        %v1228 = vadd.f32 %v1226, %v1227
        %v1229 = vrot.slane %v1228, 2
        %v1230 = vadd.f32 %v1228, %v1229
        %v1231 = vrot.slane %v1230, 1
        %v1232 = vadd.f32 %v1230, %v1231
        %v1233 = vadd.f32 %v1223, %v1225
        %v1234 = vrot.slane %v1233, 4
        %v1235 = vadd.f32 %v1233, %v1234
        %v1236 = vrot.slane %v1235, 2
        %v1237 = vadd.f32 %v1235, %v1236
        %v1238 = vrot.slane %v1237, 1
        %v1239 = vadd.f32 %v1237, %v1238
        %v1240 = vsel %vm659, %v1214, %v1232
        %v1241 = vsel %vm659, %v1221, %v1239
        %1242 = vmatpush.msra.mxu0 %v1188
        %1243 = vmatpush.msra.mxu0 %v1187
        %1244 = vmatpush.msra.mxu0 %v1186
        %1245 = vmatpush.msra.mxu0 %v1185
        %1246 = vmatpush.msra.mxu0 %v1184
        %1247 = vmatpush.msra.mxu0 %v1183
        %1248 = vmatpush.msra.mxu0 %v1182
        %1249 = vmatpush.msra.mxu0 %v1181
        %1250 = vmatpush.msra.mxu0 %v1180
        %1251 = vmatpush.msra.mxu0 %v1179
        %1252 = vmatpush.msra.mxu0 %v1178
        %1253 = vmatpush.msra.mxu0 %v1177
        %1254 = vmatpush.msra.mxu0 %v1176
        %1255 = vmatpush.msra.mxu0 %v1175
        %1256 = vmatpush.msra.mxu0 %v1174
        %1257 = vmatpush.msra.mxu0 %v1173
        %1258 = vmatmul.f32.gmra.mxu0 %v1240
        %v1259 = vpop.f32.mrf.mxu0
        %v1260 = vadd.f32 0.0, %v1259
        %1261 = vdwg.mxu0
        %1262 = vmatpush.msra.mxu0 %v1204
        %1263 = vmatpush.msra.mxu0 %v1203
        %1264 = vmatpush.msra.mxu0 %v1202
        %1265 = vmatpush.msra.mxu0 %v1201
        %1266 = vmatpush.msra.mxu0 %v1200
        %1267 = vmatpush.msra.mxu0 %v1199
        %1268 = vmatpush.msra.mxu0 %v1198
        %1269 = vmatpush.msra.mxu0 %v1197
        %1270 = vmatpush.msra.mxu0 %v1196
        %1271 = vmatpush.msra.mxu0 %v1195
        %1272 = vmatpush.msra.mxu0 %v1194
        %1273 = vmatpush.msra.mxu0 %v1193
        %1274 = vmatpush.msra.mxu0 %v1192
        %1275 = vmatpush.msra.mxu0 %v1191
        %1276 = vmatpush.msra.mxu0 %v1190
        %1277 = vmatpush.msra.mxu0 %v1189
        %1278 = vmatmul.f32.gmra.mxu0 %v1241
        %v1279 = vpop.f32.mrf.mxu0
        %v1280 = vadd.f32 %v1260, %v1279
        %1281 = vdwg.mxu0
        %v1282 = vmul.f32 %v1280, 0.00048828125
        %1284 = vst [vmem:[#allocation1] ss:$4 sm:$0xff] %v1205
        %v1285 = vld.sshfl [vmem:[#allocation1] sm:$0xff pattern:$0x73625140]
        %v1286 = vld.sshfl [vmem:[#allocation1 + $0x8] sm:$0xff pattern:$0x73625140]
        %vm1287 = vcmask 15360
        %v1289 = vsel %vm1287, %v1282, 0
        %vm1291 = vcmask 1041408
        %v1292 = vsel %vm1291, %v1285, 0
        %v1294 = vsel %vm1291, %v1286, 0
        %1296 = vmatpush.msra.mxu0 0.0
        %1297 = vmatpush.msra.mxu0 0.0
        %1298 = vmatpush.msra.mxu0 0.0
        %1299 = vmatpush.msra.mxu0 0.0
        %1300 = vmatpush.msra.mxu0 0.0
        %1301 = vmatpush.msra.mxu0 0.0
        %1302 = vmatpush.msra.mxu0 0.0
        %1303 = vmatpush.msra.mxu0 0.0
        %1304 = vmatpush.msra.mxu0 0.0
        %1305 = vmatpush.msra.mxu0 0.0
        %1306 = vmatpush.msra.mxu0 0.0
        %1307 = vmatpush.msra.mxu0 0.0
        %1308 = vmatpush.msra.mxu0 0.0
        %1309 = vmatpush.msra.mxu0 0.0
        %1310 = vmatpush.msra.mxu0 0.0
        %1311 = vmatpush.msra.mxu0 %v1292
        %1312 = vmatmul.f32.gmra.mxu0 %v1289
        %v1313 = vpop.f32.mrf.mxu0
        %v1314 = vadd.f32 0.0, %v1313
        %1315 = vdwg.mxu0
        %1316 = vmatpush.msra.mxu0 0.0
        %1317 = vmatpush.msra.mxu0 0.0
        %1318 = vmatpush.msra.mxu0 0.0
        %1319 = vmatpush.msra.mxu0 0.0
        %1320 = vmatpush.msra.mxu0 0.0
        %1321 = vmatpush.msra.mxu0 0.0
        %1322 = vmatpush.msra.mxu0 0.0
        %1323 = vmatpush.msra.mxu0 0.0
        %1324 = vmatpush.msra.mxu0 0.0
        %1325 = vmatpush.msra.mxu0 0.0
        %1326 = vmatpush.msra.mxu0 0.0
        %1327 = vmatpush.msra.mxu0 0.0
        %1328 = vmatpush.msra.mxu0 0.0
        %1329 = vmatpush.msra.mxu0 0.0
        %1330 = vmatpush.msra.mxu0 0.0
        %1331 = vmatpush.msra.mxu0 %v1294
        %1332 = vmatmul.f32.gmra.mxu0 %v1289
        %v1333 = vpop.f32.mrf.mxu0
        %v1334 = vadd.f32 0.0, %v1333
        %1335 = vdwg.mxu0
        %v1336 = vmul.f32 %v1314, %v1314
        %v1337 = vmul.f32 %v1334, %v1334
        %v1340 = vrot.slane %v1336, 7
        %v1341 = vrot.slane %v1337, 7
        %v1344 = vsub.f32 %v1314, %v1340
        %v1345 = vsub.f32 %v1334, %v1341
        %v1346 = vmax.f32 %v1344, 0.0
        %v1347 = vmax.f32 %v1345, 0.0
        %v1348 = vadd.f32 %v1346, 1e-05
        %v1349 = vadd.f32 %v1347, 1e-05
        %v1350 = vrsqrt.pop %v1348
        %v1351 = vmul.f32 %v1350, %v1348
        %v1352 = vmul.f32 %v1351, %v1350
        %v1353 = vmul.f32 0.5, %v1352
        %v1354 = vsub.f32 1.5, %v1353
        %v1355 = vmul.f32 %v1350, %v1354
        %vm1356 = vweird.f32 %v1348
        %vm1357 = vweird.f32 %v1350
        %vm1358 = vmor %vm1356, %vm1357
        %v1359 = vsel %vm1358, %v1350, %v1355
        %v1360 = vrsqrt.pop %v1349
        %v1361 = vmul.f32 %v1360, %v1349
        %v1362 = vmul.f32 %v1361, %v1360
        %v1363 = vmul.f32 0.5, %v1362
        %v1364 = vsub.f32 1.5, %v1363
        %v1365 = vmul.f32 %v1360, %v1364
        %vm1366 = vweird.f32 %v1349
        %vm1367 = vweird.f32 %v1360
        %vm1368 = vmor %vm1366, %vm1367
        %v1369 = vsel %vm1368, %v1360, %v1365
        %v1371 = vperm.slane %v1206, 0
        %v1372 = vperm.slane %v1206, 1
        %v1375 = vmul.f32 %v1359, %v1371
        %v1376 = vmul.f32 %v1369, %v1372
        %v1379 = vrot.slane %v1375, 1
        %v1380 = vrot.slane %v1376, 1
        %v1383 = vmul.f32 %v1314, %v1379
        %v1384 = vmul.f32 %v1334, %v1380
        %v1387 = vrot.slane %v1384, 7
        %v1388 = vsel %vm659, %v1383, %v1387
        %v1390 = vsub.f32 %v1207, %v1388
        %v1391 = vperm.slane %v1375, 1
        %v1392 = vperm.slane %v1376, 1
        %v1393 = vmul.f32 %v1145, %v1391
        %v1394 = vmul.f32 %v1168, %v1392
        %v1395 = vmul.f32 %v1148, %v1391
        %v1396 = vmul.f32 %v1171, %v1392
        %v1398 = vperm.slane %v1390, 0
        %v1399 = vperm.slane %v1390, 1
        %v1402 = vadd.f32 %v1393, %v1398
        %v1403 = vadd.f32 %v1394, %v1399
        %v1404 = vadd.f32 %v1395, %v1398
        %v1405 = vadd.f32 %v1396, %v1399
        %v1406 = vmul.f32 %v1402, 0.5
        %v1407 = vmul.f32 %v1403, 0.5
        %v1408 = vmul.f32 %v1404, 0.5
        %v1409 = vmul.f32 %v1405, 0.5
        %v1410 = vtanh.pop %v1406
        %v1411 = vtanh.pop %v1407
        %v1412 = vtanh.pop %v1408
        %v1413 = vtanh.pop %v1409
        %v1414 = vmul.f32 %v1410, 0.5
        %v1415 = vmul.f32 %v1411, 0.5
        %v1416 = vmul.f32 %v1412, 0.5
        %v1417 = vmul.f32 %v1413, 0.5
        %v1418 = vadd.f32 %v1414, 0.5
        %v1419 = vadd.f32 %v1415, 0.5
        %v1420 = vadd.f32 %v1416, 0.5
        %v1421 = vadd.f32 %v1417, 0.5
        %v1422 = vmul.f32 %v1402, %v1418
        %v1423 = vmul.f32 %v1403, %v1419
        %v1424 = vmul.f32 %v1404, %v1420
        %v1425 = vmul.f32 %v1405, %v1421
        %v1430 = vrot.slane %v1422, 7
        %v1431 = vrot.slane %v1423, 7
        %v1432 = vrot.slane %v1424, 7
        %v1433 = vsel %vm659, %v1430, %v1432
        %v1434 = vrot.slane %v1425, 7
        %v1435 = vsel %vm659, %v1431, %v1434
        %v1440 = vsel %vm659, 0.0, %v1430
        %v1441 = vsel %vm659, 0.0, %v1431
        %v1442 = vsel %vm659, %v1432, 0.0
        %v1443 = vsel %vm659, %v1434, 0.0
        %1448 = vrot.lane.b32.xlu0 %v1440, 16
        %v1449 = vpop.permute.xlu0 %1448
        %1450 = vrot.lane.b32.xlu0 %v1441, 16
        %v1451 = vpop.permute.xlu0 %1450
        %1452 = vrot.lane.b32.xlu0 %v1433, 16
        %v1453 = vpop.permute.xlu0 %1452
        %1454 = vrot.lane.b32.xlu0 %v1435, 16
        %v1455 = vpop.permute.xlu0 %1454
        %1456 = vrot.lane.b32.xlu0 %v1442, 16
        %v1457 = vpop.permute.xlu0 %1456
        %1458 = vrot.lane.b32.xlu0 %v1443, 16
        %v1459 = vpop.permute.xlu0 %1458
        %vm1460 = vcmask 130048
        %v1461 = vsel %vm1460, %v1449, %v1451
        %v1462 = vsel %vm1460, %v1453, %v1455
        %v1463 = vsel %vm1460, %v1457, %v1459
        %v1473 = vsel %vm1460, 0.0, %v1449
        %v1474 = vsel %vm1460, 0.0, %v1453
        %v1475 = vsel %vm1460, 0.0, %v1457
        %v1476 = vsel %vm1460, %v1451, 0.0
        %v1477 = vsel %vm1460, %v1455, 0.0
        %v1478 = vsel %vm1460, %v1459, 0.0
        %v1479 = vld [vmem:[%s11] sm:$0xff]
        %v1480 = vld [vmem:[%s11 + $0x8] sm:$0xff]
        %v1481 = vld [vmem:[%s11 + $0x10] sm:$0x1]
        %v1482 = vld [vmem:[%s11 + $0x18] sm:$0x1]
        %v1483 = vperm.slane %v1479, 0
        %v1484 = vperm.slane %v1480, 0
        %v1485 = vmul.f32 %v1473, %v1483
        %v1486 = vmul.f32 %v1461, %v1484
        %v1487 = vmul.f32 %v1474, %v1483
        %v1488 = vmul.f32 %v1462, %v1484
        %v1489 = vperm.slane %v1479, 1
        %v1490 = vperm.slane %v1480, 1
        %1493 = vrot.lane.b32.xlu0 %v1489, 16
        %v1494 = vpop.permute.xlu0 %1493
        %1495 = vrot.lane.b32.xlu0 %v1490, 16
        %v1496 = vpop.permute.xlu0 %1495
        %v1497 = vsel %vm1460, %v1494, %v1496
        %v1501 = vmul.f32 %v1473, %v1494
        %v1502 = vmul.f32 %v1461, %v1497
        %v1503 = vmul.f32 %v1476, %v1496
        %v1504 = vmul.f32 %v1474, %v1494
        %v1505 = vmul.f32 %v1462, %v1497
        %v1506 = vmul.f32 %v1477, %v1496
        %v1507 = vperm.slane %v1479, 2
        %v1508 = vperm.slane %v1480, 2
        %1511 = vrot.lane.b32.xlu0 %v1507, 32
        %v1512 = vpop.permute.xlu0 %1511
        %1513 = vrot.lane.b32.xlu0 %v1508, 32
        %v1514 = vpop.permute.xlu0 %1513
        %vm1515 = vcmask 261120
        %v1516 = vsel %vm1515, %v1512, %v1514
        %v1520 = vmul.f32 %v1473, %v1512
        %v1521 = vmul.f32 %v1461, %v1516
        %v1522 = vmul.f32 %v1476, %v1514
        %v1523 = vmul.f32 %v1474, %v1512
        %v1524 = vmul.f32 %v1462, %v1516
        %v1525 = vmul.f32 %v1477, %v1514
        %v1526 = vperm.slane %v1479, 3
        %v1527 = vperm.slane %v1480, 3
        %v1528 = vmul.f32 %v1473, %v1526
        %v1529 = vmul.f32 %v1461, %v1527
        %v1530 = vmul.f32 %v1474, %v1526
        %v1531 = vmul.f32 %v1462, %v1527
        %v1532 = vmul.f32 %v1475, %v1526
        %v1533 = vmul.f32 %v1463, %v1527
        %v1534 = vperm.slane %v1479, 4
        %v1535 = vperm.slane %v1480, 4
        %1538 = vrot.lane.b32.xlu0 %v1534, 16
        %v1539 = vpop.permute.xlu0 %1538
        %1540 = vrot.lane.b32.xlu0 %v1535, 16
        %v1541 = vpop.permute.xlu0 %1540
        %v1542 = vsel %vm1460, %v1539, %v1541
        %v1546 = vmul.f32 %v1473, %v1539
        %v1547 = vmul.f32 %v1461, %v1542
        %v1548 = vmul.f32 %v1476, %v1541
        %v1549 = vmul.f32 %v1474, %v1539
        %v1550 = vmul.f32 %v1462, %v1542
        %v1551 = vmul.f32 %v1477, %v1541
        %v1552 = vmul.f32 %v1475, %v1539
        %v1553 = vmul.f32 %v1463, %v1542
        %v1554 = vmul.f32 %v1478, %v1541
        %v1564 = vrot.slane %v1546, 1
        %v1565 = vrot.slane %v1549, 1
        %v1566 = vsel %vm729, %v1564, %v1565
        %v1567 = vrot.slane %v1547, 1
        %v1568 = vrot.slane %v1550, 1
        %v1569 = vsel %vm729, %v1567, %v1568
        %v1570 = vrot.slane %v1548, 1
        %v1571 = vrot.slane %v1551, 1
        %v1572 = vsel %vm729, %v1570, %v1571
        %v1573 = vrot.slane %v1552, 1
        %v1574 = vsel %vm729, %v1565, %v1573
        %v1575 = vrot.slane %v1553, 1
        %v1576 = vsel %vm729, %v1568, %v1575
        %v1577 = vrot.slane %v1554, 1
        %v1578 = vsel %vm729, %v1571, %v1577
        %1579 = vrot.lane.b32.xlu0 %v1566, 112
        %v1580 = vpop.permute.xlu0 %1579
        %1581 = vrot.lane.b32.xlu0 %v1569, 112
        %v1582 = vpop.permute.xlu0 %1581
        %1583 = vrot.lane.b32.xlu0 %v1572, 112
        %v1584 = vpop.permute.xlu0 %1583
        %1585 = vrot.lane.b32.xlu0 %v1574, 112
        %v1586 = vpop.permute.xlu0 %1585
        %1587 = vrot.lane.b32.xlu0 %v1576, 112
        %v1588 = vpop.permute.xlu0 %1587
        %1589 = vrot.lane.b32.xlu0 %v1578, 112
        %v1590 = vpop.permute.xlu0 %1589
        %v1591 = vsel %vm906, %v1580, %v1582
        %v1592 = vsel %vm906, %v1582, %v1584
        %v1593 = vsel %vm906, %v1586, %v1588
        %v1594 = vsel %vm906, %v1588, %v1590
        %v1599 = vadd.f32 %v1485, %v1591
        %v1600 = vadd.f32 %v1486, %v1592
        %v1601 = vadd.f32 %v1487, %v1593
        %v1602 = vadd.f32 %v1488, %v1594
        %v1603 = vperm.slane %v1479, 5
        %v1604 = vperm.slane %v1480, 5
        %1607 = vrot.lane.b32.xlu0 %v1603, 32
        %v1608 = vpop.permute.xlu0 %1607
        %1609 = vrot.lane.b32.xlu0 %v1604, 32
        %v1610 = vpop.permute.xlu0 %1609
        %v1611 = vsel %vm1515, %v1608, %v1610
        %v1615 = vmul.f32 %v1473, %v1608
        %v1616 = vmul.f32 %v1461, %v1611
        %v1617 = vmul.f32 %v1476, %v1610
        %v1618 = vmul.f32 %v1474, %v1608
        %v1619 = vmul.f32 %v1462, %v1611
        %v1620 = vmul.f32 %v1477, %v1610
        %v1621 = vmul.f32 %v1475, %v1608
        %v1622 = vmul.f32 %v1463, %v1611
        %v1623 = vmul.f32 %v1478, %v1610
        %v1633 = vrot.slane %v1615, 1
        %v1634 = vrot.slane %v1618, 1
        %v1635 = vsel %vm729, %v1633, %v1634
        %v1636 = vrot.slane %v1616, 1
        %v1637 = vrot.slane %v1619, 1
        %v1638 = vsel %vm729, %v1636, %v1637
        %v1639 = vrot.slane %v1617, 1
        %v1640 = vrot.slane %v1620, 1
        %v1641 = vsel %vm729, %v1639, %v1640
        %v1642 = vrot.slane %v1621, 1
        %v1643 = vsel %vm729, %v1634, %v1642
        %v1644 = vrot.slane %v1622, 1
        %v1645 = vsel %vm729, %v1637, %v1644
        %v1646 = vrot.slane %v1623, 1
        %v1647 = vsel %vm729, %v1640, %v1646
        %1648 = vrot.lane.b32.xlu0 %v1635, 112
        %v1649 = vpop.permute.xlu0 %1648
        %1650 = vrot.lane.b32.xlu0 %v1638, 112
        %v1651 = vpop.permute.xlu0 %1650
        %1652 = vrot.lane.b32.xlu0 %v1641, 112
        %v1653 = vpop.permute.xlu0 %1652
        %1654 = vrot.lane.b32.xlu0 %v1643, 112
        %v1655 = vpop.permute.xlu0 %1654
        %1656 = vrot.lane.b32.xlu0 %v1645, 112
        %v1657 = vpop.permute.xlu0 %1656
        %1658 = vrot.lane.b32.xlu0 %v1647, 112
        %v1659 = vpop.permute.xlu0 %1658
        %v1660 = vsel %vm906, %v1649, %v1651
        %v1661 = vsel %vm906, %v1651, %v1653
        %v1662 = vsel %vm906, %v1655, %v1657
        %v1663 = vsel %vm906, %v1657, %v1659
        %v1670 = vadd.f32 %v1501, %v1660
        %v1671 = vadd.f32 %v1502, %v1661
        %v1672 = vadd.f32 %v1503, %v1653
        %v1673 = vadd.f32 %v1504, %v1662
        %v1674 = vadd.f32 %v1505, %v1663
        %v1675 = vadd.f32 %v1506, %v1659
        %v1676 = vperm.slane %v1479, 6
        %v1677 = vperm.slane %v1480, 6
        %v1678 = vmul.f32 %v1473, %v1676
        %v1679 = vmul.f32 %v1461, %v1677
        %v1680 = vmul.f32 %v1474, %v1676
        %v1681 = vmul.f32 %v1462, %v1677
        %v1682 = vmul.f32 %v1475, %v1676
        %v1683 = vmul.f32 %v1463, %v1677
        %v1690 = vrot.slane %v1678, 2
        %v1691 = vrot.slane %v1680, 2
        %v1692 = vsel %vm807, %v1690, %v1691
        %v1693 = vrot.slane %v1679, 2
        %v1694 = vrot.slane %v1681, 2
        %v1695 = vsel %vm807, %v1693, %v1694
        %v1696 = vrot.slane %v1682, 2
        %v1697 = vsel %vm807, %v1691, %v1696
        %v1698 = vrot.slane %v1683, 2
        %v1699 = vsel %vm807, %v1694, %v1698
        %1700 = vrot.lane.b32.xlu0 %v1692, 32
        %v1701 = vpop.permute.xlu0 %1700
        %1702 = vrot.lane.b32.xlu0 %v1695, 32
        %v1703 = vpop.permute.xlu0 %1702
        %1704 = vrot.lane.b32.xlu0 %v1697, 32
        %v1705 = vpop.permute.xlu0 %1704
        %1706 = vrot.lane.b32.xlu0 %v1699, 32
        %v1707 = vpop.permute.xlu0 %1706
        %v1708 = vsel %vm1515, %v1701, %v1703
        %v1709 = vsel %vm1515, %v1705, %v1707
        %v1716 = vadd.f32 %v1520, %v1701
        %v1717 = vadd.f32 %v1521, %v1708
        %v1718 = vadd.f32 %v1522, %v1703
        %v1719 = vadd.f32 %v1523, %v1705
        %v1720 = vadd.f32 %v1524, %v1709
        %v1721 = vadd.f32 %v1525, %v1707
        %v1722 = vperm.slane %v1479, 7
        %v1723 = vperm.slane %v1480, 7
        %1726 = vrot.lane.b32.xlu0 %v1722, 16
        %v1727 = vpop.permute.xlu0 %1726
        %1728 = vrot.lane.b32.xlu0 %v1723, 16
        %v1729 = vpop.permute.xlu0 %1728
        %v1730 = vsel %vm1460, %v1727, %v1729
        %v1734 = vmul.f32 %v1473, %v1727
        %v1735 = vmul.f32 %v1461, %v1730
        %v1736 = vmul.f32 %v1476, %v1729
        %v1737 = vmul.f32 %v1474, %v1727
        %v1738 = vmul.f32 %v1462, %v1730
        %v1739 = vmul.f32 %v1477, %v1729
        %v1740 = vmul.f32 %v1475, %v1727
        %v1741 = vmul.f32 %v1463, %v1730
        %v1742 = vmul.f32 %v1478, %v1729
        %v1752 = vrot.slane %v1734, 1
        %v1753 = vrot.slane %v1737, 1
        %v1754 = vsel %vm729, %v1752, %v1753
        %v1755 = vrot.slane %v1735, 1
        %v1756 = vrot.slane %v1738, 1
        %v1757 = vsel %vm729, %v1755, %v1756
        %v1758 = vrot.slane %v1736, 1
        %v1759 = vrot.slane %v1739, 1
        %v1760 = vsel %vm729, %v1758, %v1759
        %v1761 = vrot.slane %v1740, 1
        %v1762 = vsel %vm729, %v1753, %v1761
        %v1763 = vrot.slane %v1741, 1
        %v1764 = vsel %vm729, %v1756, %v1763
        %v1765 = vrot.slane %v1742, 1
        %v1766 = vsel %vm729, %v1759, %v1765
        %1767 = vrot.lane.b32.xlu0 %v1754, 112
        %v1768 = vpop.permute.xlu0 %1767
        %1769 = vrot.lane.b32.xlu0 %v1757, 112
        %v1770 = vpop.permute.xlu0 %1769
        %1771 = vrot.lane.b32.xlu0 %v1760, 112
        %v1772 = vpop.permute.xlu0 %1771
        %1773 = vrot.lane.b32.xlu0 %v1762, 112
        %v1774 = vpop.permute.xlu0 %1773
        %1775 = vrot.lane.b32.xlu0 %v1764, 112
        %v1776 = vpop.permute.xlu0 %1775
        %1777 = vrot.lane.b32.xlu0 %v1766, 112
        %v1778 = vpop.permute.xlu0 %1777
        %1779 = vrot.lane.b32.xlu0 %v1761, 112
        %v1780 = vpop.permute.xlu0 %1779
        %1781 = vrot.lane.b32.xlu0 %v1763, 112
        %v1782 = vpop.permute.xlu0 %1781
        %1783 = vrot.lane.b32.xlu0 %v1765, 112
        %v1784 = vpop.permute.xlu0 %1783
        %v1785 = vsel %vm906, %v1768, %v1770
        %v1786 = vsel %vm906, %v1770, %v1772
        %v1787 = vsel %vm906, %v1774, %v1776
        %v1788 = vsel %vm906, %v1776, %v1778
        %v1789 = vsel %vm906, %v1780, %v1782
        %v1790 = vsel %vm906, %v1782, %v1784
        %v1797 = vadd.f32 %v1528, %v1785
        %v1798 = vadd.f32 %v1529, %v1786
        %v1799 = vadd.f32 %v1530, %v1787
        %v1800 = vadd.f32 %v1531, %v1788
        %v1801 = vadd.f32 %v1532, %v1789
        %v1802 = vadd.f32 %v1533, %v1790
        %v1803 = vperm.slane %v1481, 0
        %v1804 = vperm.slane %v1482, 0
        %1807 = vrot.lane.b32.xlu0 %v1803, 32
        %v1808 = vpop.permute.xlu0 %1807
        %1809 = vrot.lane.b32.xlu0 %v1804, 32
        %v1810 = vpop.permute.xlu0 %1809
        %v1811 = vsel %vm1515, %v1808, %v1810
        %v1815 = vmul.f32 %v1473, %v1808
        %v1816 = vmul.f32 %v1461, %v1811
        %v1817 = vmul.f32 %v1476, %v1810
        %v1818 = vmul.f32 %v1474, %v1808
        %v1819 = vmul.f32 %v1462, %v1811
        %v1820 = vmul.f32 %v1477, %v1810
        %v1821 = vmul.f32 %v1475, %v1808
        %v1822 = vmul.f32 %v1463, %v1811
        %v1823 = vmul.f32 %v1478, %v1810
        %v1833 = vrot.slane %v1815, 2
        %v1834 = vrot.slane %v1818, 2
        %v1835 = vsel %vm807, %v1833, %v1834
        %v1836 = vrot.slane %v1816, 2
        %v1837 = vrot.slane %v1819, 2
        %v1838 = vsel %vm807, %v1836, %v1837
        %v1839 = vrot.slane %v1817, 2
        %v1840 = vrot.slane %v1820, 2
        %v1841 = vsel %vm807, %v1839, %v1840
        %v1842 = vrot.slane %v1821, 2
        %v1843 = vsel %vm807, %v1834, %v1842
        %v1844 = vrot.slane %v1822, 2
        %v1845 = vsel %vm807, %v1837, %v1844
        %v1846 = vrot.slane %v1823, 2
        %v1847 = vsel %vm807, %v1840, %v1846
        %1848 = vrot.lane.b32.xlu0 %v1835, 96
        %v1849 = vpop.permute.xlu0 %1848
        %1850 = vrot.lane.b32.xlu0 %v1838, 96
        %v1851 = vpop.permute.xlu0 %1850
        %1852 = vrot.lane.b32.xlu0 %v1841, 96
        %v1853 = vpop.permute.xlu0 %1852
        %1854 = vrot.lane.b32.xlu0 %v1843, 96
        %v1855 = vpop.permute.xlu0 %1854
        %1856 = vrot.lane.b32.xlu0 %v1845, 96
        %v1857 = vpop.permute.xlu0 %1856
        %1858 = vrot.lane.b32.xlu0 %v1847, 96
        %v1859 = vpop.permute.xlu0 %1858
        %vm1860 = vcmask 785408
        %v1861 = vsel %vm1860, %v1849, %v1851
        %v1862 = vsel %vm1860, %v1851, %v1853
        %v1863 = vsel %vm1860, %v1855, %v1857
        %v1864 = vsel %vm1860, %v1857, %v1859
        %v1869 = vadd.f32 %v1599, %v1861
        %v1870 = vadd.f32 %v1600, %v1862
        %v1871 = vadd.f32 %v1601, %v1863
        %v1872 = vadd.f32 %v1602, %v1864
        %1879 = vrot.lane.b32.xlu0 %v1670, 112
        %v1880 = vpop.permute.xlu0 %1879
        %1881 = vrot.lane.b32.xlu0 %v1671, 112
        %v1882 = vpop.permute.xlu0 %1881
        %1883 = vrot.lane.b32.xlu0 %v1672, 112
        %v1884 = vpop.permute.xlu0 %1883
        %1885 = vrot.lane.b32.xlu0 %v1673, 112
        %v1886 = vpop.permute.xlu0 %1885
        %1887 = vrot.lane.b32.xlu0 %v1674, 112
        %v1888 = vpop.permute.xlu0 %1887
        %1889 = vrot.lane.b32.xlu0 %v1675, 112
        %v1890 = vpop.permute.xlu0 %1889
        %v1891 = vsel %vm906, %v1880, %v1882
        %v1892 = vsel %vm906, %v1882, %v1884
        %v1893 = vsel %vm906, %v1886, %v1888
        %v1894 = vsel %vm906, %v1888, %v1890
        %v1899 = vadd.f32 %v1869, %v1891
        %v1900 = vadd.f32 %v1870, %v1892
        %v1901 = vadd.f32 %v1871, %v1893
        %v1902 = vadd.f32 %v1872, %v1894
        %v1909 = vrot.slane %v1797, 1
        %v1910 = vrot.slane %v1799, 1
        %v1911 = vsel %vm729, %v1909, %v1910
        %v1912 = vrot.slane %v1798, 1
        %v1913 = vrot.slane %v1800, 1
        %v1914 = vsel %vm729, %v1912, %v1913
        %v1915 = vrot.slane %v1801, 1
        %v1916 = vsel %vm729, %v1910, %v1915
        %v1917 = vrot.slane %v1802, 1
        %v1918 = vsel %vm729, %v1913, %v1917
        %1919 = vrot.lane.b32.xlu0 %v1911, 32
        %v1920 = vpop.permute.xlu0 %1919
        %1921 = vrot.lane.b32.xlu0 %v1914, 32
        %v1922 = vpop.permute.xlu0 %1921
        %1923 = vrot.lane.b32.xlu0 %v1916, 32
        %v1924 = vpop.permute.xlu0 %1923
        %1925 = vrot.lane.b32.xlu0 %v1918, 32
        %v1926 = vpop.permute.xlu0 %1925
        %v1927 = vsel %vm1515, %v1920, %v1922
        %v1928 = vsel %vm1515, %v1924, %v1926
        %v1935 = vadd.f32 %v1716, %v1920
        %v1936 = vadd.f32 %v1717, %v1927
        %v1937 = vadd.f32 %v1718, %v1922
        %v1938 = vadd.f32 %v1719, %v1924
        %v1939 = vadd.f32 %v1720, %v1928
        %v1940 = vadd.f32 %v1721, %v1926
        %1947 = vrot.lane.b32.xlu0 %v1935, 96
        %v1948 = vpop.permute.xlu0 %1947
        %1949 = vrot.lane.b32.xlu0 %v1936, 96
        %v1950 = vpop.permute.xlu0 %1949
        %1951 = vrot.lane.b32.xlu0 %v1937, 96
        %v1952 = vpop.permute.xlu0 %1951
        %1953 = vrot.lane.b32.xlu0 %v1938, 96
        %v1954 = vpop.permute.xlu0 %1953
        %1955 = vrot.lane.b32.xlu0 %v1939, 96
        %v1956 = vpop.permute.xlu0 %1955
        %1957 = vrot.lane.b32.xlu0 %v1940, 96
        %v1958 = vpop.permute.xlu0 %1957
        %v1959 = vsel %vm1860, %v1948, %v1950
        %v1960 = vsel %vm1860, %v1950, %v1952
        %v1961 = vsel %vm1860, %v1954, %v1956
        %v1962 = vsel %vm1860, %v1956, %v1958
        %v1967 = vadd.f32 %v1899, %v1959
        %v1968 = vadd.f32 %v1900, %v1960
        %v1969 = vadd.f32 %v1901, %v1961
        %v1970 = vadd.f32 %v1902, %v1962
        %v1971 = vld [vmem:[%s12] sm:$0xff]
        %v1972 = vld [vmem:[%s12 + $0x8] sm:$0xff]
        %v1973 = vld [vmem:[%s12 + $0x10] sm:$0xff]
        %v1974 = vld [vmem:[%s12 + $0x18] sm:$0xff]
        %v1975 = vld [vmem:[%s12 + $0x20] sm:$0xff]
        %v1976 = vld [vmem:[%s12 + $0x28] sm:$0xff]
        %v1977 = vld [vmem:[%s12 + $0x30] sm:$0xff]
        %v1978 = vld [vmem:[%s12 + $0x38] sm:$0xff]
        %v1979 = vld [vmem:[%s12 + $0x40] sm:$0xff]
        %v1980 = vld [vmem:[%s12 + $0x48] sm:$0xff]
        %v1981 = vld [vmem:[%s12 + $0x50] sm:$0xff]
        %v1982 = vld [vmem:[%s12 + $0x58] sm:$0xff]
        %v1983 = vld [vmem:[%s12 + $0x60] sm:$0xff]
        %v1984 = vld [vmem:[%s12 + $0x68] sm:$0xff]
        %v1985 = vld [vmem:[%s12 + $0x70] sm:$0xff]
        %v1986 = vld [vmem:[%s12 + $0x78] sm:$0xff]
        %v1987 = vld [vmem:[%s12 + $0x80] sm:$0xff]
        %v1988 = vld [vmem:[%s12 + $0x88] sm:$0xff]
        %v1989 = vld [vmem:[%s12 + $0x90] sm:$0xff]
        %v1990 = vld [vmem:[%s12 + $0x98] sm:$0xff]
        %v1991 = vld [vmem:[%s12 + $0xa0] sm:$0xff]
        %v1992 = vld [vmem:[%s12 + $0xa8] sm:$0xff]
        %v1993 = vld [vmem:[%s12 + $0xb0] sm:$0xff]
        %v1994 = vld [vmem:[%s12 + $0xb8] sm:$0xff]
        %v1995 = vld [vmem:[%s12 + $0xc0] sm:$0xff]
        %v1996 = vld [vmem:[%s12 + $0xc8] sm:$0xff]
        %v1997 = vld [vmem:[%s12 + $0xd0] sm:$0xff]
        %v1998 = vld [vmem:[%s12 + $0xd8] sm:$0xff]
        %v1999 = vld [vmem:[%s12 + $0xe0] sm:$0xff]
        %v2000 = vld [vmem:[%s12 + $0xe8] sm:$0xff]
        %v2001 = vld [vmem:[%s12 + $0xf0] sm:$0xff]
        %v2002 = vld [vmem:[%s12 + $0xf8] sm:$0xff]
        %v2003 = vld [vmem:[%s13] sm:$0xf]
        %v2004 = vld [vmem:[%s14] sm:$0x3]
        %v2005 = vld [vmem:[%s15] sm:$0x3]
        %v2006 = vadd.f32 %v1967, %v1969
        %v2007 = vrot.slane %v2006, 4
        %v2008 = vadd.f32 %v2006, %v2007
        %v2009 = vrot.slane %v2008, 2
        %v2010 = vadd.f32 %v2008, %v2009
        %v2011 = vrot.slane %v2010, 1
        %v2012 = vadd.f32 %v2010, %v2011
        %v2013 = vadd.f32 %v1968, %v1970
        %v2014 = vrot.slane %v2013, 4
        %v2015 = vadd.f32 %v2013, %v2014
        %v2016 = vrot.slane %v2015, 2
        %v2017 = vadd.f32 %v2015, %v2016
        %v2018 = vrot.slane %v2017, 1
        %v2019 = vadd.f32 %v2017, %v2018
        %v2020 = vmul.f32 %v1967, %v1967
        %v2021 = vmul.f32 %v1968, %v1968
        %v2022 = vmul.f32 %v1969, %v1969
        %v2023 = vmul.f32 %v1970, %v1970
        %v2024 = vadd.f32 %v2020, %v2022
        %v2025 = vrot.slane %v2024, 4
        %v2026 = vadd.f32 %v2024, %v2025
        %v2027 = vrot.slane %v2026, 2
        %v2028 = vadd.f32 %v2026, %v2027
        %v2029 = vrot.slane %v2028, 1
        %v2030 = vadd.f32 %v2028, %v2029
        %v2031 = vadd.f32 %v2021, %v2023
        %v2032 = vrot.slane %v2031, 4
        %v2033 = vadd.f32 %v2031, %v2032
        %v2034 = vrot.slane %v2033, 2
        %v2035 = vadd.f32 %v2033, %v2034
        %v2036 = vrot.slane %v2035, 1
        %v2037 = vadd.f32 %v2035, %v2036
        %v2038 = vsel %vm659, %v2012, %v2030
        %v2039 = vsel %vm659, %v2019, %v2037
        %2040 = vmatpush.msra.mxu0 %v1986
        %2041 = vmatpush.msra.mxu0 %v1985
        %2042 = vmatpush.msra.mxu0 %v1984
        %2043 = vmatpush.msra.mxu0 %v1983
        %2044 = vmatpush.msra.mxu0 %v1982
        %2045 = vmatpush.msra.mxu0 %v1981
        %2046 = vmatpush.msra.mxu0 %v1980
        %2047 = vmatpush.msra.mxu0 %v1979
        %2048 = vmatpush.msra.mxu0 %v1978
        %2049 = vmatpush.msra.mxu0 %v1977
        %2050 = vmatpush.msra.mxu0 %v1976
        %2051 = vmatpush.msra.mxu0 %v1975
        %2052 = vmatpush.msra.mxu0 %v1974
        %2053 = vmatpush.msra.mxu0 %v1973
        %2054 = vmatpush.msra.mxu0 %v1972
        %2055 = vmatpush.msra.mxu0 %v1971
        %2056 = vmatmul.f32.gmra.mxu0 %v2038
        %v2057 = vpop.f32.mrf.mxu0
        %v2058 = vadd.f32 0.0, %v2057
        %2059 = vdwg.mxu0
        %2060 = vmatpush.msra.mxu0 %v2002
        %2061 = vmatpush.msra.mxu0 %v2001
        %2062 = vmatpush.msra.mxu0 %v2000
        %2063 = vmatpush.msra.mxu0 %v1999
        %2064 = vmatpush.msra.mxu0 %v1998
        %2065 = vmatpush.msra.mxu0 %v1997
        %2066 = vmatpush.msra.mxu0 %v1996
        %2067 = vmatpush.msra.mxu0 %v1995
        %2068 = vmatpush.msra.mxu0 %v1994
        %2069 = vmatpush.msra.mxu0 %v1993
        %2070 = vmatpush.msra.mxu0 %v1992
        %2071 = vmatpush.msra.mxu0 %v1991
        %2072 = vmatpush.msra.mxu0 %v1990
        %2073 = vmatpush.msra.mxu0 %v1989
        %2074 = vmatpush.msra.mxu0 %v1988
        %2075 = vmatpush.msra.mxu0 %v1987
        %2076 = vmatmul.f32.gmra.mxu0 %v2039
        %v2077 = vpop.f32.mrf.mxu0
        %v2078 = vadd.f32 %v2058, %v2077
        %2079 = vdwg.mxu0
        %v2080 = vmul.f32 %v2078, 0.00048828125
        %2082 = vst [vmem:[#allocation1] ss:$4 sm:$0xff] %v2003
        %v2083 = vld.sshfl [vmem:[#allocation1] sm:$0xff pattern:$0x73625140]
        %v2084 = vld.sshfl [vmem:[#allocation1 + $0x8] sm:$0xff pattern:$0x73625140]
        %v2086 = vsel %vm1287, %v2080, 0
        %v2088 = vsel %vm1291, %v2083, 0
        %v2090 = vsel %vm1291, %v2084, 0
        %2092 = vmatpush.msra.mxu0 0.0
        %2093 = vmatpush.msra.mxu0 0.0
        %2094 = vmatpush.msra.mxu0 0.0
        %2095 = vmatpush.msra.mxu0 0.0
        %2096 = vmatpush.msra.mxu0 0.0
        %2097 = vmatpush.msra.mxu0 0.0
        %2098 = vmatpush.msra.mxu0 0.0
        %2099 = vmatpush.msra.mxu0 0.0
        %2100 = vmatpush.msra.mxu0 0.0
        %2101 = vmatpush.msra.mxu0 0.0
        %2102 = vmatpush.msra.mxu0 0.0
        %2103 = vmatpush.msra.mxu0 0.0
        %2104 = vmatpush.msra.mxu0 0.0
        %2105 = vmatpush.msra.mxu0 0.0
        %2106 = vmatpush.msra.mxu0 0.0
        %2107 = vmatpush.msra.mxu0 %v2088
        %2108 = vmatmul.f32.gmra.mxu0 %v2086
        %v2109 = vpop.f32.mrf.mxu0
        %v2110 = vadd.f32 0.0, %v2109
        %2111 = vdwg.mxu0
        %2112 = vmatpush.msra.mxu0 0.0
        %2113 = vmatpush.msra.mxu0 0.0
        %2114 = vmatpush.msra.mxu0 0.0
        %2115 = vmatpush.msra.mxu0 0.0
        %2116 = vmatpush.msra.mxu0 0.0
        %2117 = vmatpush.msra.mxu0 0.0
        %2118 = vmatpush.msra.mxu0 0.0
        %2119 = vmatpush.msra.mxu0 0.0
        %2120 = vmatpush.msra.mxu0 0.0
        %2121 = vmatpush.msra.mxu0 0.0
        %2122 = vmatpush.msra.mxu0 0.0
        %2123 = vmatpush.msra.mxu0 0.0
        %2124 = vmatpush.msra.mxu0 0.0
        %2125 = vmatpush.msra.mxu0 0.0
        %2126 = vmatpush.msra.mxu0 0.0
        %2127 = vmatpush.msra.mxu0 %v2090
        %2128 = vmatmul.f32.gmra.mxu0 %v2086
        %v2129 = vpop.f32.mrf.mxu0
        %v2130 = vadd.f32 0.0, %v2129
        %2131 = vdwg.mxu0
        %v2132 = vmul.f32 %v2110, %v2110
        %v2133 = vmul.f32 %v2130, %v2130
        %v2136 = vrot.slane %v2132, 7
        %v2137 = vrot.slane %v2133, 7
        %v2140 = vsub.f32 %v2110, %v2136
        %v2141 = vsub.f32 %v2130, %v2137
        %v2142 = vmax.f32 %v2140, 0.0
        %v2143 = vmax.f32 %v2141, 0.0
        %v2144 = vadd.f32 %v2142, 1e-05
        %v2145 = vadd.f32 %v2143, 1e-05
        %v2146 = vrsqrt.pop %v2144
        %v2147 = vmul.f32 %v2146, %v2144
        %v2148 = vmul.f32 %v2147, %v2146
        %v2149 = vmul.f32 0.5, %v2148
        %v2150 = vsub.f32 1.5, %v2149
        %v2151 = vmul.f32 %v2146, %v2150
        %vm2152 = vweird.f32 %v2144
        %vm2153 = vweird.f32 %v2146
        %vm2154 = vmor %vm2152, %vm2153
        %v2155 = vsel %vm2154, %v2146, %v2151
        %v2156 = vrsqrt.pop %v2145
        %v2157 = vmul.f32 %v2156, %v2145
        %v2158 = vmul.f32 %v2157, %v2156
        %v2159 = vmul.f32 0.5, %v2158
        %v2160 = vsub.f32 1.5, %v2159
        %v2161 = vmul.f32 %v2156, %v2160
        %vm2162 = vweird.f32 %v2145
        %vm2163 = vweird.f32 %v2156
        %vm2164 = vmor %vm2162, %vm2163
        %v2165 = vsel %vm2164, %v2156, %v2161
        %v2167 = vperm.slane %v2004, 0
        %v2168 = vperm.slane %v2004, 1
        %v2171 = vmul.f32 %v2155, %v2167
        %v2172 = vmul.f32 %v2165, %v2168
        %v2175 = vrot.slane %v2171, 1
        %v2176 = vrot.slane %v2172, 1
        %v2179 = vmul.f32 %v2110, %v2175
        %v2180 = vmul.f32 %v2130, %v2176
        %v2183 = vrot.slane %v2180, 7
        %v2184 = vsel %vm659, %v2179, %v2183
        %v2186 = vsub.f32 %v2005, %v2184
        %v2187 = vperm.slane %v2171, 1
        %v2188 = vperm.slane %v2172, 1
        %v2189 = vmul.f32 %v1967, %v2187
        %v2190 = vmul.f32 %v1968, %v2188
        %v2191 = vmul.f32 %v1969, %v2187
        %v2192 = vmul.f32 %v1970, %v2188
        %v2194 = vperm.slane %v2186, 0
        %v2195 = vperm.slane %v2186, 1
        %v2198 = vadd.f32 %v2189, %v2194
        %v2199 = vadd.f32 %v2190, %v2195
        %v2200 = vadd.f32 %v2191, %v2194
        %v2201 = vadd.f32 %v2192, %v2195
        %v2202 = vmul.f32 %v2198, 0.5
        %v2203 = vmul.f32 %v2199, 0.5
        %v2204 = vmul.f32 %v2200, 0.5
        %v2205 = vmul.f32 %v2201, 0.5
        %v2206 = vtanh.pop %v2202
        %v2207 = vtanh.pop %v2203
        %v2208 = vtanh.pop %v2204
        %v2209 = vtanh.pop %v2205
        %v2210 = vmul.f32 %v2206, 0.5
        %v2211 = vmul.f32 %v2207, 0.5
        %v2212 = vmul.f32 %v2208, 0.5
        %v2213 = vmul.f32 %v2209, 0.5
        %v2214 = vadd.f32 %v2210, 0.5
        %v2215 = vadd.f32 %v2211, 0.5
        %v2216 = vadd.f32 %v2212, 0.5
        %v2217 = vadd.f32 %v2213, 0.5
        %v2218 = vmul.f32 %v2198, %v2214
        %v2219 = vmul.f32 %v2199, %v2215
        %v2220 = vmul.f32 %v2200, %v2216
        %v2221 = vmul.f32 %v2201, %v2217
        %v2222 = vld [vmem:[%s16] sm:$0xff]
        %v2223 = vld [vmem:[%s16 + $0x8] sm:$0xff]
        %v2224 = vld [vmem:[%s16 + $0x10] sm:$0xff]
        %v2225 = vld [vmem:[%s16 + $0x18] sm:$0xff]
        %v2226 = vld [vmem:[%s16 + $0x20] sm:$0xff]
        %v2227 = vld [vmem:[%s16 + $0x28] sm:$0xff]
        %v2228 = vld [vmem:[%s16 + $0x30] sm:$0xff]
        %v2229 = vld [vmem:[%s16 + $0x38] sm:$0xff]
        %v2230 = vld [vmem:[%s16 + $0x40] sm:$0xff]
        %v2231 = vld [vmem:[%s16 + $0x48] sm:$0xff]
        %v2232 = vld [vmem:[%s16 + $0x50] sm:$0xff]
        %v2233 = vld [vmem:[%s16 + $0x58] sm:$0xff]
        %v2234 = vld [vmem:[%s16 + $0x60] sm:$0xff]
        %v2235 = vld [vmem:[%s16 + $0x68] sm:$0xff]
        %v2236 = vld [vmem:[%s16 + $0x70] sm:$0xff]
        %v2237 = vld [vmem:[%s16 + $0x78] sm:$0xff]
        %v2238 = vld [vmem:[%s16 + $0x80] sm:$0xff]
        %v2239 = vld [vmem:[%s16 + $0x88] sm:$0xff]
        %v2240 = vld [vmem:[%s16 + $0x90] sm:$0xff]
        %v2241 = vld [vmem:[%s16 + $0x98] sm:$0xff]
        %v2242 = vld [vmem:[%s16 + $0xa0] sm:$0xff]
        %v2243 = vld [vmem:[%s16 + $0xa8] sm:$0xff]
        %v2244 = vld [vmem:[%s16 + $0xb0] sm:$0xff]
        %v2245 = vld [vmem:[%s16 + $0xb8] sm:$0xff]
        %v2246 = vld [vmem:[%s16 + $0xc0] sm:$0xff]
        %v2247 = vld [vmem:[%s16 + $0xc8] sm:$0xff]
        %v2248 = vld [vmem:[%s16 + $0xd0] sm:$0xff]
        %v2249 = vld [vmem:[%s16 + $0xd8] sm:$0xff]
        %v2250 = vld [vmem:[%s16 + $0xe0] sm:$0xff]
        %v2251 = vld [vmem:[%s16 + $0xe8] sm:$0xff]
        %v2252 = vld [vmem:[%s16 + $0xf0] sm:$0xff]
        %v2253 = vld [vmem:[%s16 + $0xf8] sm:$0xff]
        %2254 = vmatpush.msra.mxu0 %v2237
        %2255 = vmatpush.msra.mxu0 %v2236
        %2256 = vmatpush.msra.mxu0 %v2235
        %2257 = vmatpush.msra.mxu0 %v2234
        %2258 = vmatpush.msra.mxu0 %v2233
        %2259 = vmatpush.msra.mxu0 %v2232
        %2260 = vmatpush.msra.mxu0 %v2231
        %2261 = vmatpush.msra.mxu0 %v2230
        %2262 = vmatpush.msra.mxu0 %v2229
        %2263 = vmatpush.msra.mxu0 %v2228
        %2264 = vmatpush.msra.mxu0 %v2227
        %2265 = vmatpush.msra.mxu0 %v2226
        %2266 = vmatpush.msra.mxu0 %v2225
        %2267 = vmatpush.msra.mxu0 %v2224
        %2268 = vmatpush.msra.mxu0 %v2223
        %2269 = vmatpush.msra.mxu0 %v2222
        %2270 = vmatmul.f32.gmra.mxu0 %v2218
        %v2271 = vpop.f32.mrf.mxu0
        %v2272 = vadd.f32 0.0, %v2271
        %2273 = vmatmul.f32.gmra.mxu0 %v2220
        %v2274 = vpop.f32.mrf.mxu0
        %v2275 = vadd.f32 0.0, %v2274
        %2276 = vdwg.mxu0
        %2277 = vmatpush.msra.mxu0 %v2253
        %2278 = vmatpush.msra.mxu0 %v2252
        %2279 = vmatpush.msra.mxu0 %v2251
        %2280 = vmatpush.msra.mxu0 %v2250
        %2281 = vmatpush.msra.mxu0 %v2249
        %2282 = vmatpush.msra.mxu0 %v2248
        %2283 = vmatpush.msra.mxu0 %v2247
        %2284 = vmatpush.msra.mxu0 %v2246
        %2285 = vmatpush.msra.mxu0 %v2245
        %2286 = vmatpush.msra.mxu0 %v2244
        %2287 = vmatpush.msra.mxu0 %v2243
        %2288 = vmatpush.msra.mxu0 %v2242
        %2289 = vmatpush.msra.mxu0 %v2241
        %2290 = vmatpush.msra.mxu0 %v2240
        %2291 = vmatpush.msra.mxu0 %v2239
        %2292 = vmatpush.msra.mxu0 %v2238
        %2293 = vmatmul.f32.gmra.mxu0 %v2219
        %v2294 = vpop.f32.mrf.mxu0
        %v2295 = vadd.f32 %v2272, %v2294
        %2296 = vmatmul.f32.gmra.mxu0 %v2221
        %v2297 = vpop.f32.mrf.mxu0
        %v2298 = vadd.f32 %v2275, %v2297
        %2299 = vdwg.mxu0
        %v2300 = vld [vmem:[%s17] sm:$0xff]
        %v2301 = vld [vmem:[%s17 + $0x8] sm:$0xff]
        %v2302 = vld [vmem:[%s17 + $0x10] sm:$0xff]
        %v2303 = vld [vmem:[%s17 + $0x18] sm:$0xff]
        %v2304 = vld [vmem:[%s17 + $0x20] sm:$0xff]
        %v2305 = vld [vmem:[%s17 + $0x28] sm:$0xff]
        %v2306 = vld [vmem:[%s17 + $0x30] sm:$0xff]
        %v2307 = vld [vmem:[%s17 + $0x38] sm:$0xff]
        %v2308 = vld [vmem:[%s17 + $0x40] sm:$0xff]
        %v2309 = vld [vmem:[%s17 + $0x48] sm:$0xff]
        %v2310 = vld [vmem:[%s17 + $0x50] sm:$0xff]
        %v2311 = vld [vmem:[%s17 + $0x58] sm:$0xff]
        %v2312 = vld [vmem:[%s17 + $0x60] sm:$0xff]
        %v2313 = vld [vmem:[%s17 + $0x68] sm:$0xff]
        %v2314 = vld [vmem:[%s17 + $0x70] sm:$0xff]
        %v2315 = vld [vmem:[%s17 + $0x78] sm:$0xff]
        %v2316 = vld [vmem:[%s18] sm:$0x1]
        %v2317 = vld [vmem:[%s19] sm:$0x1]
        %v2318 = vld [vmem:[%s20] sm:$0x1]
        %v2319 = vadd.f32 %v2295, %v2298
        %v2320 = vrot.slane %v2319, 4
        %v2321 = vadd.f32 %v2319, %v2320
        %v2322 = vrot.slane %v2321, 2
        %v2323 = vadd.f32 %v2321, %v2322
        %v2324 = vrot.slane %v2323, 1
        %v2325 = vadd.f32 %v2323, %v2324
        %v2326 = vmul.f32 %v2295, %v2295
        %v2327 = vmul.f32 %v2298, %v2298
        %v2328 = vadd.f32 %v2326, %v2327
        %v2329 = vrot.slane %v2328, 4
        %v2330 = vadd.f32 %v2328, %v2329
        %v2331 = vrot.slane %v2330, 2
        %v2332 = vadd.f32 %v2330, %v2331
        %v2333 = vrot.slane %v2332, 1
        %v2334 = vadd.f32 %v2332, %v2333
        %v2335 = vsel %vm659, %v2325, %v2334
        %2336 = vmatpush.msra.mxu0 %v2315
        %2337 = vmatpush.msra.mxu0 %v2314
        %2338 = vmatpush.msra.mxu0 %v2313
        %2339 = vmatpush.msra.mxu0 %v2312
        %2340 = vmatpush.msra.mxu0 %v2311
        %2341 = vmatpush.msra.mxu0 %v2310
        %2342 = vmatpush.msra.mxu0 %v2309
        %2343 = vmatpush.msra.mxu0 %v2308
        %2344 = vmatpush.msra.mxu0 %v2307
        %2345 = vmatpush.msra.mxu0 %v2306
        %2346 = vmatpush.msra.mxu0 %v2305
        %2347 = vmatpush.msra.mxu0 %v2304
        %2348 = vmatpush.msra.mxu0 %v2303
        %2349 = vmatpush.msra.mxu0 %v2302
        %2350 = vmatpush.msra.mxu0 %v2301
        %2351 = vmatpush.msra.mxu0 %v2300
        %2352 = vmatmul.f32.gmra.mxu0 %v2335
        %v2353 = vpop.f32.mrf.mxu0
        %v2354 = vadd.f32 0.0, %v2353
        %2355 = vdwg.mxu0
        %v2356 = vmul.f32 %v2354, 0.00048828125
        %v2358 = vsel %vm1024, %v2356, 0
        %v2361 = vsel %vm659, %v2316, 0
        %2363 = vmatpush.msra.mxu0 0.0
        %2364 = vmatpush.msra.mxu0 0.0
        %2365 = vmatpush.msra.mxu0 0.0
        %2366 = vmatpush.msra.mxu0 0.0
        %2367 = vmatpush.msra.mxu0 0.0
        %2368 = vmatpush.msra.mxu0 0.0
        %2369 = vmatpush.msra.mxu0 0.0
        %2370 = vmatpush.msra.mxu0 0.0
        %2371 = vmatpush.msra.mxu0 0.0
        %2372 = vmatpush.msra.mxu0 0.0
        %2373 = vmatpush.msra.mxu0 0.0
        %2374 = vmatpush.msra.mxu0 0.0
        %2375 = vmatpush.msra.mxu0 0.0
        %2376 = vmatpush.msra.mxu0 0.0
        %2377 = vmatpush.msra.mxu0 0.0
        %2378 = vmatpush.msra.mxu0 %v2361
        %2379 = vmatmul.f32.gmra.mxu0 %v2358
        %v2380 = vpop.f32.mrf.mxu0
        %v2381 = vadd.f32 0.0, %v2380
        %2382 = vdwg.mxu0
        %v2383 = vmul.f32 %v2381, %v2381
        %v2385 = vrot.slane %v2383, 7
        %v2387 = vsub.f32 %v2381, %v2385
        %v2388 = vmax.f32 %v2387, 0.0
        %v2389 = vadd.f32 %v2388, 1e-05
        %v2390 = vrsqrt.pop %v2389
        %v2391 = vmul.f32 %v2390, %v2389
        %v2392 = vmul.f32 %v2391, %v2390
        %v2393 = vmul.f32 0.5, %v2392
        %v2394 = vsub.f32 1.5, %v2393
        %v2395 = vmul.f32 %v2390, %v2394
        %vm2396 = vweird.f32 %v2389
        %vm2397 = vweird.f32 %v2390
        %vm2398 = vmor %vm2396, %vm2397
        %v2399 = vsel %vm2398, %v2390, %v2395
        %v2401 = vperm.slane %v2317, 0
        %v2403 = vmul.f32 %v2399, %v2401
        %v2405 = vrot.slane %v2403, 1
        %v2407 = vmul.f32 %v2381, %v2405
        %v2408 = vsub.f32 %v2318, %v2407
        %v2409 = vperm.slane %v2403, 1
        %v2410 = vmul.f32 %v2295, %v2409
        %v2411 = vmul.f32 %v2298, %v2409
        %v2413 = vperm.slane %v2408, 0
        %v2415 = vadd.f32 %v2410, %v2413
        %v2416 = vadd.f32 %v2411, %v2413
        %v2417 = vmul.f32 %v2415, 0.5
        %v2418 = vmul.f32 %v2416, 0.5
        %v2419 = vtanh.pop %v2417
        %v2420 = vtanh.pop %v2418
        %v2421 = vmul.f32 %v2419, 0.5
        %v2422 = vmul.f32 %v2420, 0.5
        %v2423 = vadd.f32 %v2421, 0.5
        %v2424 = vadd.f32 %v2422, 0.5
        %v2425 = vmul.f32 %v2415, %v2423
        %v2426 = vmul.f32 %v2416, %v2424
        %2427 = vst [vmem:[%s649] sm:$0xff] %v2425
        %2428 = vst [vmem:[%s649 + $0x8] sm:$0xff] %v2426
        %s2429 = sand.u32 %s489, 1
        %s2430 = scalar_lea.sflag [#allocation3], %s2429
        %s2431 = sand.u32 %s489, 1
        %s2432 = smul.addr %s2431, 16
        %s2433 = scalar_lea.vmem [#allocation2], %s2432
        // Predicated region
        $region105: #{tpu_custom_call.1} parent=103 // pred_check
          %p2434 = pneg %p499
        $region106: #{tpu_custom_call.1} parent=103 // pred_check_branch
          %2436 = sbr.rel (%p2434) target = $region108
        $region107: #{tpu_custom_call.1} parent=103 // pred_region
          %2438 = vsyncadd %s2430, 0
          %s2439 = smul.addr %s35, 2
          %s2440 = smul.addr %s2439, 8
          %s2441 = scalar_lea.hbm %s21, %s2440
          %s2442 = sshll.u32 %s2433, 4
          %s2443 = int_to_ptr.vmem [resolvable:$true] %s2442
          %s2444 = sshll.u32 %s2441, 4
          %s2445 = int_to_ptr.hbm [resolvable:$true] %s2444
          %2450 = dma.vmem_to_hbm [thread:$0]  %s2443, 256, %s2445, %s2430, 128, 128, 8
        $region108: #{tpu_custom_call.1} parent=103 // pred_fallthru
          _
      $region104: #{tpu_custom_call.1} parent=5 // pred_fallthru
        _
      %p2451 = scmp.le.s32.totalorder 2, %s30
      // Predicated region
      $region109: #{tpu_custom_call.1} parent=5 // pred_check
        %p2452 = pneg %p2451
      $region110: #{tpu_custom_call.1} parent=5 // pred_check_branch
        %2454 = sbr.rel (%p2452) target = $region112
      $region111: #{tpu_custom_call.1} parent=5 // pred_region
        %s2455 = ssub.s32 %s30, 2
        // Predicated region
        $region113: #{tpu_custom_call.1} parent=111 // pred_check
          %p2456 = pneg %p505
        $region114: #{tpu_custom_call.1} parent=111 // pred_check_branch
          %2458 = sbr.rel (%p2456) target = $region116
        $region115: #{tpu_custom_call.1} parent=111 // pred_region
          %s2459 = sand.u32 %s490, 1
          %s2460 = scalar_lea.sflag [#allocation3], %s2459
          %s2461 = sand.u32 %s490, 1
          %s2462 = smul.addr %s2461, 16
          %s2463 = scalar_lea.vmem [#allocation2], %s2462
          %2465 = dma.done %s2460, 256
        $region116: #{tpu_custom_call.1} parent=111 // pred_fallthru
          _
      $region112: #{tpu_custom_call.1} parent=5 // pred_fallthru
        _
    $region6: #{tpu_custom_call.1} parent=1 // loop_footer
      %s34 = sadd.s32 1, %s30
    $region7: #{tpu_custom_call.1} parent=1 // loop_footer_branch
      %29 = sbr.rel target = $region3
    $region8: #{tpu_custom_call.1} parent=1 // loop_exit
      _
    %2466 = vsyncpa [#allocation3], 1
    %s2467 = scalar_lea.sflag [#allocation3], 1
    %2468 = vsyncpa %s2467, 1

// kernel: tpu_custom_call.1
$region0: #{tpu_custom_call.1}
  #allocation0 [shape = 'u32[]', space=smem, size = 0x4, offset = 0x4, fixed_abs, tag = 'smem constant byte address 0x4 - core index']
  #allocation1 [shape = 'u32[72,128]{1,0:T(1,128)}', space=vmem, size = 0x9000, scoped, tag = 'internal scratch']
  %s0 = inlined_call_operand.vmem [shape: f32[2,16,128], index: 0, kind: input, shape index: {}]
  %s1 = inlined_call_operand.vmem [shape: f32[9,128], index: 1, kind: input, shape index: {}]
  %s2 = inlined_call_operand.vmem [shape: f32[128,1], index: 2, kind: input, shape index: {}]
  %s3 = inlined_call_operand.vmem [shape: f32[1,128], index: 3, kind: input, shape index: {}]
  %s4 = inlined_call_operand.vmem [shape: f32[1,128], index: 4, kind: input, shape index: {}]
  %s5 = inlined_call_operand.vmem [shape: f32[1,128], index: 5, kind: input, shape index: {}]
  %s6 = inlined_call_operand.vmem [shape: f32[128,256], index: 6, kind: input, shape index: {}]
  %s7 = inlined_call_operand.vmem [shape: f32[256,2], index: 7, kind: input, shape index: {}]
  %s8 = inlined_call_operand.vmem [shape: f32[2,256], index: 8, kind: input, shape index: {}]
  %s9 = inlined_call_operand.vmem [shape: f32[1,256], index: 9, kind: input, shape index: {}]
  %s10 = inlined_call_operand.vmem [shape: f32[1,256], index: 10, kind: input, shape index: {}]
  %s11 = inlined_call_operand.vmem [shape: f32[9,256], index: 11, kind: input, shape index: {}]
  %s12 = inlined_call_operand.vmem [shape: f32[256,2], index: 12, kind: input, shape index: {}]
  %s13 = inlined_call_operand.vmem [shape: f32[2,256], index: 13, kind: input, shape index: {}]
  %s14 = inlined_call_operand.vmem [shape: f32[1,256], index: 14, kind: input, shape index: {}]
  %s15 = inlined_call_operand.vmem [shape: f32[1,256], index: 15, kind: input, shape index: {}]
  %s16 = inlined_call_operand.vmem [shape: f32[256,128], index: 16, kind: input, shape index: {}]
  %s17 = inlined_call_operand.vmem [shape: f32[128,1], index: 17, kind: input, shape index: {}]
  %s18 = inlined_call_operand.vmem [shape: f32[1,128], index: 18, kind: input, shape index: {}]
  %s19 = inlined_call_operand.vmem [shape: f32[1,128], index: 19, kind: input, shape index: {}]
  %s20 = inlined_call_operand.vmem [shape: f32[1,128], index: 20, kind: input, shape index: {}]
  %s21 = inlined_call_operand.hbm [shape: f32[2,16,128], index: 21, kind: output, shape index: {}]
  %s22 = sld [smem:[#allocation0]]
  $region117: #{tpu_custom_call.1} parent=0
    _
  %s24 = ssub.s32 1, %s22
  %s25 = scalar_select 0, %s24, %s22
  $region1: #{tpu_custom_call.1} parent=0
    #allocation2 [shape = 'u8[16384]{0}', space=vmem, size = 0x4000, scoped, tag = 'output window, operand 0']
    #allocation3 [shape = 's32[2]{0}', space=sflag, size = 0x8, scoped, tag = 'scoped memory for tpu_custom_call.1']
    %26 = vsyncpa [#allocation3], 0
    %s27 = scalar_lea.sflag [#allocation3], 1
    %28 = vsyncpa %s27, 0
    loop: start=0, step=1, limit=4
    $region2: #{tpu_custom_call.1} parent=1 // loop_pre_header
      _
    $region3: #{tpu_custom_call.1} parent=1 // loop_header
      %s30 = sphi 0, %s34
      %p31 = scmp.ge.s32.totalorder %s30, 4
      %s40 = sphi 0, %s42
      %s43 = sphi 0, %s40
      %s44 = sphi 0, %s43
      %s60 = sphi 0, %s44
      %s64 = sphi 0, %s64
      %s66 = sphi 0, %s64
      %s67 = sphi 0, %s66
      %s81 = sphi 0, %s67
      %s85 = sphi 0, %s85
      %s87 = sphi 0, %s85
      %s88 = sphi 0, %s87
      %s102 = sphi 0, %s88
      %s106 = sphi 0, %s106
      %s108 = sphi 0, %s106
      %s109 = sphi 0, %s108
      %s123 = sphi 0, %s109
      %s127 = sphi 0, %s127
      %s129 = sphi 0, %s127
      %s130 = sphi 0, %s129
      %s144 = sphi 0, %s130
      %s148 = sphi 0, %s148
      %s150 = sphi 0, %s148
      %s151 = sphi 0, %s150
      %s165 = sphi 0, %s151
      %s169 = sphi 0, %s169
      %s171 = sphi 0, %s169
      %s172 = sphi 0, %s171
      %s186 = sphi 0, %s172
      %s190 = sphi 0, %s190
      %s192 = sphi 0, %s190
      %s193 = sphi 0, %s192
      %s207 = sphi 0, %s193
      %s211 = sphi 0, %s211
      %s213 = sphi 0, %s211
      %s214 = sphi 0, %s213
      %s228 = sphi 0, %s214
      %s232 = sphi 0, %s232
      %s234 = sphi 0, %s232
      %s235 = sphi 0, %s234
      %s249 = sphi 0, %s235
      %s253 = sphi 0, %s253
      %s255 = sphi 0, %s253
      %s256 = sphi 0, %s255
      %s270 = sphi 0, %s256
      %s274 = sphi 0, %s274
      %s276 = sphi 0, %s274
      %s277 = sphi 0, %s276
      %s291 = sphi 0, %s277
      %s295 = sphi 0, %s295
      %s297 = sphi 0, %s295
      %s298 = sphi 0, %s297
      %s312 = sphi 0, %s298
      %s316 = sphi 0, %s316
      %s318 = sphi 0, %s316
      %s319 = sphi 0, %s318
      %s333 = sphi 0, %s319
      %s337 = sphi 0, %s337
      %s339 = sphi 0, %s337
      %s340 = sphi 0, %s339
      %s354 = sphi 0, %s340
      %s358 = sphi 0, %s358
      %s360 = sphi 0, %s358
      %s361 = sphi 0, %s360
      %s375 = sphi 0, %s361
      %s379 = sphi 0, %s379
      %s381 = sphi 0, %s379
      %s382 = sphi 0, %s381
      %s396 = sphi 0, %s382
      %s400 = sphi 0, %s400
      %s402 = sphi 0, %s400
      %s403 = sphi 0, %s402
      %s417 = sphi 0, %s403
      %s421 = sphi 0, %s421
      %s423 = sphi 0, %s421
      %s424 = sphi 0, %s423
      %s438 = sphi 0, %s424
      %s442 = sphi 0, %s442
      %s444 = sphi 0, %s442
      %s445 = sphi 0, %s444
      %s459 = sphi 0, %s445
      %s463 = sphi 0, %s463
      %s465 = sphi 0, %s463
      %s466 = sphi 0, %s465
      %s480 = sphi 0, %s466
      %s486 = sphi 0, %s488
      %s489 = sphi 0, %s486
      %s490 = sphi 0, %s489
      %s506 = sphi 0, %s490
    $region4: #{tpu_custom_call.1} parent=1 // loop_header_branch
      %33 = sbr.rel (%p31) target = $region8
    $region5: #{tpu_custom_call.1} parent=1 // loop_body
      %s35 = ssub.s32 %s30, 1
      %s36 = ssub.s32 %s30, 2
      %s37 = sadd.s32 %s30, 1
      %s38 = ssub.s32 %s30, %s37
      %p39 = scmp.eq.s32.totalorder %s38, 0
      %s41 = sadd.s32 %s40, 1
      %s42 = scalar_select %p39, %s40, %s41
      %p45 = pneg %p39
      %p46 = scmp.eq.s32.totalorder %s30, 1
      %p47 = por %p45, %p46
      %p48 = scmp.ne.s32.totalorder %s40, %s43
      %p49 = scmp.eq.s32.totalorder %s30, 0
      %p50 = por %p48, %p49
      %p51 = scmp.ne.s32.totalorder %s40, %s43
      %p52 = scmp.eq.s32.totalorder %s35, 1
      %p53 = por %p51, %p52
      %p54 = scmp.ne.s32.totalorder %s43, %s44
      %p55 = scmp.eq.s32.totalorder %s35, 0
      %p56 = por %p54, %p55
      %p57 = scmp.ne.s32.totalorder %s43, %s44
      %p58 = scmp.eq.s32.totalorder %s36, 1
      %p59 = por %p57, %p58
      %p61 = scmp.ne.s32.totalorder %s44, %s60
      %p62 = scmp.eq.s32.totalorder %s36, 0
      %p63 = por %p61, %p62
      %s65 = sadd.s32 %s64, 1
      %p68 = scmp.eq.s32.totalorder %s30, 1
      %p69 = scmp.ne.s32.totalorder %s64, %s66
      %p70 = scmp.eq.s32.totalorder %s30, 0
      %p71 = por %p69, %p70
      %p72 = scmp.ne.s32.totalorder %s64, %s66
      %p73 = scmp.eq.s32.totalorder %s35, 1
      %p74 = por %p72, %p73
      %p75 = scmp.ne.s32.totalorder %s66, %s67
      %p76 = scmp.eq.s32.totalorder %s35, 0
      %p77 = por %p75, %p76
      %p78 = scmp.ne.s32.totalorder %s66, %s67
      %p79 = scmp.eq.s32.totalorder %s36, 1
      %p80 = por %p78, %p79
      %p82 = scmp.ne.s32.totalorder %s67, %s81
      %p83 = scmp.eq.s32.totalorder %s36, 0
      %p84 = por %p82, %p83
      %s86 = sadd.s32 %s85, 1
      %p89 = scmp.eq.s32.totalorder %s30, 1
      %p90 = scmp.ne.s32.totalorder %s85, %s87
      %p91 = scmp.eq.s32.totalorder %s30, 0
      %p92 = por %p90, %p91
      %p93 = scmp.ne.s32.totalorder %s85, %s87
      %p94 = scmp.eq.s32.totalorder %s35, 1
      %p95 = por %p93, %p94
      %p96 = scmp.ne.s32.totalorder %s87, %s88
      %p97 = scmp.eq.s32.totalorder %s35, 0
      %p98 = por %p96, %p97
      %p99 = scmp.ne.s32.totalorder %s87, %s88
      %p100 = scmp.eq.s32.totalorder %s36, 1
      %p101 = por %p99, %p100
      %p103 = scmp.ne.s32.totalorder %s88, %s102
      %p104 = scmp.eq.s32.totalorder %s36, 0
      %p105 = por %p103, %p104
      %s107 = sadd.s32 %s106, 1
      %p110 = scmp.eq.s32.totalorder %s30, 1
      %p111 = scmp.ne.s32.totalorder %s106, %s108
      %p112 = scmp.eq.s32.totalorder %s30, 0
      %p113 = por %p111, %p112
      %p114 = scmp.ne.s32.totalorder %s106, %s108
      %p115 = scmp.eq.s32.totalorder %s35, 1
      %p116 = por %p114, %p115
      %p117 = scmp.ne.s32.totalorder %s108, %s109
      %p118 = scmp.eq.s32.totalorder %s35, 0
      %p119 = por %p117, %p118
      %p120 = scmp.ne.s32.totalorder %s108, %s109
      %p121 = scmp.eq.s32.totalorder %s36, 1
      %p122 = por %p120, %p121
      %p124 = scmp.ne.s32.totalorder %s109, %s123
      %p125 = scmp.eq.s32.totalorder %s36, 0
      %p126 = por %p124, %p125
      %s128 = sadd.s32 %s127, 1
      %p131 = scmp.eq.s32.totalorder %s30, 1
      %p132 = scmp.ne.s32.totalorder %s127, %s129
      %p133 = scmp.eq.s32.totalorder %s30, 0
      %p134 = por %p132, %p133
      %p135 = scmp.ne.s32.totalorder %s127, %s129
      %p136 = scmp.eq.s32.totalorder %s35, 1
      %p137 = por %p135, %p136
      %p138 = scmp.ne.s32.totalorder %s129, %s130
      %p139 = scmp.eq.s32.totalorder %s35, 0
      %p140 = por %p138, %p139
      %p141 = scmp.ne.s32.totalorder %s129, %s130
      %p142 = scmp.eq.s32.totalorder %s36, 1
      %p143 = por %p141, %p142
      %p145 = scmp.ne.s32.totalorder %s130, %s144
      %p146 = scmp.eq.s32.totalorder %s36, 0
      %p147 = por %p145, %p146
      %s149 = sadd.s32 %s148, 1
      %p152 = scmp.eq.s32.totalorder %s30, 1
      %p153 = scmp.ne.s32.totalorder %s148, %s150
      %p154 = scmp.eq.s32.totalorder %s30, 0
      %p155 = por %p153, %p154
      %p156 = scmp.ne.s32.totalorder %s148, %s150
      %p157 = scmp.eq.s32.totalorder %s35, 1
      %p158 = por %p156, %p157
      %p159 = scmp.ne.s32.totalorder %s150, %s151
      %p160 = scmp.eq.s32.totalorder %s35, 0
      %p161 = por %p159, %p160
      %p162 = scmp.ne.s32.totalorder %s150, %s151
      %p163 = scmp.eq.s32.totalorder %s36, 1
      %p164 = por %p162, %p163
      %p166 = scmp.ne.s32.totalorder %s151, %s165
      %p167 = scmp.eq.s32.totalorder %s36, 0
      %p168 = por %p166, %p167
      %s170 = sadd.s32 %s169, 1
      %p173 = scmp.eq.s32.totalorder %s30, 1
      %p174 = scmp.ne.s32.totalorder %s169, %s171
      %p175 = scmp.eq.s32.totalorder %s30, 0
      %p176 = por %p174, %p175
      %p177 = scmp.ne.s32.totalorder %s169, %s171
      %p178 = scmp.eq.s32.totalorder %s35, 1
      %p179 = por %p177, %p178
      %p180 = scmp.ne.s32.totalorder %s171, %s172
      %p181 = scmp.eq.s32.totalorder %s35, 0
      %p182 = por %p180, %p181
      %p183 = scmp.ne.s32.totalorder %s171, %s172
      %p184 = scmp.eq.s32.totalorder %s36, 1
      %p185 = por %p183, %p184
      %p187 = scmp.ne.s32.totalorder %s172, %s186
      %p188 = scmp.eq.s32.totalorder %s36, 0
      %p189 = por %p187, %p188
      %s191 = sadd.s32 %s190, 1
      %p194 = scmp.eq.s32.totalorder %s30, 1
      %p195 = scmp.ne.s32.totalorder %s190, %s192
      %p196 = scmp.eq.s32.totalorder %s30, 0
      %p197 = por %p195, %p196
      %p198 = scmp.ne.s32.totalorder %s190, %s192
      %p199 = scmp.eq.s32.totalorder %s35, 1
      %p200 = por %p198, %p199
      %p201 = scmp.ne.s32.totalorder %s192, %s193
      %p202 = scmp.eq.s32.totalorder %s35, 0
      %p203 = por %p201, %p202
      %p204 = scmp.ne.s32.totalorder %s192, %s193
      %p205 = scmp.eq.s32.totalorder %s36, 1
      %p206 = por %p204, %p205
      %p208 = scmp.ne.s32.totalorder %s193, %s207
      %p209 = scmp.eq.s32.totalorder %s36, 0
      %p210 = por %p208, %p209
      %s212 = sadd.s32 %s211, 1
      %p215 = scmp.eq.s32.totalorder %s30, 1
      %p216 = scmp.ne.s32.totalorder %s211, %s213
      %p217 = scmp.eq.s32.totalorder %s30, 0
      %p218 = por %p216, %p217
      %p219 = scmp.ne.s32.totalorder %s211, %s213
      %p220 = scmp.eq.s32.totalorder %s35, 1
      %p221 = por %p219, %p220
      %p222 = scmp.ne.s32.totalorder %s213, %s214
      %p223 = scmp.eq.s32.totalorder %s35, 0
      %p224 = por %p222, %p223
      %p225 = scmp.ne.s32.totalorder %s213, %s214
      %p226 = scmp.eq.s32.totalorder %s36, 1
      %p227 = por %p225, %p226
      %p229 = scmp.ne.s32.totalorder %s214, %s228
      %p230 = scmp.eq.s32.totalorder %s36, 0
      %p231 = por %p229, %p230
      %s233 = sadd.s32 %s232, 1
      %p236 = scmp.eq.s32.totalorder %s30, 1
      %p237 = scmp.ne.s32.totalorder %s232, %s234
      %p238 = scmp.eq.s32.totalorder %s30, 0
      %p239 = por %p237, %p238
      %p240 = scmp.ne.s32.totalorder %s232, %s234
      %p241 = scmp.eq.s32.totalorder %s35, 1
      %p242 = por %p240, %p241
      %p243 = scmp.ne.s32.totalorder %s234, %s235
      %p244 = scmp.eq.s32.totalorder %s35, 0
      %p245 = por %p243, %p244
      %p246 = scmp.ne.s32.totalorder %s234, %s235
      %p247 = scmp.eq.s32.totalorder %s36, 1
      %p248 = por %p246, %p247
      %p250 = scmp.ne.s32.totalorder %s235, %s249
      %p251 = scmp.eq.s32.totalorder %s36, 0
      %p252 = por %p250, %p251
      %s254 = sadd.s32 %s253, 1
      %p257 = scmp.eq.s32.totalorder %s30, 1
      %p258 = scmp.ne.s32.totalorder %s253, %s255
      %p259 = scmp.eq.s32.totalorder %s30, 0
      %p260 = por %p258, %p259
      %p261 = scmp.ne.s32.totalorder %s253, %s255
      %p262 = scmp.eq.s32.totalorder %s35, 1
      %p263 = por %p261, %p262
      %p264 = scmp.ne.s32.totalorder %s255, %s256
      %p265 = scmp.eq.s32.totalorder %s35, 0
      %p266 = por %p264, %p265
      %p267 = scmp.ne.s32.totalorder %s255, %s256
      %p268 = scmp.eq.s32.totalorder %s36, 1
      %p269 = por %p267, %p268
      %p271 = scmp.ne.s32.totalorder %s256, %s270
      %p272 = scmp.eq.s32.totalorder %s36, 0
      %p273 = por %p271, %p272
      %s275 = sadd.s32 %s274, 1
      %p278 = scmp.eq.s32.totalorder %s30, 1
      %p279 = scmp.ne.s32.totalorder %s274, %s276
      %p280 = scmp.eq.s32.totalorder %s30, 0
      %p281 = por %p279, %p280
      %p282 = scmp.ne.s32.totalorder %s274, %s276
      %p283 = scmp.eq.s32.totalorder %s35, 1
      %p284 = por %p282, %p283
      %p285 = scmp.ne.s32.totalorder %s276, %s277
      %p286 = scmp.eq.s32.totalorder %s35, 0
      %p287 = por %p285, %p286
      %p288 = scmp.ne.s32.totalorder %s276, %s277
      %p289 = scmp.eq.s32.totalorder %s36, 1
      %p290 = por %p288, %p289
      %p292 = scmp.ne.s32.totalorder %s277, %s291
      %p293 = scmp.eq.s32.totalorder %s36, 0
      %p294 = por %p292, %p293
      %s296 = sadd.s32 %s295, 1
      %p299 = scmp.eq.s32.totalorder %s30, 1
      %p300 = scmp.ne.s32.totalorder %s295, %s297
      %p301 = scmp.eq.s32.totalorder %s30, 0
      %p302 = por %p300, %p301
      %p303 = scmp.ne.s32.totalorder %s295, %s297
      %p304 = scmp.eq.s32.totalorder %s35, 1
      %p305 = por %p303, %p304
      %p306 = scmp.ne.s32.totalorder %s297, %s298
      %p307 = scmp.eq.s32.totalorder %s35, 0
      %p308 = por %p306, %p307
      %p309 = scmp.ne.s32.totalorder %s297, %s298
      %p310 = scmp.eq.s32.totalorder %s36, 1
      %p311 = por %p309, %p310
      %p313 = scmp.ne.s32.totalorder %s298, %s312
      %p314 = scmp.eq.s32.totalorder %s36, 0
      %p315 = por %p313, %p314
      %s317 = sadd.s32 %s316, 1
      %p320 = scmp.eq.s32.totalorder %s30, 1
      %p321 = scmp.ne.s32.totalorder %s316, %s318
      %p322 = scmp.eq.s32.totalorder %s30, 0
      %p323 = por %p321, %p322
      %p324 = scmp.ne.s32.totalorder %s316, %s318
      %p325 = scmp.eq.s32.totalorder %s35, 1
      %p326 = por %p324, %p325
      %p327 = scmp.ne.s32.totalorder %s318, %s319
      %p328 = scmp.eq.s32.totalorder %s35, 0
      %p329 = por %p327, %p328
      %p330 = scmp.ne.s32.totalorder %s318, %s319
      %p331 = scmp.eq.s32.totalorder %s36, 1
      %p332 = por %p330, %p331
      %p334 = scmp.ne.s32.totalorder %s319, %s333
      %p335 = scmp.eq.s32.totalorder %s36, 0
      %p336 = por %p334, %p335
      %s338 = sadd.s32 %s337, 1
      %p341 = scmp.eq.s32.totalorder %s30, 1
      %p342 = scmp.ne.s32.totalorder %s337, %s339
      %p343 = scmp.eq.s32.totalorder %s30, 0
      %p344 = por %p342, %p343
      %p345 = scmp.ne.s32.totalorder %s337, %s339
      %p346 = scmp.eq.s32.totalorder %s35, 1
      %p347 = por %p345, %p346
      %p348 = scmp.ne.s32.totalorder %s339, %s340
      %p349 = scmp.eq.s32.totalorder %s35, 0
      %p350 = por %p348, %p349
      %p351 = scmp.ne.s32.totalorder %s339, %s340
      %p352 = scmp.eq.s32.totalorder %s36, 1
      %p353 = por %p351, %p352
      %p355 = scmp.ne.s32.totalorder %s340, %s354
      %p356 = scmp.eq.s32.totalorder %s36, 0
      %p357 = por %p355, %p356
      %s359 = sadd.s32 %s358, 1
      %p362 = scmp.eq.s32.totalorder %s30, 1
      %p363 = scmp.ne.s32.totalorder %s358, %s360
      %p364 = scmp.eq.s32.totalorder %s30, 0
      %p365 = por %p363, %p364
      %p366 = scmp.ne.s32.totalorder %s358, %s360
      %p367 = scmp.eq.s32.totalorder %s35, 1
      %p368 = por %p366, %p367
      %p369 = scmp.ne.s32.totalorder %s360, %s361
      %p370 = scmp.eq.s32.totalorder %s35, 0
      %p371 = por %p369, %p370
      %p372 = scmp.ne.s32.totalorder %s360, %s361
      %p373 = scmp.eq.s32.totalorder %s36, 1
      %p374 = por %p372, %p373
      %p376 = scmp.ne.s32.totalorder %s361, %s375
      %p377 = scmp.eq.s32.totalorder %s36, 0
      %p378 = por %p376, %p377
      %s380 = sadd.s32 %s379, 1
      %p383 = scmp.eq.s32.totalorder %s30, 1
      %p384 = scmp.ne.s32.totalorder %s379, %s381
      %p385 = scmp.eq.s32.totalorder %s30, 0
      %p386 = por %p384, %p385
      %p387 = scmp.ne.s32.totalorder %s379, %s381
      %p388 = scmp.eq.s32.totalorder %s35, 1
      %p389 = por %p387, %p388
      %p390 = scmp.ne.s32.totalorder %s381, %s382
      %p391 = scmp.eq.s32.totalorder %s35, 0
      %p392 = por %p390, %p391
      %p393 = scmp.ne.s32.totalorder %s381, %s382
      %p394 = scmp.eq.s32.totalorder %s36, 1
      %p395 = por %p393, %p394
      %p397 = scmp.ne.s32.totalorder %s382, %s396
      %p398 = scmp.eq.s32.totalorder %s36, 0
      %p399 = por %p397, %p398
      %s401 = sadd.s32 %s400, 1
      %p404 = scmp.eq.s32.totalorder %s30, 1
      %p405 = scmp.ne.s32.totalorder %s400, %s402
      %p406 = scmp.eq.s32.totalorder %s30, 0
      %p407 = por %p405, %p406
      %p408 = scmp.ne.s32.totalorder %s400, %s402
      %p409 = scmp.eq.s32.totalorder %s35, 1
      %p410 = por %p408, %p409
      %p411 = scmp.ne.s32.totalorder %s402, %s403
      %p412 = scmp.eq.s32.totalorder %s35, 0
      %p413 = por %p411, %p412
      %p414 = scmp.ne.s32.totalorder %s402, %s403
      %p415 = scmp.eq.s32.totalorder %s36, 1
      %p416 = por %p414, %p415
      %p418 = scmp.ne.s32.totalorder %s403, %s417
      %p419 = scmp.eq.s32.totalorder %s36, 0
      %p420 = por %p418, %p419
      %s422 = sadd.s32 %s421, 1
      %p425 = scmp.eq.s32.totalorder %s30, 1
      %p426 = scmp.ne.s32.totalorder %s421, %s423
      %p427 = scmp.eq.s32.totalorder %s30, 0
      %p428 = por %p426, %p427
      %p429 = scmp.ne.s32.totalorder %s421, %s423
      %p430 = scmp.eq.s32.totalorder %s35, 1
      %p431 = por %p429, %p430
      %p432 = scmp.ne.s32.totalorder %s423, %s424
      %p433 = scmp.eq.s32.totalorder %s35, 0
      %p434 = por %p432, %p433
      %p435 = scmp.ne.s32.totalorder %s423, %s424
      %p436 = scmp.eq.s32.totalorder %s36, 1
      %p437 = por %p435, %p436
      %p439 = scmp.ne.s32.totalorder %s424, %s438
      %p440 = scmp.eq.s32.totalorder %s36, 0
      %p441 = por %p439, %p440
      %s443 = sadd.s32 %s442, 1
      %p446 = scmp.eq.s32.totalorder %s30, 1
      %p447 = scmp.ne.s32.totalorder %s442, %s444
      %p448 = scmp.eq.s32.totalorder %s30, 0
      %p449 = por %p447, %p448
      %p450 = scmp.ne.s32.totalorder %s442, %s444
      %p451 = scmp.eq.s32.totalorder %s35, 1
      %p452 = por %p450, %p451
      %p453 = scmp.ne.s32.totalorder %s444, %s445
      %p454 = scmp.eq.s32.totalorder %s35, 0
      %p455 = por %p453, %p454
      %p456 = scmp.ne.s32.totalorder %s444, %s445
      %p457 = scmp.eq.s32.totalorder %s36, 1
      %p458 = por %p456, %p457
      %p460 = scmp.ne.s32.totalorder %s445, %s459
      %p461 = scmp.eq.s32.totalorder %s36, 0
      %p462 = por %p460, %p461
      %s464 = sadd.s32 %s463, 1
      %p467 = scmp.eq.s32.totalorder %s30, 1
      %p468 = scmp.ne.s32.totalorder %s463, %s465
      %p469 = scmp.eq.s32.totalorder %s30, 0
      %p470 = por %p468, %p469
      %p471 = scmp.ne.s32.totalorder %s463, %s465
      %p472 = scmp.eq.s32.totalorder %s35, 1
      %p473 = por %p471, %p472
      %p474 = scmp.ne.s32.totalorder %s465, %s466
      %p475 = scmp.eq.s32.totalorder %s35, 0
      %p476 = por %p474, %p475
      %p477 = scmp.ne.s32.totalorder %s465, %s466
      %p478 = scmp.eq.s32.totalorder %s36, 1
      %p479 = por %p477, %p478
      %p481 = scmp.ne.s32.totalorder %s466, %s480
      %p482 = scmp.eq.s32.totalorder %s36, 0
      %p483 = por %p481, %p482
      %s484 = ssub.s32 %s30, %s37
      %p485 = scmp.eq.s32.totalorder %s484, 0
      %s487 = sadd.s32 %s486, 1
      %s488 = scalar_select %p485, %s486, %s487
      %p491 = pneg %p485
      %p492 = scmp.eq.s32.totalorder %s30, 1
      %p493 = por %p491, %p492
      %p494 = scmp.ne.s32.totalorder %s486, %s489
      %p495 = scmp.eq.s32.totalorder %s30, 0
      %p496 = por %p494, %p495
      %p497 = scmp.ne.s32.totalorder %s486, %s489
      %p498 = scmp.eq.s32.totalorder %s35, 1
      %p499 = por %p497, %p498
      %p500 = scmp.ne.s32.totalorder %s489, %s490
      %p501 = scmp.eq.s32.totalorder %s35, 0
      %p502 = por %p500, %p501
      %p503 = scmp.ne.s32.totalorder %s489, %s490
      %p504 = scmp.eq.s32.totalorder %s36, 1
      %p505 = por %p503, %p504
      %p507 = scmp.ne.s32.totalorder %s490, %s506
      %p508 = scmp.eq.s32.totalorder %s36, 0
      %p509 = por %p507, %p508
      %p510 = scmp.le.s32.totalorder 1, %s30
      %p511 = scmp.lt.s32.totalorder %s30, 3
      %p512 = pnand %p510, %p511
      %p513 = pneg %p512
      // Predicated region
      $region9: #{tpu_custom_call.1} parent=5 // pred_check
        _
      $region10: #{tpu_custom_call.1} parent=5 // pred_check_branch
        %515 = sbr.rel (%p512) target = $region12
      $region11: #{tpu_custom_call.1} parent=5 // pred_region
        %s516 = ssub.s32 %s30, 1
        // Predicated region
        $region13: #{tpu_custom_call.1} parent=11 // pred_check
          %p517 = pneg %p77
        $region14: #{tpu_custom_call.1} parent=11 // pred_check_branch
          %519 = sbr.rel (%p517) target = $region16
        $region15: #{tpu_custom_call.1} parent=11 // pred_region
          _
        $region16: #{tpu_custom_call.1} parent=11 // pred_fallthru
          _
        // Predicated region
        $region17: #{tpu_custom_call.1} parent=11 // pred_check
          %p520 = pneg %p98
        $region18: #{tpu_custom_call.1} parent=11 // pred_check_branch
          %522 = sbr.rel (%p520) target = $region20
        $region19: #{tpu_custom_call.1} parent=11 // pred_region
          _
        $region20: #{tpu_custom_call.1} parent=11 // pred_fallthru
          _
        // Predicated region
        $region21: #{tpu_custom_call.1} parent=11 // pred_check
          %p523 = pneg %p119
        $region22: #{tpu_custom_call.1} parent=11 // pred_check_branch
          %525 = sbr.rel (%p523) target = $region24
        $region23: #{tpu_custom_call.1} parent=11 // pred_region
          _
        $region24: #{tpu_custom_call.1} parent=11 // pred_fallthru
          _
        // Predicated region
        $region25: #{tpu_custom_call.1} parent=11 // pred_check
          %p526 = pneg %p140
        $region26: #{tpu_custom_call.1} parent=11 // pred_check_branch
          %528 = sbr.rel (%p526) target = $region28
        $region27: #{tpu_custom_call.1} parent=11 // pred_region
          _
        $region28: #{tpu_custom_call.1} parent=11 // pred_fallthru
          _
        // Predicated region
        $region29: #{tpu_custom_call.1} parent=11 // pred_check
          %p529 = pneg %p161
        $region30: #{tpu_custom_call.1} parent=11 // pred_check_branch
          %531 = sbr.rel (%p529) target = $region32
        $region31: #{tpu_custom_call.1} parent=11 // pred_region
          _
        $region32: #{tpu_custom_call.1} parent=11 // pred_fallthru
          _
        // Predicated region
        $region33: #{tpu_custom_call.1} parent=11 // pred_check
          %p532 = pneg %p182
        $region34: #{tpu_custom_call.1} parent=11 // pred_check_branch
          %534 = sbr.rel (%p532) target = $region36
        $region35: #{tpu_custom_call.1} parent=11 // pred_region
          _
        $region36: #{tpu_custom_call.1} parent=11 // pred_fallthru
          _
        // Predicated region
        $region37: #{tpu_custom_call.1} parent=11 // pred_check
          %p535 = pneg %p203
        $region38: #{tpu_custom_call.1} parent=11 // pred_check_branch
          %537 = sbr.rel (%p535) target = $region40
        $region39: #{tpu_custom_call.1} parent=11 // pred_region
          _
        $region40: #{tpu_custom_call.1} parent=11 // pred_fallthru
          _
        // Predicated region
        $region41: #{tpu_custom_call.1} parent=11 // pred_check
          %p538 = pneg %p224
        $region42: #{tpu_custom_call.1} parent=11 // pred_check_branch
          %540 = sbr.rel (%p538) target = $region44
        $region43: #{tpu_custom_call.1} parent=11 // pred_region
          _
        $region44: #{tpu_custom_call.1} parent=11 // pred_fallthru
          _
        // Predicated region
        $region45: #{tpu_custom_call.1} parent=11 // pred_check
          %p541 = pneg %p245
        $region46: #{tpu_custom_call.1} parent=11 // pred_check_branch
          %543 = sbr.rel (%p541) target = $region48
        $region47: #{tpu_custom_call.1} parent=11 // pred_region
          _
        $region48: #{tpu_custom_call.1} parent=11 // pred_fallthru
          _
        // Predicated region
        $region49: #{tpu_custom_call.1} parent=11 // pred_check
          %p544 = pneg %p266
        $region50: #{tpu_custom_call.1} parent=11 // pred_check_branch
          %546 = sbr.rel (%p544) target = $region52
        $region51: #{tpu_custom_call.1} parent=11 // pred_region
          _
        $region52: #{tpu_custom_call.1} parent=11 // pred_fallthru
          _
        // Predicated region
        $region53: #{tpu_custom_call.1} parent=11 // pred_check
          %p547 = pneg %p287
        $region54: #{tpu_custom_call.1} parent=11 // pred_check_branch
          %549 = sbr.rel (%p547) target = $region56
        $region55: #{tpu_custom_call.1} parent=11 // pred_region
          _
        $region56: #{tpu_custom_call.1} parent=11 // pred_fallthru
          _
        // Predicated region
        $region57: #{tpu_custom_call.1} parent=11 // pred_check
          %p550 = pneg %p308
        $region58: #{tpu_custom_call.1} parent=11 // pred_check_branch
          %552 = sbr.rel (%p550) target = $region60
        $region59: #{tpu_custom_call.1} parent=11 // pred_region
          _
        $region60: #{tpu_custom_call.1} parent=11 // pred_fallthru
          _
        // Predicated region
        $region61: #{tpu_custom_call.1} parent=11 // pred_check
          %p553 = pneg %p329
        $region62: #{tpu_custom_call.1} parent=11 // pred_check_branch
          %555 = sbr.rel (%p553) target = $region64
        $region63: #{tpu_custom_call.1} parent=11 // pred_region
          _
        $region64: #{tpu_custom_call.1} parent=11 // pred_fallthru
          _
        // Predicated region
        $region65: #{tpu_custom_call.1} parent=11 // pred_check
          %p556 = pneg %p350
        $region66: #{tpu_custom_call.1} parent=11 // pred_check_branch
          %558 = sbr.rel (%p556) target = $region68
        $region67: #{tpu_custom_call.1} parent=11 // pred_region
          _
        $region68: #{tpu_custom_call.1} parent=11 // pred_fallthru
          _
        // Predicated region
        $region69: #{tpu_custom_call.1} parent=11 // pred_check
          %p559 = pneg %p371
        $region70: #{tpu_custom_call.1} parent=11 // pred_check_branch
          %561 = sbr.rel (%p559) target = $region72
        $region71: #{tpu_custom_call.1} parent=11 // pred_region
          _
        $region72: #{tpu_custom_call.1} parent=11 // pred_fallthru
          _
        // Predicated region
        $region73: #{tpu_custom_call.1} parent=11 // pred_check
          %p562 = pneg %p392
        $region74: #{tpu_custom_call.1} parent=11 // pred_check_branch
          %564 = sbr.rel (%p562) target = $region76
        $region75: #{tpu_custom_call.1} parent=11 // pred_region
          _
        $region76: #{tpu_custom_call.1} parent=11 // pred_fallthru
          _
        // Predicated region
        $region77: #{tpu_custom_call.1} parent=11 // pred_check
          %p565 = pneg %p413
        $region78: #{tpu_custom_call.1} parent=11 // pred_check_branch
          %567 = sbr.rel (%p565) target = $region80
        $region79: #{tpu_custom_call.1} parent=11 // pred_region
          _
        $region80: #{tpu_custom_call.1} parent=11 // pred_fallthru
          _
        // Predicated region
        $region81: #{tpu_custom_call.1} parent=11 // pred_check
          %p568 = pneg %p434
        $region82: #{tpu_custom_call.1} parent=11 // pred_check_branch
          %570 = sbr.rel (%p568) target = $region84
        $region83: #{tpu_custom_call.1} parent=11 // pred_region
          _
        $region84: #{tpu_custom_call.1} parent=11 // pred_fallthru
          _
        // Predicated region
        $region85: #{tpu_custom_call.1} parent=11 // pred_check
          %p571 = pneg %p455
        $region86: #{tpu_custom_call.1} parent=11 // pred_check_branch
          %573 = sbr.rel (%p571) target = $region88
        $region87: #{tpu_custom_call.1} parent=11 // pred_region
          _
        $region88: #{tpu_custom_call.1} parent=11 // pred_fallthru
          _
        // Predicated region
        $region89: #{tpu_custom_call.1} parent=11 // pred_check
          %p574 = pneg %p476
        $region90: #{tpu_custom_call.1} parent=11 // pred_check_branch
          %576 = sbr.rel (%p574) target = $region92
        $region91: #{tpu_custom_call.1} parent=11 // pred_region
          _
        $region92: #{tpu_custom_call.1} parent=11 // pred_fallthru
          _
      $region12: #{tpu_custom_call.1} parent=5 // pred_fallthru
        _
      %p577 = scmp.lt.s32.totalorder %s30, 2
      // Predicated region
      $region93: #{tpu_custom_call.1} parent=5 // pred_check
        %p578 = pneg %p577
      $region94: #{tpu_custom_call.1} parent=5 // pred_check_branch
        %580 = sbr.rel (%p578) target = $region96
      $region95: #{tpu_custom_call.1} parent=5 // pred_region
        // Predicated region
        $region97: #{tpu_custom_call.1} parent=95 // pred_check
          %p581 = pneg %p50
        $region98: #{tpu_custom_call.1} parent=95 // pred_check_branch
          %583 = sbr.rel (%p581) target = $region100
        $region99: #{tpu_custom_call.1} parent=95 // pred_region
          %p584 = scmp.lt.s32.totalorder %s30, 1
          %s585 = scalar_select %p584, %s30, 1
          %s586 = smul.addr %s585, 2
          %s587 = smul.addr %s586, 8
          %s588 = scalar_lea.vmem %s0, %s587
        $region100: #{tpu_custom_call.1} parent=95 // pred_fallthru
          _
      $region96: #{tpu_custom_call.1} parent=5 // pred_fallthru
        _
      %p589 = scmp.le.s32.totalorder 1, %s30
      %p590 = scmp.lt.s32.totalorder %s30, 3
      %p591 = pnand %p589, %p590
      %p592 = pneg %p591
      // Predicated region
      $region101: #{tpu_custom_call.1} parent=5 // pred_check
        _
      $region102: #{tpu_custom_call.1} parent=5 // pred_check_branch
        %594 = sbr.rel (%p591) target = $region104
      $region103: #{tpu_custom_call.1} parent=5 // pred_region
        %s595 = ssub.s32 %s30, 1
        %p596 = scmp.lt.s32.totalorder %s35, 1
        %s597 = scalar_select %p596, %s35, 1
        %s598 = smul.addr %s597, 2
        %s599 = smul.addr %s598, 8
        %s600 = scalar_lea.vmem %s0, %s599
        %p601 = pneg %p56
        %p602 = pneg %p53
        %p603 = pneg %p77
        %p604 = pneg %p74
        %p605 = pneg %p98
        %p606 = pneg %p95
        %p607 = pneg %p119
        %p608 = pneg %p116
        %p609 = pneg %p140
        %p610 = pneg %p137
        %p611 = pneg %p161
        %p612 = pneg %p158
        %p613 = pneg %p182
        %p614 = pneg %p179
        %p615 = pneg %p203
        %p616 = pneg %p200
        %p617 = pneg %p224
        %p618 = pneg %p221
        %p619 = pneg %p245
        %p620 = pneg %p242
        %p621 = pneg %p266
        %p622 = pneg %p263
        %p623 = pneg %p287
        %p624 = pneg %p284
        %p625 = pneg %p308
        %p626 = pneg %p305
        %p627 = pneg %p329
        %p628 = pneg %p326
        %p629 = pneg %p350
        %p630 = pneg %p347
        %p631 = pneg %p371
        %p632 = pneg %p368
        %p633 = pneg %p392
        %p634 = pneg %p389
        %p635 = pneg %p413
        %p636 = pneg %p410
        %p637 = pneg %p434
        %p638 = pneg %p431
        %p639 = pneg %p455
        %p640 = pneg %p452
        %p641 = pneg %p476
        %p642 = pneg %p473
        %p643 = pneg %p502
        %p644 = pneg %p499
        %s645 = sand.u32 %s489, 1
        %s646 = scalar_lea.sflag [#allocation3], %s645
        %s647 = sand.u32 %s489, 1
        %s648 = smul.addr %s647, 16
        %s649 = scalar_lea.vmem [#allocation2], %s648
        %p650 = scmp.lt.s32.totalorder %s35, 1
        %s651 = scalar_select %p650, %s35, 1
        %s652 = smul.addr %s651, 2
        %s653 = smul.addr %s652, 8
        %s654 = scalar_lea.vmem %s0, %s653
        %v655 = vld [vmem:[%s654] sm:$0xff]
        %v656 = vld [vmem:[%s654 + $0x8] sm:$0xff]
        %vm659 = vcmask 1040384
        %v660 = vrot.slane %v655, 7
        %v661 = vrot.slane %v656, 7
        %v662 = vsel %vm659, %v660, %v661
        %v665 = vsel %vm659, 0.0, %v660
        %v666 = vsel %vm659, %v661, 0.0
        %669 = vrot.lane.b32.xlu0 %v665, 8
        %v670 = vpop.permute.xlu0 %669
        %671 = vrot.lane.b32.xlu0 %v662, 8
        %v672 = vpop.permute.xlu0 %671
        %673 = vrot.lane.b32.xlu0 %v666, 8
        %v674 = vpop.permute.xlu0 %673
        %vm678 = vcmask 64512
        %v679 = vsel %vm678, 0.0, %v670
        %v680 = vsel %vm678, 0.0, %v672
        %v681 = vsel %vm678, 0.0, %v674
        %v682 = vsel %vm678, %v670, 0.0
        %v683 = vsel %vm678, %v672, 0.0
        %v684 = vsel %vm678, %v674, 0.0
        %v685 = vld [vmem:[%s1] sm:$0xff]
        %v686 = vld [vmem:[%s1 + $0x8] sm:$0x1]
        %v687 = vperm.slane %v685, 0
        %v688 = vmul.f32 %v679, %v687
        %v689 = vmul.f32 %v680, %v687
        %v690 = vperm.slane %v685, 1
        %692 = vrot.lane.b32.xlu0 %v690, 8
        %v693 = vpop.permute.xlu0 %692
        %v695 = vmul.f32 %v679, %v693
        %v696 = vmul.f32 %v682, %v693
        %v697 = vmul.f32 %v680, %v693
        %v698 = vmul.f32 %v683, %v693
        %v699 = vperm.slane %v685, 2
        %701 = vrot.lane.b32.xlu0 %v699, 16
        %v702 = vpop.permute.xlu0 %701
        %v704 = vmul.f32 %v679, %v702
        %v705 = vmul.f32 %v682, %v702
        %v706 = vmul.f32 %v680, %v702
        %v707 = vmul.f32 %v683, %v702
        %v708 = vperm.slane %v685, 3
        %v709 = vmul.f32 %v679, %v708
        %v710 = vmul.f32 %v680, %v708
        %v711 = vmul.f32 %v681, %v708
        %v712 = vperm.slane %v685, 4
        %714 = vrot.lane.b32.xlu0 %v712, 8
        %v715 = vpop.permute.xlu0 %714
        %v717 = vmul.f32 %v679, %v715
        %v718 = vmul.f32 %v682, %v715
        %v719 = vmul.f32 %v680, %v715
        %v720 = vmul.f32 %v683, %v715
        %v721 = vmul.f32 %v681, %v715
        %v722 = vmul.f32 %v684, %v715
        %vm729 = vcmask 1046528
        %v730 = vrot.slane %v717, 1
        %v731 = vrot.slane %v719, 1
        %v732 = vsel %vm729, %v730, %v731
        %v733 = vrot.slane %v718, 1
        %v734 = vrot.slane %v720, 1
        %v735 = vsel %vm729, %v733, %v734
        %v736 = vrot.slane %v721, 1
        %v737 = vsel %vm729, %v731, %v736
        %v738 = vrot.slane %v722, 1
        %v739 = vsel %vm729, %v734, %v738
        %740 = vrot.lane.b32.xlu0 %v732, 120
        %v741 = vpop.permute.xlu0 %740
        %742 = vrot.lane.b32.xlu0 %v735, 120
        %v743 = vpop.permute.xlu0 %742
        %744 = vrot.lane.b32.xlu0 %v737, 120
        %v745 = vpop.permute.xlu0 %744
        %746 = vrot.lane.b32.xlu0 %v739, 120
        %v747 = vpop.permute.xlu0 %746
        %vm748 = vcmask 982016
        %v749 = vsel %vm748, %v741, %v743
        %v750 = vsel %vm748, %v745, %v747
        %v753 = vadd.f32 %v688, %v749
        %v754 = vadd.f32 %v689, %v750
        %v755 = vperm.slane %v685, 5
        %757 = vrot.lane.b32.xlu0 %v755, 16
        %v758 = vpop.permute.xlu0 %757
        %v760 = vmul.f32 %v679, %v758
        %v761 = vmul.f32 %v682, %v758
        %v762 = vmul.f32 %v680, %v758
        %v763 = vmul.f32 %v683, %v758
        %v764 = vmul.f32 %v681, %v758
        %v765 = vmul.f32 %v684, %v758
        %v772 = vrot.slane %v760, 1
        %v773 = vrot.slane %v762, 1
        %v774 = vsel %vm729, %v772, %v773
        %v775 = vrot.slane %v761, 1
        %v776 = vrot.slane %v763, 1
        %v777 = vsel %vm729, %v775, %v776
        %v778 = vrot.slane %v764, 1
        %v779 = vsel %vm729, %v773, %v778
        %v780 = vrot.slane %v765, 1
        %v781 = vsel %vm729, %v776, %v780
        %782 = vrot.lane.b32.xlu0 %v774, 120
        %v783 = vpop.permute.xlu0 %782
        %784 = vrot.lane.b32.xlu0 %v777, 120
        %v785 = vpop.permute.xlu0 %784
        %786 = vrot.lane.b32.xlu0 %v779, 120
        %v787 = vpop.permute.xlu0 %786
        %788 = vrot.lane.b32.xlu0 %v781, 120
        %v789 = vpop.permute.xlu0 %788
        %v790 = vsel %vm748, %v783, %v785
        %v791 = vsel %vm748, %v787, %v789
        %v796 = vadd.f32 %v695, %v790
        %v797 = vadd.f32 %v696, %v785
        %v798 = vadd.f32 %v697, %v791
        %v799 = vadd.f32 %v698, %v789
        %v800 = vperm.slane %v685, 6
        %v801 = vmul.f32 %v679, %v800
        %v802 = vmul.f32 %v680, %v800
        %v803 = vmul.f32 %v681, %v800
        %vm807 = vcmask 1045504
        %v808 = vrot.slane %v801, 2
        %v809 = vrot.slane %v802, 2
        %v810 = vsel %vm807, %v808, %v809
        %v811 = vrot.slane %v803, 2
        %v812 = vsel %vm807, %v809, %v811
        %813 = vrot.lane.b32.xlu0 %v810, 16
        %v814 = vpop.permute.xlu0 %813
        %815 = vrot.lane.b32.xlu0 %v812, 16
        %v816 = vpop.permute.xlu0 %815
        %v819 = vadd.f32 %v704, %v814
        %v820 = vadd.f32 %v705, %v814
        %v821 = vadd.f32 %v706, %v816
        %v822 = vadd.f32 %v707, %v816
        %v823 = vperm.slane %v685, 7
        %825 = vrot.lane.b32.xlu0 %v823, 8
        %v826 = vpop.permute.xlu0 %825
        %v828 = vmul.f32 %v679, %v826
        %v829 = vmul.f32 %v682, %v826
        %v830 = vmul.f32 %v680, %v826
        %v831 = vmul.f32 %v683, %v826
        %v832 = vmul.f32 %v681, %v826
        %v833 = vmul.f32 %v684, %v826
        %v840 = vrot.slane %v828, 1
        %v841 = vrot.slane %v830, 1
        %v842 = vsel %vm729, %v840, %v841
        %v843 = vrot.slane %v829, 1
        %v844 = vrot.slane %v831, 1
        %v845 = vsel %vm729, %v843, %v844
        %v846 = vrot.slane %v832, 1
        %v847 = vsel %vm729, %v841, %v846
        %v848 = vrot.slane %v833, 1
        %v849 = vsel %vm729, %v844, %v848
        %850 = vrot.lane.b32.xlu0 %v842, 120
        %v851 = vpop.permute.xlu0 %850
        %852 = vrot.lane.b32.xlu0 %v845, 120
        %v853 = vpop.permute.xlu0 %852
        %854 = vrot.lane.b32.xlu0 %v847, 120
        %v855 = vpop.permute.xlu0 %854
        %856 = vrot.lane.b32.xlu0 %v849, 120
        %v857 = vpop.permute.xlu0 %856
        %858 = vrot.lane.b32.xlu0 %v846, 120
        %v859 = vpop.permute.xlu0 %858
        %860 = vrot.lane.b32.xlu0 %v848, 120
        %v861 = vpop.permute.xlu0 %860
        %v862 = vsel %vm748, %v851, %v853
        %v863 = vsel %vm748, %v855, %v857
        %v864 = vsel %vm748, %v859, %v861
        %v868 = vadd.f32 %v709, %v862
        %v869 = vadd.f32 %v710, %v863
        %v870 = vadd.f32 %v711, %v864
        %v871 = vperm.slane %v686, 0
        %873 = vrot.lane.b32.xlu0 %v871, 16
        %v874 = vpop.permute.xlu0 %873
        %v876 = vmul.f32 %v679, %v874
        %v877 = vmul.f32 %v682, %v874
        %v878 = vmul.f32 %v680, %v874
        %v879 = vmul.f32 %v683, %v874
        %v880 = vmul.f32 %v681, %v874
        %v881 = vmul.f32 %v684, %v874
        %v888 = vrot.slane %v876, 2
        %v889 = vrot.slane %v878, 2
        %v890 = vsel %vm807, %v888, %v889
        %v891 = vrot.slane %v877, 2
        %v892 = vrot.slane %v879, 2
        %v893 = vsel %vm807, %v891, %v892
        %v894 = vrot.slane %v880, 2
        %v895 = vsel %vm807, %v889, %v894
        %v896 = vrot.slane %v881, 2
        %v897 = vsel %vm807, %v892, %v896
        %898 = vrot.lane.b32.xlu0 %v890, 112
        %v899 = vpop.permute.xlu0 %898
        %900 = vrot.lane.b32.xlu0 %v893, 112
        %v901 = vpop.permute.xlu0 %900
        %902 = vrot.lane.b32.xlu0 %v895, 112
        %v903 = vpop.permute.xlu0 %902
        %904 = vrot.lane.b32.xlu0 %v897, 112
        %v905 = vpop.permute.xlu0 %904
        %vm906 = vcmask 916480
        %v907 = vsel %vm906, %v899, %v901
        %v908 = vsel %vm906, %v903, %v905
        %v911 = vadd.f32 %v753, %v907
        %v912 = vadd.f32 %v754, %v908
        %917 = vrot.lane.b32.xlu0 %v796, 120
        %v918 = vpop.permute.xlu0 %917
        %919 = vrot.lane.b32.xlu0 %v797, 120
        %v920 = vpop.permute.xlu0 %919
        %921 = vrot.lane.b32.xlu0 %v798, 120
        %v922 = vpop.permute.xlu0 %921
        %923 = vrot.lane.b32.xlu0 %v799, 120
        %v924 = vpop.permute.xlu0 %923
        %v925 = vsel %vm748, %v918, %v920
        %v926 = vsel %vm748, %v922, %v924
        %v929 = vadd.f32 %v911, %v925
        %v930 = vadd.f32 %v912, %v926
        %v934 = vrot.slane %v868, 1
        %v935 = vrot.slane %v869, 1
        %v936 = vsel %vm729, %v934, %v935
        %v937 = vrot.slane %v870, 1
        %v938 = vsel %vm729, %v935, %v937
        %939 = vrot.lane.b32.xlu0 %v936, 16
        %v940 = vpop.permute.xlu0 %939
        %941 = vrot.lane.b32.xlu0 %v938, 16
        %v942 = vpop.permute.xlu0 %941
        %v945 = vadd.f32 %v819, %v940
        %v946 = vadd.f32 %v820, %v940
        %v947 = vadd.f32 %v821, %v942
        %v948 = vadd.f32 %v822, %v942
        %953 = vrot.lane.b32.xlu0 %v945, 112
        %v954 = vpop.permute.xlu0 %953
        %955 = vrot.lane.b32.xlu0 %v946, 112
        %v956 = vpop.permute.xlu0 %955
        %957 = vrot.lane.b32.xlu0 %v947, 112
        %v958 = vpop.permute.xlu0 %957
        %959 = vrot.lane.b32.xlu0 %v948, 112
        %v960 = vpop.permute.xlu0 %959
        %v961 = vsel %vm906, %v954, %v956
        %v962 = vsel %vm906, %v958, %v960
        %v965 = vadd.f32 %v929, %v961
        %v966 = vadd.f32 %v930, %v962
        %v967 = vld [vmem:[%s2] sm:$0xff]
        %v968 = vld [vmem:[%s2 + $0x8] sm:$0xff]
        %v969 = vld [vmem:[%s2 + $0x10] sm:$0xff]
        %v970 = vld [vmem:[%s2 + $0x18] sm:$0xff]
        %v971 = vld [vmem:[%s2 + $0x20] sm:$0xff]
        %v972 = vld [vmem:[%s2 + $0x28] sm:$0xff]
        %v973 = vld [vmem:[%s2 + $0x30] sm:$0xff]
        %v974 = vld [vmem:[%s2 + $0x38] sm:$0xff]
        %v975 = vld [vmem:[%s2 + $0x40] sm:$0xff]
        %v976 = vld [vmem:[%s2 + $0x48] sm:$0xff]
        %v977 = vld [vmem:[%s2 + $0x50] sm:$0xff]
        %v978 = vld [vmem:[%s2 + $0x58] sm:$0xff]
        %v979 = vld [vmem:[%s2 + $0x60] sm:$0xff]
        %v980 = vld [vmem:[%s2 + $0x68] sm:$0xff]
        %v981 = vld [vmem:[%s2 + $0x70] sm:$0xff]
        %v982 = vld [vmem:[%s2 + $0x78] sm:$0xff]
        %v983 = vld [vmem:[%s3] sm:$0x1]
        %v984 = vld [vmem:[%s4] sm:$0x1]
        %v985 = vld [vmem:[%s5] sm:$0x1]
        %v986 = vadd.f32 %v965, %v966
        %v987 = vrot.slane %v986, 4
        %v988 = vadd.f32 %v986, %v987
        %v989 = vrot.slane %v988, 2
        %v990 = vadd.f32 %v988, %v989
        %v991 = vrot.slane %v990, 1
        %v992 = vadd.f32 %v990, %v991
        %v993 = vmul.f32 %v965, %v965
        %v994 = vmul.f32 %v966, %v966
        %v995 = vadd.f32 %v993, %v994
        %v996 = vrot.slane %v995, 4
        %v997 = vadd.f32 %v995, %v996
        %v998 = vrot.slane %v997, 2
        %v999 = vadd.f32 %v997, %v998
        %v1000 = vrot.slane %v999, 1
        %v1001 = vadd.f32 %v999, %v1000
        %v1002 = vsel %vm659, %v992, %v1001
        %1003 = vmatpush.msra.mxu0 %v982
        %1004 = vmatpush.msra.mxu0 %v981
        %1005 = vmatpush.msra.mxu0 %v980
        %1006 = vmatpush.msra.mxu0 %v979
        %1007 = vmatpush.msra.mxu0 %v978
        %1008 = vmatpush.msra.mxu0 %v977
        %1009 = vmatpush.msra.mxu0 %v976
        %1010 = vmatpush.msra.mxu0 %v975
        %1011 = vmatpush.msra.mxu0 %v974
        %1012 = vmatpush.msra.mxu0 %v973
        %1013 = vmatpush.msra.mxu0 %v972
        %1014 = vmatpush.msra.mxu0 %v971
        %1015 = vmatpush.msra.mxu0 %v970
        %1016 = vmatpush.msra.mxu0 %v969
        %1017 = vmatpush.msra.mxu0 %v968
        %1018 = vmatpush.msra.mxu0 %v967
        %1019 = vmatmul.f32.gmra.mxu0 %v1002
        %v1020 = vpop.f32.mrf.mxu0
        %v1021 = vadd.f32 0.0, %v1020
        %1022 = vdwg.mxu0
        %v1023 = vmul.f32 %v1021, 0.00048828125
        %vm1024 = vcmask 7168
        %v1026 = vsel %vm1024, %v1023, 0
        %v1029 = vsel %vm659, %v983, 0
        %1031 = vmatpush.msra.mxu0 0.0
        %1032 = vmatpush.msra.mxu0 0.0
        %1033 = vmatpush.msra.mxu0 0.0
        %1034 = vmatpush.msra.mxu0 0.0
        %1035 = vmatpush.msra.mxu0 0.0
        %1036 = vmatpush.msra.mxu0 0.0
        %1037 = vmatpush.msra.mxu0 0.0
        %1038 = vmatpush.msra.mxu0 0.0
        %1039 = vmatpush.msra.mxu0 0.0
        %1040 = vmatpush.msra.mxu0 0.0
        %1041 = vmatpush.msra.mxu0 0.0
        %1042 = vmatpush.msra.mxu0 0.0
        %1043 = vmatpush.msra.mxu0 0.0
        %1044 = vmatpush.msra.mxu0 0.0
        %1045 = vmatpush.msra.mxu0 0.0
        %1046 = vmatpush.msra.mxu0 %v1029
        %1047 = vmatmul.f32.gmra.mxu0 %v1026
        %v1048 = vpop.f32.mrf.mxu0
        %v1049 = vadd.f32 0.0, %v1048
        %1050 = vdwg.mxu0
        %v1051 = vmul.f32 %v1049, %v1049
        %v1053 = vrot.slane %v1051, 7
        %v1055 = vsub.f32 %v1049, %v1053
        %v1056 = vmax.f32 %v1055, 0.0
        %v1057 = vadd.f32 %v1056, 1e-05
        %v1058 = vrsqrt.pop %v1057
        %v1059 = vmul.f32 %v1058, %v1057
        %v1060 = vmul.f32 %v1059, %v1058
        %v1061 = vmul.f32 0.5, %v1060
        %v1062 = vsub.f32 1.5, %v1061
        %v1063 = vmul.f32 %v1058, %v1062
        %vm1064 = vweird.f32 %v1057
        %vm1065 = vweird.f32 %v1058
        %vm1066 = vmor %vm1064, %vm1065
        %v1067 = vsel %vm1066, %v1058, %v1063
        %v1069 = vperm.slane %v984, 0
        %v1071 = vmul.f32 %v1067, %v1069
        %v1073 = vrot.slane %v1071, 1
        %v1075 = vmul.f32 %v1049, %v1073
        %v1076 = vsub.f32 %v985, %v1075
        %v1077 = vperm.slane %v1071, 1
        %v1078 = vmul.f32 %v965, %v1077
        %v1079 = vmul.f32 %v966, %v1077
        %v1081 = vperm.slane %v1076, 0
        %v1083 = vadd.f32 %v1078, %v1081
        %v1084 = vadd.f32 %v1079, %v1081
        %v1085 = vmul.f32 %v1083, 0.5
        %v1086 = vmul.f32 %v1084, 0.5
        %v1087 = vtanh.pop %v1085
        %v1088 = vtanh.pop %v1086
        %v1089 = vmul.f32 %v1087, 0.5
        %v1090 = vmul.f32 %v1088, 0.5
        %v1091 = vadd.f32 %v1089, 0.5
        %v1092 = vadd.f32 %v1090, 0.5
        %v1093 = vmul.f32 %v1083, %v1091
        %v1094 = vmul.f32 %v1084, %v1092
        %v1095 = vld [vmem:[%s6] sm:$0xff]
        %v1096 = vld [vmem:[%s6 + $0x8] sm:$0xff]
        %v1097 = vld [vmem:[%s6 + $0x10] sm:$0xff]
        %v1098 = vld [vmem:[%s6 + $0x18] sm:$0xff]
        %v1099 = vld [vmem:[%s6 + $0x20] sm:$0xff]
        %v1100 = vld [vmem:[%s6 + $0x28] sm:$0xff]
        %v1101 = vld [vmem:[%s6 + $0x30] sm:$0xff]
        %v1102 = vld [vmem:[%s6 + $0x38] sm:$0xff]
        %v1103 = vld [vmem:[%s6 + $0x40] sm:$0xff]
        %v1104 = vld [vmem:[%s6 + $0x48] sm:$0xff]
        %v1105 = vld [vmem:[%s6 + $0x50] sm:$0xff]
        %v1106 = vld [vmem:[%s6 + $0x58] sm:$0xff]
        %v1107 = vld [vmem:[%s6 + $0x60] sm:$0xff]
        %v1108 = vld [vmem:[%s6 + $0x68] sm:$0xff]
        %v1109 = vld [vmem:[%s6 + $0x70] sm:$0xff]
        %v1110 = vld [vmem:[%s6 + $0x78] sm:$0xff]
        %v1111 = vld [vmem:[%s6 + $0x80] sm:$0xff]
        %v1112 = vld [vmem:[%s6 + $0x88] sm:$0xff]
        %v1113 = vld [vmem:[%s6 + $0x90] sm:$0xff]
        %v1114 = vld [vmem:[%s6 + $0x98] sm:$0xff]
        %v1115 = vld [vmem:[%s6 + $0xa0] sm:$0xff]
        %v1116 = vld [vmem:[%s6 + $0xa8] sm:$0xff]
        %v1117 = vld [vmem:[%s6 + $0xb0] sm:$0xff]
        %v1118 = vld [vmem:[%s6 + $0xb8] sm:$0xff]
        %v1119 = vld [vmem:[%s6 + $0xc0] sm:$0xff]
        %v1120 = vld [vmem:[%s6 + $0xc8] sm:$0xff]
        %v1121 = vld [vmem:[%s6 + $0xd0] sm:$0xff]
        %v1122 = vld [vmem:[%s6 + $0xd8] sm:$0xff]
        %v1123 = vld [vmem:[%s6 + $0xe0] sm:$0xff]
        %v1124 = vld [vmem:[%s6 + $0xe8] sm:$0xff]
        %v1125 = vld [vmem:[%s6 + $0xf0] sm:$0xff]
        %v1126 = vld [vmem:[%s6 + $0xf8] sm:$0xff]
        %1127 = vmatpush.msra.mxu0 %v1125
        %1128 = vmatpush.msra.mxu0 %v1123
        %1129 = vmatpush.msra.mxu0 %v1121
        %1130 = vmatpush.msra.mxu0 %v1119
        %1131 = vmatpush.msra.mxu0 %v1117
        %1132 = vmatpush.msra.mxu0 %v1115
        %1133 = vmatpush.msra.mxu0 %v1113
        %1134 = vmatpush.msra.mxu0 %v1111
        %1135 = vmatpush.msra.mxu0 %v1109
        %1136 = vmatpush.msra.mxu0 %v1107
        %1137 = vmatpush.msra.mxu0 %v1105
        %1138 = vmatpush.msra.mxu0 %v1103
        %1139 = vmatpush.msra.mxu0 %v1101
        %1140 = vmatpush.msra.mxu0 %v1099
        %1141 = vmatpush.msra.mxu0 %v1097
        %1142 = vmatpush.msra.mxu0 %v1095
        %1143 = vmatmul.f32.gmra.mxu0 %v1093
        %v1144 = vpop.f32.mrf.mxu0
        %v1145 = vadd.f32 0.0, %v1144
        %1146 = vmatmul.f32.gmra.mxu0 %v1094
        %v1147 = vpop.f32.mrf.mxu0
        %v1148 = vadd.f32 0.0, %v1147
        %1149 = vdwg.mxu0
        %1150 = vmatpush.msra.mxu0 %v1126
        %1151 = vmatpush.msra.mxu0 %v1124
        %1152 = vmatpush.msra.mxu0 %v1122
        %1153 = vmatpush.msra.mxu0 %v1120
        %1154 = vmatpush.msra.mxu0 %v1118
        %1155 = vmatpush.msra.mxu0 %v1116
        %1156 = vmatpush.msra.mxu0 %v1114
        %1157 = vmatpush.msra.mxu0 %v1112
        %1158 = vmatpush.msra.mxu0 %v1110
        %1159 = vmatpush.msra.mxu0 %v1108
        %1160 = vmatpush.msra.mxu0 %v1106
        %1161 = vmatpush.msra.mxu0 %v1104
        %1162 = vmatpush.msra.mxu0 %v1102
        %1163 = vmatpush.msra.mxu0 %v1100
        %1164 = vmatpush.msra.mxu0 %v1098
        %1165 = vmatpush.msra.mxu0 %v1096
        %1166 = vmatmul.f32.gmra.mxu0 %v1093
        %v1167 = vpop.f32.mrf.mxu0
        %v1168 = vadd.f32 0.0, %v1167
        %1169 = vmatmul.f32.gmra.mxu0 %v1094
        %v1170 = vpop.f32.mrf.mxu0
        %v1171 = vadd.f32 0.0, %v1170
        %1172 = vdwg.mxu0
        %v1173 = vld [vmem:[%s7] sm:$0xff]
        %v1174 = vld [vmem:[%s7 + $0x8] sm:$0xff]
        %v1175 = vld [vmem:[%s7 + $0x10] sm:$0xff]
        %v1176 = vld [vmem:[%s7 + $0x18] sm:$0xff]
        %v1177 = vld [vmem:[%s7 + $0x20] sm:$0xff]
        %v1178 = vld [vmem:[%s7 + $0x28] sm:$0xff]
        %v1179 = vld [vmem:[%s7 + $0x30] sm:$0xff]
        %v1180 = vld [vmem:[%s7 + $0x38] sm:$0xff]
        %v1181 = vld [vmem:[%s7 + $0x40] sm:$0xff]
        %v1182 = vld [vmem:[%s7 + $0x48] sm:$0xff]
        %v1183 = vld [vmem:[%s7 + $0x50] sm:$0xff]
        %v1184 = vld [vmem:[%s7 + $0x58] sm:$0xff]
        %v1185 = vld [vmem:[%s7 + $0x60] sm:$0xff]
        %v1186 = vld [vmem:[%s7 + $0x68] sm:$0xff]
        %v1187 = vld [vmem:[%s7 + $0x70] sm:$0xff]
        %v1188 = vld [vmem:[%s7 + $0x78] sm:$0xff]
        %v1189 = vld [vmem:[%s7 + $0x80] sm:$0xff]
        %v1190 = vld [vmem:[%s7 + $0x88] sm:$0xff]
        %v1191 = vld [vmem:[%s7 + $0x90] sm:$0xff]
        %v1192 = vld [vmem:[%s7 + $0x98] sm:$0xff]
        %v1193 = vld [vmem:[%s7 + $0xa0] sm:$0xff]
        %v1194 = vld [vmem:[%s7 + $0xa8] sm:$0xff]
        %v1195 = vld [vmem:[%s7 + $0xb0] sm:$0xff]
        %v1196 = vld [vmem:[%s7 + $0xb8] sm:$0xff]
        %v1197 = vld [vmem:[%s7 + $0xc0] sm:$0xff]
        %v1198 = vld [vmem:[%s7 + $0xc8] sm:$0xff]
        %v1199 = vld [vmem:[%s7 + $0xd0] sm:$0xff]
        %v1200 = vld [vmem:[%s7 + $0xd8] sm:$0xff]
        %v1201 = vld [vmem:[%s7 + $0xe0] sm:$0xff]
        %v1202 = vld [vmem:[%s7 + $0xe8] sm:$0xff]
        %v1203 = vld [vmem:[%s7 + $0xf0] sm:$0xff]
        %v1204 = vld [vmem:[%s7 + $0xf8] sm:$0xff]
        %v1205 = vld [vmem:[%s8] sm:$0xf]
        %v1206 = vld [vmem:[%s9] sm:$0x3]
        %v1207 = vld [vmem:[%s10] sm:$0x3]
        %v1208 = vadd.f32 %v1145, %v1148
        %v1209 = vrot.slane %v1208, 4
        %v1210 = vadd.f32 %v1208, %v1209
        %v1211 = vrot.slane %v1210, 2
        %v1212 = vadd.f32 %v1210, %v1211
        %v1213 = vrot.slane %v1212, 1
        %v1214 = vadd.f32 %v1212, %v1213
        %v1215 = vadd.f32 %v1168, %v1171
        %v1216 = vrot.slane %v1215, 4
        %v1217 = vadd.f32 %v1215, %v1216
        %v1218 = vrot.slane %v1217, 2
        %v1219 = vadd.f32 %v1217, %v1218
        %v1220 = vrot.slane %v1219, 1
        %v1221 = vadd.f32 %v1219, %v1220
        %v1222 = vmul.f32 %v1145, %v1145
        %v1223 = vmul.f32 %v1168, %v1168
        %v1224 = vmul.f32 %v1148, %v1148
        %v1225 = vmul.f32 %v1171, %v1171
        %v1226 = vadd.f32 %v1222, %v1224
        %v1227 = vrot.slane %v1226, 4
        %v1228 = vadd.f32 %v1226, %v1227
        %v1229 = vrot.slane %v1228, 2
        %v1230 = vadd.f32 %v1228, %v1229
        %v1231 = vrot.slane %v1230, 1
        %v1232 = vadd.f32 %v1230, %v1231
        %v1233 = vadd.f32 %v1223, %v1225
        %v1234 = vrot.slane %v1233, 4
        %v1235 = vadd.f32 %v1233, %v1234
        %v1236 = vrot.slane %v1235, 2
        %v1237 = vadd.f32 %v1235, %v1236
        %v1238 = vrot.slane %v1237, 1
        %v1239 = vadd.f32 %v1237, %v1238
        %v1240 = vsel %vm659, %v1214, %v1232
        %v1241 = vsel %vm659, %v1221, %v1239
        %1242 = vmatpush.msra.mxu0 %v1188
        %1243 = vmatpush.msra.mxu0 %v1187
        %1244 = vmatpush.msra.mxu0 %v1186
        %1245 = vmatpush.msra.mxu0 %v1185
        %1246 = vmatpush.msra.mxu0 %v1184
        %1247 = vmatpush.msra.mxu0 %v1183
        %1248 = vmatpush.msra.mxu0 %v1182
        %1249 = vmatpush.msra.mxu0 %v1181
        %1250 = vmatpush.msra.mxu0 %v1180
        %1251 = vmatpush.msra.mxu0 %v1179
        %1252 = vmatpush.msra.mxu0 %v1178
        %1253 = vmatpush.msra.mxu0 %v1177
        %1254 = vmatpush.msra.mxu0 %v1176
        %1255 = vmatpush.msra.mxu0 %v1175
        %1256 = vmatpush.msra.mxu0 %v1174
        %1257 = vmatpush.msra.mxu0 %v1173
        %1258 = vmatmul.f32.gmra.mxu0 %v1240
        %v1259 = vpop.f32.mrf.mxu0
        %v1260 = vadd.f32 0.0, %v1259
        %1261 = vdwg.mxu0
        %1262 = vmatpush.msra.mxu0 %v1204
        %1263 = vmatpush.msra.mxu0 %v1203
        %1264 = vmatpush.msra.mxu0 %v1202
        %1265 = vmatpush.msra.mxu0 %v1201
        %1266 = vmatpush.msra.mxu0 %v1200
        %1267 = vmatpush.msra.mxu0 %v1199
        %1268 = vmatpush.msra.mxu0 %v1198
        %1269 = vmatpush.msra.mxu0 %v1197
        %1270 = vmatpush.msra.mxu0 %v1196
        %1271 = vmatpush.msra.mxu0 %v1195
        %1272 = vmatpush.msra.mxu0 %v1194
        %1273 = vmatpush.msra.mxu0 %v1193
        %1274 = vmatpush.msra.mxu0 %v1192
        %1275 = vmatpush.msra.mxu0 %v1191
        %1276 = vmatpush.msra.mxu0 %v1190
        %1277 = vmatpush.msra.mxu0 %v1189
        %1278 = vmatmul.f32.gmra.mxu0 %v1241
        %v1279 = vpop.f32.mrf.mxu0
        %v1280 = vadd.f32 %v1260, %v1279
        %1281 = vdwg.mxu0
        %v1282 = vmul.f32 %v1280, 0.00048828125
        %1284 = vst [vmem:[#allocation1] ss:$4 sm:$0xff] %v1205
        %v1285 = vld.sshfl [vmem:[#allocation1] sm:$0xff pattern:$0x73625140]
        %v1286 = vld.sshfl [vmem:[#allocation1 + $0x8] sm:$0xff pattern:$0x73625140]
        %vm1287 = vcmask 15360
        %v1289 = vsel %vm1287, %v1282, 0
        %vm1291 = vcmask 1041408
        %v1292 = vsel %vm1291, %v1285, 0
        %v1294 = vsel %vm1291, %v1286, 0
        %1296 = vmatpush.msra.mxu0 0.0
        %1297 = vmatpush.msra.mxu0 0.0
        %1298 = vmatpush.msra.mxu0 0.0
        %1299 = vmatpush.msra.mxu0 0.0
        %1300 = vmatpush.msra.mxu0 0.0
        %1301 = vmatpush.msra.mxu0 0.0
        %1302 = vmatpush.msra.mxu0 0.0
        %1303 = vmatpush.msra.mxu0 0.0
        %1304 = vmatpush.msra.mxu0 0.0
        %1305 = vmatpush.msra.mxu0 0.0
        %1306 = vmatpush.msra.mxu0 0.0
        %1307 = vmatpush.msra.mxu0 0.0
        %1308 = vmatpush.msra.mxu0 0.0
        %1309 = vmatpush.msra.mxu0 0.0
        %1310 = vmatpush.msra.mxu0 0.0
        %1311 = vmatpush.msra.mxu0 %v1292
        %1312 = vmatmul.f32.gmra.mxu0 %v1289
        %v1313 = vpop.f32.mrf.mxu0
        %v1314 = vadd.f32 0.0, %v1313
        %1315 = vdwg.mxu0
        %1316 = vmatpush.msra.mxu0 0.0
        %1317 = vmatpush.msra.mxu0 0.0
        %1318 = vmatpush.msra.mxu0 0.0
        %1319 = vmatpush.msra.mxu0 0.0
        %1320 = vmatpush.msra.mxu0 0.0
        %1321 = vmatpush.msra.mxu0 0.0
        %1322 = vmatpush.msra.mxu0 0.0
        %1323 = vmatpush.msra.mxu0 0.0
        %1324 = vmatpush.msra.mxu0 0.0
        %1325 = vmatpush.msra.mxu0 0.0
        %1326 = vmatpush.msra.mxu0 0.0
        %1327 = vmatpush.msra.mxu0 0.0
        %1328 = vmatpush.msra.mxu0 0.0
        %1329 = vmatpush.msra.mxu0 0.0
        %1330 = vmatpush.msra.mxu0 0.0
        %1331 = vmatpush.msra.mxu0 %v1294
        %1332 = vmatmul.f32.gmra.mxu0 %v1289
        %v1333 = vpop.f32.mrf.mxu0
        %v1334 = vadd.f32 0.0, %v1333
        %1335 = vdwg.mxu0
        %v1336 = vmul.f32 %v1314, %v1314
        %v1337 = vmul.f32 %v1334, %v1334
        %v1340 = vrot.slane %v1336, 7
        %v1341 = vrot.slane %v1337, 7
        %v1344 = vsub.f32 %v1314, %v1340
        %v1345 = vsub.f32 %v1334, %v1341
        %v1346 = vmax.f32 %v1344, 0.0
        %v1347 = vmax.f32 %v1345, 0.0
        %v1348 = vadd.f32 %v1346, 1e-05
        %v1349 = vadd.f32 %v1347, 1e-05
        %v1350 = vrsqrt.pop %v1348
        %v1351 = vmul.f32 %v1350, %v1348
        %v1352 = vmul.f32 %v1351, %v1350
        %v1353 = vmul.f32 0.5, %v1352
        %v1354 = vsub.f32 1.5, %v1353
        %v1355 = vmul.f32 %v1350, %v1354
        %vm1356 = vweird.f32 %v1348
        %vm1357 = vweird.f32 %v1350
        %vm1358 = vmor %vm1356, %vm1357
        %v1359 = vsel %vm1358, %v1350, %v1355
        %v1360 = vrsqrt.pop %v1349
        %v1361 = vmul.f32 %v1360, %v1349
        %v1362 = vmul.f32 %v1361, %v1360
        %v1363 = vmul.f32 0.5, %v1362
        %v1364 = vsub.f32 1.5, %v1363
        %v1365 = vmul.f32 %v1360, %v1364
        %vm1366 = vweird.f32 %v1349
        %vm1367 = vweird.f32 %v1360
        %vm1368 = vmor %vm1366, %vm1367
        %v1369 = vsel %vm1368, %v1360, %v1365
        %v1371 = vperm.slane %v1206, 0
        %v1372 = vperm.slane %v1206, 1
        %v1375 = vmul.f32 %v1359, %v1371
        %v1376 = vmul.f32 %v1369, %v1372
        %v1379 = vrot.slane %v1375, 1
        %v1380 = vrot.slane %v1376, 1
        %v1383 = vmul.f32 %v1314, %v1379
        %v1384 = vmul.f32 %v1334, %v1380
        %v1387 = vrot.slane %v1384, 7
        %v1388 = vsel %vm659, %v1383, %v1387
        %v1390 = vsub.f32 %v1207, %v1388
        %v1391 = vperm.slane %v1375, 1
        %v1392 = vperm.slane %v1376, 1
        %v1393 = vmul.f32 %v1145, %v1391
        %v1394 = vmul.f32 %v1168, %v1392
        %v1395 = vmul.f32 %v1148, %v1391
        %v1396 = vmul.f32 %v1171, %v1392
        %v1398 = vperm.slane %v1390, 0
        %v1399 = vperm.slane %v1390, 1
        %v1402 = vadd.f32 %v1393, %v1398
        %v1403 = vadd.f32 %v1394, %v1399
        %v1404 = vadd.f32 %v1395, %v1398
        %v1405 = vadd.f32 %v1396, %v1399
        %v1406 = vmul.f32 %v1402, 0.5
        %v1407 = vmul.f32 %v1403, 0.5
        %v1408 = vmul.f32 %v1404, 0.5
        %v1409 = vmul.f32 %v1405, 0.5
        %v1410 = vtanh.pop %v1406
        %v1411 = vtanh.pop %v1407
        %v1412 = vtanh.pop %v1408
        %v1413 = vtanh.pop %v1409
        %v1414 = vmul.f32 %v1410, 0.5
        %v1415 = vmul.f32 %v1411, 0.5
        %v1416 = vmul.f32 %v1412, 0.5
        %v1417 = vmul.f32 %v1413, 0.5
        %v1418 = vadd.f32 %v1414, 0.5
        %v1419 = vadd.f32 %v1415, 0.5
        %v1420 = vadd.f32 %v1416, 0.5
        %v1421 = vadd.f32 %v1417, 0.5
        %v1422 = vmul.f32 %v1402, %v1418
        %v1423 = vmul.f32 %v1403, %v1419
        %v1424 = vmul.f32 %v1404, %v1420
        %v1425 = vmul.f32 %v1405, %v1421
        %v1430 = vrot.slane %v1422, 7
        %v1431 = vrot.slane %v1423, 7
        %v1432 = vrot.slane %v1424, 7
        %v1433 = vsel %vm659, %v1430, %v1432
        %v1434 = vrot.slane %v1425, 7
        %v1435 = vsel %vm659, %v1431, %v1434
        %v1440 = vsel %vm659, 0.0, %v1430
        %v1441 = vsel %vm659, 0.0, %v1431
        %v1442 = vsel %vm659, %v1432, 0.0
        %v1443 = vsel %vm659, %v1434, 0.0
        %1448 = vrot.lane.b32.xlu0 %v1440, 16
        %v1449 = vpop.permute.xlu0 %1448
        %1450 = vrot.lane.b32.xlu0 %v1441, 16
        %v1451 = vpop.permute.xlu0 %1450
        %1452 = vrot.lane.b32.xlu0 %v1433, 16
        %v1453 = vpop.permute.xlu0 %1452
        %1454 = vrot.lane.b32.xlu0 %v1435, 16
        %v1455 = vpop.permute.xlu0 %1454
        %1456 = vrot.lane.b32.xlu0 %v1442, 16
        %v1457 = vpop.permute.xlu0 %1456
        %1458 = vrot.lane.b32.xlu0 %v1443, 16
        %v1459 = vpop.permute.xlu0 %1458
        %vm1460 = vcmask 130048
        %v1461 = vsel %vm1460, %v1449, %v1451
        %v1462 = vsel %vm1460, %v1453, %v1455
        %v1463 = vsel %vm1460, %v1457, %v1459
        %v1473 = vsel %vm1460, 0.0, %v1449
        %v1474 = vsel %vm1460, 0.0, %v1453
        %v1475 = vsel %vm1460, 0.0, %v1457
        %v1476 = vsel %vm1460, %v1451, 0.0
        %v1477 = vsel %vm1460, %v1455, 0.0
        %v1478 = vsel %vm1460, %v1459, 0.0
        %v1479 = vld [vmem:[%s11] sm:$0xff]
        %v1480 = vld [vmem:[%s11 + $0x8] sm:$0xff]
        %v1481 = vld [vmem:[%s11 + $0x10] sm:$0x1]
        %v1482 = vld [vmem:[%s11 + $0x18] sm:$0x1]
        %v1483 = vperm.slane %v1479, 0
        %v1484 = vperm.slane %v1480, 0
        %v1485 = vmul.f32 %v1473, %v1483
        %v1486 = vmul.f32 %v1461, %v1484
        %v1487 = vmul.f32 %v1474, %v1483
        %v1488 = vmul.f32 %v1462, %v1484
        %v1489 = vperm.slane %v1479, 1
        %v1490 = vperm.slane %v1480, 1
        %1493 = vrot.lane.b32.xlu0 %v1489, 16
        %v1494 = vpop.permute.xlu0 %1493
        %1495 = vrot.lane.b32.xlu0 %v1490, 16
        %v1496 = vpop.permute.xlu0 %1495
        %v1497 = vsel %vm1460, %v1494, %v1496
        %v1501 = vmul.f32 %v1473, %v1494
        %v1502 = vmul.f32 %v1461, %v1497
        %v1503 = vmul.f32 %v1476, %v1496
        %v1504 = vmul.f32 %v1474, %v1494
        %v1505 = vmul.f32 %v1462, %v1497
        %v1506 = vmul.f32 %v1477, %v1496
        %v1507 = vperm.slane %v1479, 2
        %v1508 = vperm.slane %v1480, 2
        %1511 = vrot.lane.b32.xlu0 %v1507, 32
        %v1512 = vpop.permute.xlu0 %1511
        %1513 = vrot.lane.b32.xlu0 %v1508, 32
        %v1514 = vpop.permute.xlu0 %1513
        %vm1515 = vcmask 261120
        %v1516 = vsel %vm1515, %v1512, %v1514
        %v1520 = vmul.f32 %v1473, %v1512
        %v1521 = vmul.f32 %v1461, %v1516
        %v1522 = vmul.f32 %v1476, %v1514
        %v1523 = vmul.f32 %v1474, %v1512
        %v1524 = vmul.f32 %v1462, %v1516
        %v1525 = vmul.f32 %v1477, %v1514
        %v1526 = vperm.slane %v1479, 3
        %v1527 = vperm.slane %v1480, 3
        %v1528 = vmul.f32 %v1473, %v1526
        %v1529 = vmul.f32 %v1461, %v1527
        %v1530 = vmul.f32 %v1474, %v1526
        %v1531 = vmul.f32 %v1462, %v1527
        %v1532 = vmul.f32 %v1475, %v1526
        %v1533 = vmul.f32 %v1463, %v1527
        %v1534 = vperm.slane %v1479, 4
        %v1535 = vperm.slane %v1480, 4
        %1538 = vrot.lane.b32.xlu0 %v1534, 16
        %v1539 = vpop.permute.xlu0 %1538
        %1540 = vrot.lane.b32.xlu0 %v1535, 16
        %v1541 = vpop.permute.xlu0 %1540
        %v1542 = vsel %vm1460, %v1539, %v1541
        %v1546 = vmul.f32 %v1473, %v1539
        %v1547 = vmul.f32 %v1461, %v1542
        %v1548 = vmul.f32 %v1476, %v1541
        %v1549 = vmul.f32 %v1474, %v1539
        %v1550 = vmul.f32 %v1462, %v1542
        %v1551 = vmul.f32 %v1477, %v1541
        %v1552 = vmul.f32 %v1475, %v1539
        %v1553 = vmul.f32 %v1463, %v1542
        %v1554 = vmul.f32 %v1478, %v1541
        %v1564 = vrot.slane %v1546, 1
        %v1565 = vrot.slane %v1549, 1
        %v1566 = vsel %vm729, %v1564, %v1565
        %v1567 = vrot.slane %v1547, 1
        %v1568 = vrot.slane %v1550, 1
        %v1569 = vsel %vm729, %v1567, %v1568
        %v1570 = vrot.slane %v1548, 1
        %v1571 = vrot.slane %v1551, 1
        %v1572 = vsel %vm729, %v1570, %v1571
        %v1573 = vrot.slane %v1552, 1
        %v1574 = vsel %vm729, %v1565, %v1573
        %v1575 = vrot.slane %v1553, 1
        %v1576 = vsel %vm729, %v1568, %v1575
        %v1577 = vrot.slane %v1554, 1
        %v1578 = vsel %vm729, %v1571, %v1577
        %1579 = vrot.lane.b32.xlu0 %v1566, 112
        %v1580 = vpop.permute.xlu0 %1579
        %1581 = vrot.lane.b32.xlu0 %v1569, 112
        %v1582 = vpop.permute.xlu0 %1581
        %1583 = vrot.lane.b32.xlu0 %v1572, 112
        %v1584 = vpop.permute.xlu0 %1583
        %1585 = vrot.lane.b32.xlu0 %v1574, 112
        %v1586 = vpop.permute.xlu0 %1585
        %1587 = vrot.lane.b32.xlu0 %v1576, 112
        %v1588 = vpop.permute.xlu0 %1587
        %1589 = vrot.lane.b32.xlu0 %v1578, 112
        %v1590 = vpop.permute.xlu0 %1589
        %v1591 = vsel %vm906, %v1580, %v1582
        %v1592 = vsel %vm906, %v1582, %v1584
        %v1593 = vsel %vm906, %v1586, %v1588
        %v1594 = vsel %vm906, %v1588, %v1590
        %v1599 = vadd.f32 %v1485, %v1591
        %v1600 = vadd.f32 %v1486, %v1592
        %v1601 = vadd.f32 %v1487, %v1593
        %v1602 = vadd.f32 %v1488, %v1594
        %v1603 = vperm.slane %v1479, 5
        %v1604 = vperm.slane %v1480, 5
        %1607 = vrot.lane.b32.xlu0 %v1603, 32
        %v1608 = vpop.permute.xlu0 %1607
        %1609 = vrot.lane.b32.xlu0 %v1604, 32
        %v1610 = vpop.permute.xlu0 %1609
        %v1611 = vsel %vm1515, %v1608, %v1610
        %v1615 = vmul.f32 %v1473, %v1608
        %v1616 = vmul.f32 %v1461, %v1611
        %v1617 = vmul.f32 %v1476, %v1610
        %v1618 = vmul.f32 %v1474, %v1608
        %v1619 = vmul.f32 %v1462, %v1611
        %v1620 = vmul.f32 %v1477, %v1610
        %v1621 = vmul.f32 %v1475, %v1608
        %v1622 = vmul.f32 %v1463, %v1611
        %v1623 = vmul.f32 %v1478, %v1610
        %v1633 = vrot.slane %v1615, 1
        %v1634 = vrot.slane %v1618, 1
        %v1635 = vsel %vm729, %v1633, %v1634
        %v1636 = vrot.slane %v1616, 1
        %v1637 = vrot.slane %v1619, 1
        %v1638 = vsel %vm729, %v1636, %v1637
        %v1639 = vrot.slane %v1617, 1
        %v1640 = vrot.slane %v1620, 1
        %v1641 = vsel %vm729, %v1639, %v1640
        %v1642 = vrot.slane %v1621, 1
        %v1643 = vsel %vm729, %v1634, %v1642
        %v1644 = vrot.slane %v1622, 1
        %v1645 = vsel %vm729, %v1637, %v1644
        %v1646 = vrot.slane %v1623, 1
        %v1647 = vsel %vm729, %v1640, %v1646
        %1648 = vrot.lane.b32.xlu0 %v1635, 112
        %v1649 = vpop.permute.xlu0 %1648
        %1650 = vrot.lane.b32.xlu0 %v1638, 112
        %v1651 = vpop.permute.xlu0 %1650
        %1652 = vrot.lane.b32.xlu0 %v1641, 112
        %v1653 = vpop.permute.xlu0 %1652
        %1654 = vrot.lane.b32.xlu0 %v1643, 112
        %v1655 = vpop.permute.xlu0 %1654
        %1656 = vrot.lane.b32.xlu0 %v1645, 112
        %v1657 = vpop.permute.xlu0 %1656
        %1658 = vrot.lane.b32.xlu0 %v1647, 112
        %v1659 = vpop.permute.xlu0 %1658
        %v1660 = vsel %vm906, %v1649, %v1651
        %v1661 = vsel %vm906, %v1651, %v1653
        %v1662 = vsel %vm906, %v1655, %v1657
        %v1663 = vsel %vm906, %v1657, %v1659
        %v1670 = vadd.f32 %v1501, %v1660
        %v1671 = vadd.f32 %v1502, %v1661
        %v1672 = vadd.f32 %v1503, %v1653
        %v1673 = vadd.f32 %v1504, %v1662
        %v1674 = vadd.f32 %v1505, %v1663
        %v1675 = vadd.f32 %v1506, %v1659
        %v1676 = vperm.slane %v1479, 6
        %v1677 = vperm.slane %v1480, 6
        %v1678 = vmul.f32 %v1473, %v1676
        %v1679 = vmul.f32 %v1461, %v1677
        %v1680 = vmul.f32 %v1474, %v1676
        %v1681 = vmul.f32 %v1462, %v1677
        %v1682 = vmul.f32 %v1475, %v1676
        %v1683 = vmul.f32 %v1463, %v1677
        %v1690 = vrot.slane %v1678, 2
        %v1691 = vrot.slane %v1680, 2
        %v1692 = vsel %vm807, %v1690, %v1691
        %v1693 = vrot.slane %v1679, 2
        %v1694 = vrot.slane %v1681, 2
        %v1695 = vsel %vm807, %v1693, %v1694
        %v1696 = vrot.slane %v1682, 2
        %v1697 = vsel %vm807, %v1691, %v1696
        %v1698 = vrot.slane %v1683, 2
        %v1699 = vsel %vm807, %v1694, %v1698
        %1700 = vrot.lane.b32.xlu0 %v1692, 32
        %v1701 = vpop.permute.xlu0 %1700
        %1702 = vrot.lane.b32.xlu0 %v1695, 32
        %v1703 = vpop.permute.xlu0 %1702
        %1704 = vrot.lane.b32.xlu0 %v1697, 32
        %v1705 = vpop.permute.xlu0 %1704
        %1706 = vrot.lane.b32.xlu0 %v1699, 32
        %v1707 = vpop.permute.xlu0 %1706
        %v1708 = vsel %vm1515, %v1701, %v1703
        %v1709 = vsel %vm1515, %v1705, %v1707
        %v1716 = vadd.f32 %v1520, %v1701
        %v1717 = vadd.f32 %v1521, %v1708
        %v1718 = vadd.f32 %v1522, %v1703
        %v1719 = vadd.f32 %v1523, %v1705
        %v1720 = vadd.f32 %v1524, %v1709
        %v1721 = vadd.f32 %v1525, %v1707
        %v1722 = vperm.slane %v1479, 7
        %v1723 = vperm.slane %v1480, 7
        %1726 = vrot.lane.b32.xlu0 %v1722, 16
        %v1727 = vpop.permute.xlu0 %1726
        %1728 = vrot.lane.b32.xlu0 %v1723, 16
        %v1729 = vpop.permute.xlu0 %1728
        %v1730 = vsel %vm1460, %v1727, %v1729
        %v1734 = vmul.f32 %v1473, %v1727
        %v1735 = vmul.f32 %v1461, %v1730
        %v1736 = vmul.f32 %v1476, %v1729
        %v1737 = vmul.f32 %v1474, %v1727
        %v1738 = vmul.f32 %v1462, %v1730
        %v1739 = vmul.f32 %v1477, %v1729
        %v1740 = vmul.f32 %v1475, %v1727
        %v1741 = vmul.f32 %v1463, %v1730
        %v1742 = vmul.f32 %v1478, %v1729
        %v1752 = vrot.slane %v1734, 1
        %v1753 = vrot.slane %v1737, 1
        %v1754 = vsel %vm729, %v1752, %v1753
        %v1755 = vrot.slane %v1735, 1
        %v1756 = vrot.slane %v1738, 1
        %v1757 = vsel %vm729, %v1755, %v1756
        %v1758 = vrot.slane %v1736, 1
        %v1759 = vrot.slane %v1739, 1
        %v1760 = vsel %vm729, %v1758, %v1759
        %v1761 = vrot.slane %v1740, 1
        %v1762 = vsel %vm729, %v1753, %v1761
        %v1763 = vrot.slane %v1741, 1
        %v1764 = vsel %vm729, %v1756, %v1763
        %v1765 = vrot.slane %v1742, 1
        %v1766 = vsel %vm729, %v1759, %v1765
        %1767 = vrot.lane.b32.xlu0 %v1754, 112
        %v1768 = vpop.permute.xlu0 %1767
        %1769 = vrot.lane.b32.xlu0 %v1757, 112
        %v1770 = vpop.permute.xlu0 %1769
        %1771 = vrot.lane.b32.xlu0 %v1760, 112
        %v1772 = vpop.permute.xlu0 %1771
        %1773 = vrot.lane.b32.xlu0 %v1762, 112
        %v1774 = vpop.permute.xlu0 %1773
        %1775 = vrot.lane.b32.xlu0 %v1764, 112
        %v1776 = vpop.permute.xlu0 %1775
        %1777 = vrot.lane.b32.xlu0 %v1766, 112
        %v1778 = vpop.permute.xlu0 %1777
        %1779 = vrot.lane.b32.xlu0 %v1761, 112
        %v1780 = vpop.permute.xlu0 %1779
        %1781 = vrot.lane.b32.xlu0 %v1763, 112
        %v1782 = vpop.permute.xlu0 %1781
        %1783 = vrot.lane.b32.xlu0 %v1765, 112
        %v1784 = vpop.permute.xlu0 %1783
        %v1785 = vsel %vm906, %v1768, %v1770
        %v1786 = vsel %vm906, %v1770, %v1772
        %v1787 = vsel %vm906, %v1774, %v1776
        %v1788 = vsel %vm906, %v1776, %v1778
        %v1789 = vsel %vm906, %v1780, %v1782
        %v1790 = vsel %vm906, %v1782, %v1784
        %v1797 = vadd.f32 %v1528, %v1785
        %v1798 = vadd.f32 %v1529, %v1786
        %v1799 = vadd.f32 %v1530, %v1787
        %v1800 = vadd.f32 %v1531, %v1788
        %v1801 = vadd.f32 %v1532, %v1789
        %v1802 = vadd.f32 %v1533, %v1790
        %v1803 = vperm.slane %v1481, 0
        %v1804 = vperm.slane %v1482, 0
        %1807 = vrot.lane.b32.xlu0 %v1803, 32
        %v1808 = vpop.permute.xlu0 %1807
        %1809 = vrot.lane.b32.xlu0 %v1804, 32
        %v1810 = vpop.permute.xlu0 %1809
        %v1811 = vsel %vm1515, %v1808, %v1810
        %v1815 = vmul.f32 %v1473, %v1808
        %v1816 = vmul.f32 %v1461, %v1811
        %v1817 = vmul.f32 %v1476, %v1810
        %v1818 = vmul.f32 %v1474, %v1808
        %v1819 = vmul.f32 %v1462, %v1811
        %v1820 = vmul.f32 %v1477, %v1810
        %v1821 = vmul.f32 %v1475, %v1808
        %v1822 = vmul.f32 %v1463, %v1811
        %v1823 = vmul.f32 %v1478, %v1810
        %v1833 = vrot.slane %v1815, 2
        %v1834 = vrot.slane %v1818, 2
        %v1835 = vsel %vm807, %v1833, %v1834
        %v1836 = vrot.slane %v1816, 2
        %v1837 = vrot.slane %v1819, 2
        %v1838 = vsel %vm807, %v1836, %v1837
        %v1839 = vrot.slane %v1817, 2
        %v1840 = vrot.slane %v1820, 2
        %v1841 = vsel %vm807, %v1839, %v1840
        %v1842 = vrot.slane %v1821, 2
        %v1843 = vsel %vm807, %v1834, %v1842
        %v1844 = vrot.slane %v1822, 2
        %v1845 = vsel %vm807, %v1837, %v1844
        %v1846 = vrot.slane %v1823, 2
        %v1847 = vsel %vm807, %v1840, %v1846
        %1848 = vrot.lane.b32.xlu0 %v1835, 96
        %v1849 = vpop.permute.xlu0 %1848
        %1850 = vrot.lane.b32.xlu0 %v1838, 96
        %v1851 = vpop.permute.xlu0 %1850
        %1852 = vrot.lane.b32.xlu0 %v1841, 96
        %v1853 = vpop.permute.xlu0 %1852
        %1854 = vrot.lane.b32.xlu0 %v1843, 96
        %v1855 = vpop.permute.xlu0 %1854
        %1856 = vrot.lane.b32.xlu0 %v1845, 96
        %v1857 = vpop.permute.xlu0 %1856
        %1858 = vrot.lane.b32.xlu0 %v1847, 96
        %v1859 = vpop.permute.xlu0 %1858
        %vm1860 = vcmask 785408
        %v1861 = vsel %vm1860, %v1849, %v1851
        %v1862 = vsel %vm1860, %v1851, %v1853
        %v1863 = vsel %vm1860, %v1855, %v1857
        %v1864 = vsel %vm1860, %v1857, %v1859
        %v1869 = vadd.f32 %v1599, %v1861
        %v1870 = vadd.f32 %v1600, %v1862
        %v1871 = vadd.f32 %v1601, %v1863
        %v1872 = vadd.f32 %v1602, %v1864
        %1879 = vrot.lane.b32.xlu0 %v1670, 112
        %v1880 = vpop.permute.xlu0 %1879
        %1881 = vrot.lane.b32.xlu0 %v1671, 112
        %v1882 = vpop.permute.xlu0 %1881
        %1883 = vrot.lane.b32.xlu0 %v1672, 112
        %v1884 = vpop.permute.xlu0 %1883
        %1885 = vrot.lane.b32.xlu0 %v1673, 112
        %v1886 = vpop.permute.xlu0 %1885
        %1887 = vrot.lane.b32.xlu0 %v1674, 112
        %v1888 = vpop.permute.xlu0 %1887
        %1889 = vrot.lane.b32.xlu0 %v1675, 112
        %v1890 = vpop.permute.xlu0 %1889
        %v1891 = vsel %vm906, %v1880, %v1882
        %v1892 = vsel %vm906, %v1882, %v1884
        %v1893 = vsel %vm906, %v1886, %v1888
        %v1894 = vsel %vm906, %v1888, %v1890
        %v1899 = vadd.f32 %v1869, %v1891
        %v1900 = vadd.f32 %v1870, %v1892
        %v1901 = vadd.f32 %v1871, %v1893
        %v1902 = vadd.f32 %v1872, %v1894
        %v1909 = vrot.slane %v1797, 1
        %v1910 = vrot.slane %v1799, 1
        %v1911 = vsel %vm729, %v1909, %v1910
        %v1912 = vrot.slane %v1798, 1
        %v1913 = vrot.slane %v1800, 1
        %v1914 = vsel %vm729, %v1912, %v1913
        %v1915 = vrot.slane %v1801, 1
        %v1916 = vsel %vm729, %v1910, %v1915
        %v1917 = vrot.slane %v1802, 1
        %v1918 = vsel %vm729, %v1913, %v1917
        %1919 = vrot.lane.b32.xlu0 %v1911, 32
        %v1920 = vpop.permute.xlu0 %1919
        %1921 = vrot.lane.b32.xlu0 %v1914, 32
        %v1922 = vpop.permute.xlu0 %1921
        %1923 = vrot.lane.b32.xlu0 %v1916, 32
        %v1924 = vpop.permute.xlu0 %1923
        %1925 = vrot.lane.b32.xlu0 %v1918, 32
        %v1926 = vpop.permute.xlu0 %1925
        %v1927 = vsel %vm1515, %v1920, %v1922
        %v1928 = vsel %vm1515, %v1924, %v1926
        %v1935 = vadd.f32 %v1716, %v1920
        %v1936 = vadd.f32 %v1717, %v1927
        %v1937 = vadd.f32 %v1718, %v1922
        %v1938 = vadd.f32 %v1719, %v1924
        %v1939 = vadd.f32 %v1720, %v1928
        %v1940 = vadd.f32 %v1721, %v1926
        %1947 = vrot.lane.b32.xlu0 %v1935, 96
        %v1948 = vpop.permute.xlu0 %1947
        %1949 = vrot.lane.b32.xlu0 %v1936, 96
        %v1950 = vpop.permute.xlu0 %1949
        %1951 = vrot.lane.b32.xlu0 %v1937, 96
        %v1952 = vpop.permute.xlu0 %1951
        %1953 = vrot.lane.b32.xlu0 %v1938, 96
        %v1954 = vpop.permute.xlu0 %1953
        %1955 = vrot.lane.b32.xlu0 %v1939, 96
        %v1956 = vpop.permute.xlu0 %1955
        %1957 = vrot.lane.b32.xlu0 %v1940, 96
        %v1958 = vpop.permute.xlu0 %1957
        %v1959 = vsel %vm1860, %v1948, %v1950
        %v1960 = vsel %vm1860, %v1950, %v1952
        %v1961 = vsel %vm1860, %v1954, %v1956
        %v1962 = vsel %vm1860, %v1956, %v1958
        %v1967 = vadd.f32 %v1899, %v1959
        %v1968 = vadd.f32 %v1900, %v1960
        %v1969 = vadd.f32 %v1901, %v1961
        %v1970 = vadd.f32 %v1902, %v1962
        %v1971 = vld [vmem:[%s12] sm:$0xff]
        %v1972 = vld [vmem:[%s12 + $0x8] sm:$0xff]
        %v1973 = vld [vmem:[%s12 + $0x10] sm:$0xff]
        %v1974 = vld [vmem:[%s12 + $0x18] sm:$0xff]
        %v1975 = vld [vmem:[%s12 + $0x20] sm:$0xff]
        %v1976 = vld [vmem:[%s12 + $0x28] sm:$0xff]
        %v1977 = vld [vmem:[%s12 + $0x30] sm:$0xff]
        %v1978 = vld [vmem:[%s12 + $0x38] sm:$0xff]
        %v1979 = vld [vmem:[%s12 + $0x40] sm:$0xff]
        %v1980 = vld [vmem:[%s12 + $0x48] sm:$0xff]
        %v1981 = vld [vmem:[%s12 + $0x50] sm:$0xff]
        %v1982 = vld [vmem:[%s12 + $0x58] sm:$0xff]
        %v1983 = vld [vmem:[%s12 + $0x60] sm:$0xff]
        %v1984 = vld [vmem:[%s12 + $0x68] sm:$0xff]
        %v1985 = vld [vmem:[%s12 + $0x70] sm:$0xff]
        %v1986 = vld [vmem:[%s12 + $0x78] sm:$0xff]
        %v1987 = vld [vmem:[%s12 + $0x80] sm:$0xff]
        %v1988 = vld [vmem:[%s12 + $0x88] sm:$0xff]
        %v1989 = vld [vmem:[%s12 + $0x90] sm:$0xff]
        %v1990 = vld [vmem:[%s12 + $0x98] sm:$0xff]
        %v1991 = vld [vmem:[%s12 + $0xa0] sm:$0xff]
        %v1992 = vld [vmem:[%s12 + $0xa8] sm:$0xff]
        %v1993 = vld [vmem:[%s12 + $0xb0] sm:$0xff]
        %v1994 = vld [vmem:[%s12 + $0xb8] sm:$0xff]
        %v1995 = vld [vmem:[%s12 + $0xc0] sm:$0xff]
        %v1996 = vld [vmem:[%s12 + $0xc8] sm:$0xff]
        %v1997 = vld [vmem:[%s12 + $0xd0] sm:$0xff]
        %v1998 = vld [vmem:[%s12 + $0xd8] sm:$0xff]
        %v1999 = vld [vmem:[%s12 + $0xe0] sm:$0xff]
        %v2000 = vld [vmem:[%s12 + $0xe8] sm:$0xff]
        %v2001 = vld [vmem:[%s12 + $0xf0] sm:$0xff]
        %v2002 = vld [vmem:[%s12 + $0xf8] sm:$0xff]
        %v2003 = vld [vmem:[%s13] sm:$0xf]
        %v2004 = vld [vmem:[%s14] sm:$0x3]
        %v2005 = vld [vmem:[%s15] sm:$0x3]
        %v2006 = vadd.f32 %v1967, %v1969
        %v2007 = vrot.slane %v2006, 4
        %v2008 = vadd.f32 %v2006, %v2007
        %v2009 = vrot.slane %v2008, 2
        %v2010 = vadd.f32 %v2008, %v2009
        %v2011 = vrot.slane %v2010, 1
        %v2012 = vadd.f32 %v2010, %v2011
        %v2013 = vadd.f32 %v1968, %v1970
        %v2014 = vrot.slane %v2013, 4
        %v2015 = vadd.f32 %v2013, %v2014
        %v2016 = vrot.slane %v2015, 2
        %v2017 = vadd.f32 %v2015, %v2016
        %v2018 = vrot.slane %v2017, 1
        %v2019 = vadd.f32 %v2017, %v2018
        %v2020 = vmul.f32 %v1967, %v1967
        %v2021 = vmul.f32 %v1968, %v1968
        %v2022 = vmul.f32 %v1969, %v1969
        %v2023 = vmul.f32 %v1970, %v1970
        %v2024 = vadd.f32 %v2020, %v2022
        %v2025 = vrot.slane %v2024, 4
        %v2026 = vadd.f32 %v2024, %v2025
        %v2027 = vrot.slane %v2026, 2
        %v2028 = vadd.f32 %v2026, %v2027
        %v2029 = vrot.slane %v2028, 1
        %v2030 = vadd.f32 %v2028, %v2029
        %v2031 = vadd.f32 %v2021, %v2023
        %v2032 = vrot.slane %v2031, 4
        %v2033 = vadd.f32 %v2031, %v2032
        %v2034 = vrot.slane %v2033, 2
        %v2035 = vadd.f32 %v2033, %v2034
        %v2036 = vrot.slane %v2035, 1
        %v2037 = vadd.f32 %v2035, %v2036
        %v2038 = vsel %vm659, %v2012, %v2030
        %v2039 = vsel %vm659, %v2019, %v2037
        %2040 = vmatpush.msra.mxu0 %v1986
        %2041 = vmatpush.msra.mxu0 %v1985
        %2042 = vmatpush.msra.mxu0 %v1984
        %2043 = vmatpush.msra.mxu0 %v1983
        %2044 = vmatpush.msra.mxu0 %v1982
        %2045 = vmatpush.msra.mxu0 %v1981
        %2046 = vmatpush.msra.mxu0 %v1980
        %2047 = vmatpush.msra.mxu0 %v1979
        %2048 = vmatpush.msra.mxu0 %v1978
        %2049 = vmatpush.msra.mxu0 %v1977
        %2050 = vmatpush.msra.mxu0 %v1976
        %2051 = vmatpush.msra.mxu0 %v1975
        %2052 = vmatpush.msra.mxu0 %v1974
        %2053 = vmatpush.msra.mxu0 %v1973
        %2054 = vmatpush.msra.mxu0 %v1972
        %2055 = vmatpush.msra.mxu0 %v1971
        %2056 = vmatmul.f32.gmra.mxu0 %v2038
        %v2057 = vpop.f32.mrf.mxu0
        %v2058 = vadd.f32 0.0, %v2057
        %2059 = vdwg.mxu0
        %2060 = vmatpush.msra.mxu0 %v2002
        %2061 = vmatpush.msra.mxu0 %v2001
        %2062 = vmatpush.msra.mxu0 %v2000
        %2063 = vmatpush.msra.mxu0 %v1999
        %2064 = vmatpush.msra.mxu0 %v1998
        %2065 = vmatpush.msra.mxu0 %v1997
        %2066 = vmatpush.msra.mxu0 %v1996
        %2067 = vmatpush.msra.mxu0 %v1995
        %2068 = vmatpush.msra.mxu0 %v1994
        %2069 = vmatpush.msra.mxu0 %v1993
        %2070 = vmatpush.msra.mxu0 %v1992
        %2071 = vmatpush.msra.mxu0 %v1991
        %2072 = vmatpush.msra.mxu0 %v1990
        %2073 = vmatpush.msra.mxu0 %v1989
        %2074 = vmatpush.msra.mxu0 %v1988
        %2075 = vmatpush.msra.mxu0 %v1987
        %2076 = vmatmul.f32.gmra.mxu0 %v2039
        %v2077 = vpop.f32.mrf.mxu0
        %v2078 = vadd.f32 %v2058, %v2077
        %2079 = vdwg.mxu0
        %v2080 = vmul.f32 %v2078, 0.00048828125
        %2082 = vst [vmem:[#allocation1] ss:$4 sm:$0xff] %v2003
        %v2083 = vld.sshfl [vmem:[#allocation1] sm:$0xff pattern:$0x73625140]
        %v2084 = vld.sshfl [vmem:[#allocation1 + $0x8] sm:$0xff pattern:$0x73625140]
        %v2086 = vsel %vm1287, %v2080, 0
        %v2088 = vsel %vm1291, %v2083, 0
        %v2090 = vsel %vm1291, %v2084, 0
        %2092 = vmatpush.msra.mxu0 0.0
        %2093 = vmatpush.msra.mxu0 0.0
        %2094 = vmatpush.msra.mxu0 0.0
        %2095 = vmatpush.msra.mxu0 0.0
        %2096 = vmatpush.msra.mxu0 0.0
        %2097 = vmatpush.msra.mxu0 0.0
        %2098 = vmatpush.msra.mxu0 0.0
        %2099 = vmatpush.msra.mxu0 0.0
        %2100 = vmatpush.msra.mxu0 0.0
        %2101 = vmatpush.msra.mxu0 0.0
        %2102 = vmatpush.msra.mxu0 0.0
        %2103 = vmatpush.msra.mxu0 0.0
        %2104 = vmatpush.msra.mxu0 0.0
        %2105 = vmatpush.msra.mxu0 0.0
        %2106 = vmatpush.msra.mxu0 0.0
        %2107 = vmatpush.msra.mxu0 %v2088
        %2108 = vmatmul.f32.gmra.mxu0 %v2086
        %v2109 = vpop.f32.mrf.mxu0
        %v2110 = vadd.f32 0.0, %v2109
        %2111 = vdwg.mxu0
        %2112 = vmatpush.msra.mxu0 0.0
        %2113 = vmatpush.msra.mxu0 0.0
        %2114 = vmatpush.msra.mxu0 0.0
        %2115 = vmatpush.msra.mxu0 0.0
        %2116 = vmatpush.msra.mxu0 0.0
        %2117 = vmatpush.msra.mxu0 0.0
        %2118 = vmatpush.msra.mxu0 0.0
        %2119 = vmatpush.msra.mxu0 0.0
        %2120 = vmatpush.msra.mxu0 0.0
        %2121 = vmatpush.msra.mxu0 0.0
        %2122 = vmatpush.msra.mxu0 0.0
        %2123 = vmatpush.msra.mxu0 0.0
        %2124 = vmatpush.msra.mxu0 0.0
        %2125 = vmatpush.msra.mxu0 0.0
        %2126 = vmatpush.msra.mxu0 0.0
        %2127 = vmatpush.msra.mxu0 %v2090
        %2128 = vmatmul.f32.gmra.mxu0 %v2086
        %v2129 = vpop.f32.mrf.mxu0
        %v2130 = vadd.f32 0.0, %v2129
        %2131 = vdwg.mxu0
        %v2132 = vmul.f32 %v2110, %v2110
        %v2133 = vmul.f32 %v2130, %v2130
        %v2136 = vrot.slane %v2132, 7
        %v2137 = vrot.slane %v2133, 7
        %v2140 = vsub.f32 %v2110, %v2136
        %v2141 = vsub.f32 %v2130, %v2137
        %v2142 = vmax.f32 %v2140, 0.0
        %v2143 = vmax.f32 %v2141, 0.0
        %v2144 = vadd.f32 %v2142, 1e-05
        %v2145 = vadd.f32 %v2143, 1e-05
        %v2146 = vrsqrt.pop %v2144
        %v2147 = vmul.f32 %v2146, %v2144
        %v2148 = vmul.f32 %v2147, %v2146
        %v2149 = vmul.f32 0.5, %v2148
        %v2150 = vsub.f32 1.5, %v2149
        %v2151 = vmul.f32 %v2146, %v2150
        %vm2152 = vweird.f32 %v2144
        %vm2153 = vweird.f32 %v2146
        %vm2154 = vmor %vm2152, %vm2153
        %v2155 = vsel %vm2154, %v2146, %v2151
        %v2156 = vrsqrt.pop %v2145
        %v2157 = vmul.f32 %v2156, %v2145
        %v2158 = vmul.f32 %v2157, %v2156
        %v2159 = vmul.f32 0.5, %v2158
        %v2160 = vsub.f32 1.5, %v2159
        %v2161 = vmul.f32 %v2156, %v2160
        %vm2162 = vweird.f32 %v2145
        %vm2163 = vweird.f32 %v2156
        %vm2164 = vmor %vm2162, %vm2163
        %v2165 = vsel %vm2164, %v2156, %v2161
        %v2167 = vperm.slane %v2004, 0
        %v2168 = vperm.slane %v2004, 1
        %v2171 = vmul.f32 %v2155, %v2167
        %v2172 = vmul.f32 %v2165, %v2168
        %v2175 = vrot.slane %v2171, 1
        %v2176 = vrot.slane %v2172, 1
        %v2179 = vmul.f32 %v2110, %v2175
        %v2180 = vmul.f32 %v2130, %v2176
        %v2183 = vrot.slane %v2180, 7
        %v2184 = vsel %vm659, %v2179, %v2183
        %v2186 = vsub.f32 %v2005, %v2184
        %v2187 = vperm.slane %v2171, 1
        %v2188 = vperm.slane %v2172, 1
        %v2189 = vmul.f32 %v1967, %v2187
        %v2190 = vmul.f32 %v1968, %v2188
        %v2191 = vmul.f32 %v1969, %v2187
        %v2192 = vmul.f32 %v1970, %v2188
        %v2194 = vperm.slane %v2186, 0
        %v2195 = vperm.slane %v2186, 1
        %v2198 = vadd.f32 %v2189, %v2194
        %v2199 = vadd.f32 %v2190, %v2195
        %v2200 = vadd.f32 %v2191, %v2194
        %v2201 = vadd.f32 %v2192, %v2195
        %v2202 = vmul.f32 %v2198, 0.5
        %v2203 = vmul.f32 %v2199, 0.5
        %v2204 = vmul.f32 %v2200, 0.5
        %v2205 = vmul.f32 %v2201, 0.5
        %v2206 = vtanh.pop %v2202
        %v2207 = vtanh.pop %v2203
        %v2208 = vtanh.pop %v2204
        %v2209 = vtanh.pop %v2205
        %v2210 = vmul.f32 %v2206, 0.5
        %v2211 = vmul.f32 %v2207, 0.5
        %v2212 = vmul.f32 %v2208, 0.5
        %v2213 = vmul.f32 %v2209, 0.5
        %v2214 = vadd.f32 %v2210, 0.5
        %v2215 = vadd.f32 %v2211, 0.5
        %v2216 = vadd.f32 %v2212, 0.5
        %v2217 = vadd.f32 %v2213, 0.5
        %v2218 = vmul.f32 %v2198, %v2214
        %v2219 = vmul.f32 %v2199, %v2215
        %v2220 = vmul.f32 %v2200, %v2216
        %v2221 = vmul.f32 %v2201, %v2217
        %v2222 = vld [vmem:[%s16] sm:$0xff]
        %v2223 = vld [vmem:[%s16 + $0x8] sm:$0xff]
        %v2224 = vld [vmem:[%s16 + $0x10] sm:$0xff]
        %v2225 = vld [vmem:[%s16 + $0x18] sm:$0xff]
        %v2226 = vld [vmem:[%s16 + $0x20] sm:$0xff]
        %v2227 = vld [vmem:[%s16 + $0x28] sm:$0xff]
        %v2228 = vld [vmem:[%s16 + $0x30] sm:$0xff]
        %v2229 = vld [vmem:[%s16 + $0x38] sm:$0xff]
        %v2230 = vld [vmem:[%s16 + $0x40] sm:$0xff]
        %v2231 = vld [vmem:[%s16 + $0x48] sm:$0xff]
        %v2232 = vld [vmem:[%s16 + $0x50] sm:$0xff]
        %v2233 = vld [vmem:[%s16 + $0x58] sm:$0xff]
        %v2234 = vld [vmem:[%s16 + $0x60] sm:$0xff]
        %v2235 = vld [vmem:[%s16 + $0x68] sm:$0xff]
        %v2236 = vld [vmem:[%s16 + $0x70] sm:$0xff]
        %v2237 = vld [vmem:[%s16 + $0x78] sm:$0xff]
        %v2238 = vld [vmem:[%s16 + $0x80] sm:$0xff]
        %v2239 = vld [vmem:[%s16 + $0x88] sm:$0xff]
        %v2240 = vld [vmem:[%s16 + $0x90] sm:$0xff]
        %v2241 = vld [vmem:[%s16 + $0x98] sm:$0xff]
        %v2242 = vld [vmem:[%s16 + $0xa0] sm:$0xff]
        %v2243 = vld [vmem:[%s16 + $0xa8] sm:$0xff]
        %v2244 = vld [vmem:[%s16 + $0xb0] sm:$0xff]
        %v2245 = vld [vmem:[%s16 + $0xb8] sm:$0xff]
        %v2246 = vld [vmem:[%s16 + $0xc0] sm:$0xff]
        %v2247 = vld [vmem:[%s16 + $0xc8] sm:$0xff]
        %v2248 = vld [vmem:[%s16 + $0xd0] sm:$0xff]
        %v2249 = vld [vmem:[%s16 + $0xd8] sm:$0xff]
        %v2250 = vld [vmem:[%s16 + $0xe0] sm:$0xff]
        %v2251 = vld [vmem:[%s16 + $0xe8] sm:$0xff]
        %v2252 = vld [vmem:[%s16 + $0xf0] sm:$0xff]
        %v2253 = vld [vmem:[%s16 + $0xf8] sm:$0xff]
        %2254 = vmatpush.msra.mxu0 %v2237
        %2255 = vmatpush.msra.mxu0 %v2236
        %2256 = vmatpush.msra.mxu0 %v2235
        %2257 = vmatpush.msra.mxu0 %v2234
        %2258 = vmatpush.msra.mxu0 %v2233
        %2259 = vmatpush.msra.mxu0 %v2232
        %2260 = vmatpush.msra.mxu0 %v2231
        %2261 = vmatpush.msra.mxu0 %v2230
        %2262 = vmatpush.msra.mxu0 %v2229
        %2263 = vmatpush.msra.mxu0 %v2228
        %2264 = vmatpush.msra.mxu0 %v2227
        %2265 = vmatpush.msra.mxu0 %v2226
        %2266 = vmatpush.msra.mxu0 %v2225
        %2267 = vmatpush.msra.mxu0 %v2224
        %2268 = vmatpush.msra.mxu0 %v2223
        %2269 = vmatpush.msra.mxu0 %v2222
        %2270 = vmatmul.f32.gmra.mxu0 %v2218
        %v2271 = vpop.f32.mrf.mxu0
        %v2272 = vadd.f32 0.0, %v2271
        %2273 = vmatmul.f32.gmra.mxu0 %v2220
        %v2274 = vpop.f32.mrf.mxu0
        %v2275 = vadd.f32 0.0, %v2274
        %2276 = vdwg.mxu0
        %2277 = vmatpush.msra.mxu0 %v2253
        %2278 = vmatpush.msra.mxu0 %v2252
        %2279 = vmatpush.msra.mxu0 %v2251
        %2280 = vmatpush.msra.mxu0 %v2250
        %2281 = vmatpush.msra.mxu0 %v2249
        %2282 = vmatpush.msra.mxu0 %v2248
        %2283 = vmatpush.msra.mxu0 %v2247
        %2284 = vmatpush.msra.mxu0 %v2246
        %2285 = vmatpush.msra.mxu0 %v2245
        %2286 = vmatpush.msra.mxu0 %v2244
        %2287 = vmatpush.msra.mxu0 %v2243
        %2288 = vmatpush.msra.mxu0 %v2242
        %2289 = vmatpush.msra.mxu0 %v2241
        %2290 = vmatpush.msra.mxu0 %v2240
        %2291 = vmatpush.msra.mxu0 %v2239
        %2292 = vmatpush.msra.mxu0 %v2238
        %2293 = vmatmul.f32.gmra.mxu0 %v2219
        %v2294 = vpop.f32.mrf.mxu0
        %v2295 = vadd.f32 %v2272, %v2294
        %2296 = vmatmul.f32.gmra.mxu0 %v2221
        %v2297 = vpop.f32.mrf.mxu0
        %v2298 = vadd.f32 %v2275, %v2297
        %2299 = vdwg.mxu0
        %v2300 = vld [vmem:[%s17] sm:$0xff]
        %v2301 = vld [vmem:[%s17 + $0x8] sm:$0xff]
        %v2302 = vld [vmem:[%s17 + $0x10] sm:$0xff]
        %v2303 = vld [vmem:[%s17 + $0x18] sm:$0xff]
        %v2304 = vld [vmem:[%s17 + $0x20] sm:$0xff]
        %v2305 = vld [vmem:[%s17 + $0x28] sm:$0xff]
        %v2306 = vld [vmem:[%s17 + $0x30] sm:$0xff]
        %v2307 = vld [vmem:[%s17 + $0x38] sm:$0xff]
        %v2308 = vld [vmem:[%s17 + $0x40] sm:$0xff]
        %v2309 = vld [vmem:[%s17 + $0x48] sm:$0xff]
        %v2310 = vld [vmem:[%s17 + $0x50] sm:$0xff]
        %v2311 = vld [vmem:[%s17 + $0x58] sm:$0xff]
        %v2312 = vld [vmem:[%s17 + $0x60] sm:$0xff]
        %v2313 = vld [vmem:[%s17 + $0x68] sm:$0xff]
        %v2314 = vld [vmem:[%s17 + $0x70] sm:$0xff]
        %v2315 = vld [vmem:[%s17 + $0x78] sm:$0xff]
        %v2316 = vld [vmem:[%s18] sm:$0x1]
        %v2317 = vld [vmem:[%s19] sm:$0x1]
        %v2318 = vld [vmem:[%s20] sm:$0x1]
        %v2319 = vadd.f32 %v2295, %v2298
        %v2320 = vrot.slane %v2319, 4
        %v2321 = vadd.f32 %v2319, %v2320
        %v2322 = vrot.slane %v2321, 2
        %v2323 = vadd.f32 %v2321, %v2322
        %v2324 = vrot.slane %v2323, 1
        %v2325 = vadd.f32 %v2323, %v2324
        %v2326 = vmul.f32 %v2295, %v2295
        %v2327 = vmul.f32 %v2298, %v2298
        %v2328 = vadd.f32 %v2326, %v2327
        %v2329 = vrot.slane %v2328, 4
        %v2330 = vadd.f32 %v2328, %v2329
        %v2331 = vrot.slane %v2330, 2
        %v2332 = vadd.f32 %v2330, %v2331
        %v2333 = vrot.slane %v2332, 1
        %v2334 = vadd.f32 %v2332, %v2333
        %v2335 = vsel %vm659, %v2325, %v2334
        %2336 = vmatpush.msra.mxu0 %v2315
        %2337 = vmatpush.msra.mxu0 %v2314
        %2338 = vmatpush.msra.mxu0 %v2313
        %2339 = vmatpush.msra.mxu0 %v2312
        %2340 = vmatpush.msra.mxu0 %v2311
        %2341 = vmatpush.msra.mxu0 %v2310
        %2342 = vmatpush.msra.mxu0 %v2309
        %2343 = vmatpush.msra.mxu0 %v2308
        %2344 = vmatpush.msra.mxu0 %v2307
        %2345 = vmatpush.msra.mxu0 %v2306
        %2346 = vmatpush.msra.mxu0 %v2305
        %2347 = vmatpush.msra.mxu0 %v2304
        %2348 = vmatpush.msra.mxu0 %v2303
        %2349 = vmatpush.msra.mxu0 %v2302
        %2350 = vmatpush.msra.mxu0 %v2301
        %2351 = vmatpush.msra.mxu0 %v2300
        %2352 = vmatmul.f32.gmra.mxu0 %v2335
        %v2353 = vpop.f32.mrf.mxu0
        %v2354 = vadd.f32 0.0, %v2353
        %2355 = vdwg.mxu0
        %v2356 = vmul.f32 %v2354, 0.00048828125
        %v2358 = vsel %vm1024, %v2356, 0
        %v2361 = vsel %vm659, %v2316, 0
        %2363 = vmatpush.msra.mxu0 0.0
        %2364 = vmatpush.msra.mxu0 0.0
        %2365 = vmatpush.msra.mxu0 0.0
        %2366 = vmatpush.msra.mxu0 0.0
        %2367 = vmatpush.msra.mxu0 0.0
        %2368 = vmatpush.msra.mxu0 0.0
        %2369 = vmatpush.msra.mxu0 0.0
        %2370 = vmatpush.msra.mxu0 0.0
        %2371 = vmatpush.msra.mxu0 0.0
        %2372 = vmatpush.msra.mxu0 0.0
        %2373 = vmatpush.msra.mxu0 0.0
        %2374 = vmatpush.msra.mxu0 0.0
        %2375 = vmatpush.msra.mxu0 0.0
        %2376 = vmatpush.msra.mxu0 0.0
        %2377 = vmatpush.msra.mxu0 0.0
        %2378 = vmatpush.msra.mxu0 %v2361
        %2379 = vmatmul.f32.gmra.mxu0 %v2358
        %v2380 = vpop.f32.mrf.mxu0
        %v2381 = vadd.f32 0.0, %v2380
        %2382 = vdwg.mxu0
        %v2383 = vmul.f32 %v2381, %v2381
        %v2385 = vrot.slane %v2383, 7
        %v2387 = vsub.f32 %v2381, %v2385
        %v2388 = vmax.f32 %v2387, 0.0
        %v2389 = vadd.f32 %v2388, 1e-05
        %v2390 = vrsqrt.pop %v2389
        %v2391 = vmul.f32 %v2390, %v2389
        %v2392 = vmul.f32 %v2391, %v2390
        %v2393 = vmul.f32 0.5, %v2392
        %v2394 = vsub.f32 1.5, %v2393
        %v2395 = vmul.f32 %v2390, %v2394
        %vm2396 = vweird.f32 %v2389
        %vm2397 = vweird.f32 %v2390
        %vm2398 = vmor %vm2396, %vm2397
        %v2399 = vsel %vm2398, %v2390, %v2395
        %v2401 = vperm.slane %v2317, 0
        %v2403 = vmul.f32 %v2399, %v2401
        %v2405 = vrot.slane %v2403, 1
        %v2407 = vmul.f32 %v2381, %v2405
        %v2408 = vsub.f32 %v2318, %v2407
        %v2409 = vperm.slane %v2403, 1
        %v2410 = vmul.f32 %v2295, %v2409
        %v2411 = vmul.f32 %v2298, %v2409
        %v2413 = vperm.slane %v2408, 0
        %v2415 = vadd.f32 %v2410, %v2413
        %v2416 = vadd.f32 %v2411, %v2413
        %v2417 = vmul.f32 %v2415, 0.5
        %v2418 = vmul.f32 %v2416, 0.5
        %v2419 = vtanh.pop %v2417
        %v2420 = vtanh.pop %v2418
        %v2421 = vmul.f32 %v2419, 0.5
        %v2422 = vmul.f32 %v2420, 0.5
        %v2423 = vadd.f32 %v2421, 0.5
        %v2424 = vadd.f32 %v2422, 0.5
        %v2425 = vmul.f32 %v2415, %v2423
        %v2426 = vmul.f32 %v2416, %v2424
        %2427 = vst [vmem:[%s649] sm:$0xff] %v2425
        %2428 = vst [vmem:[%s649 + $0x8] sm:$0xff] %v2426
        %s2429 = sand.u32 %s489, 1
        %s2430 = scalar_lea.sflag [#allocation3], %s2429
        %s2431 = sand.u32 %s489, 1
        %s2432 = smul.addr %s2431, 16
        %s2433 = scalar_lea.vmem [#allocation2], %s2432
        // Predicated region
        $region105: #{tpu_custom_call.1} parent=103 // pred_check
          %p2434 = pneg %p499
        $region106: #{tpu_custom_call.1} parent=103 // pred_check_branch
          %2436 = sbr.rel (%p2434) target = $region108
        $region107: #{tpu_custom_call.1} parent=103 // pred_region
          %2438 = vsyncadd %s2430, 0
          %s2439 = smul.addr %s35, 2
          %s2440 = smul.addr %s2439, 8
          %s2441 = scalar_lea.hbm %s21, %s2440
          %s2442 = sshll.u32 %s2433, 4
          %s2443 = int_to_ptr.vmem [resolvable:$true] %s2442
          %s2444 = sshll.u32 %s2441, 4
          %s2445 = int_to_ptr.hbm [resolvable:$true] %s2444
          %2450 = dma.vmem_to_hbm [thread:$0]  %s2443, 256, %s2445, %s2430, 128, 128, 8
        $region108: #{tpu_custom_call.1} parent=103 // pred_fallthru
          _
      $region104: #{tpu_custom_call.1} parent=5 // pred_fallthru
        _
      %p2451 = scmp.le.s32.totalorder 2, %s30
      // Predicated region
      $region109: #{tpu_custom_call.1} parent=5 // pred_check
        %p2452 = pneg %p2451
      $region110: #{tpu_custom_call.1} parent=5 // pred_check_branch
        %2454 = sbr.rel (%p2452) target = $region112
      $region111: #{tpu_custom_call.1} parent=5 // pred_region
        %s2455 = ssub.s32 %s30, 2
        // Predicated region
        $region113: #{tpu_custom_call.1} parent=111 // pred_check
          %p2456 = pneg %p505
        $region114: #{tpu_custom_call.1} parent=111 // pred_check_branch
          %2458 = sbr.rel (%p2456) target = $region116
        $region115: #{tpu_custom_call.1} parent=111 // pred_region
          %s2459 = sand.u32 %s490, 1
          %s2460 = scalar_lea.sflag [#allocation3], %s2459
          %s2461 = sand.u32 %s490, 1
          %s2462 = smul.addr %s2461, 16
          %s2463 = scalar_lea.vmem [#allocation2], %s2462
          %2465 = dma.done %s2460, 256
        $region116: #{tpu_custom_call.1} parent=111 // pred_fallthru
          _
      $region112: #{tpu_custom_call.1} parent=5 // pred_fallthru
        _
    $region6: #{tpu_custom_call.1} parent=1 // loop_footer
      %s34 = sadd.s32 1, %s30
    $region7: #{tpu_custom_call.1} parent=1 // loop_footer_branch
      %29 = sbr.rel target = $region3
    $region8: #{tpu_custom_call.1} parent=1 // loop_exit
      _
    %2466 = vsyncpa [#allocation3], 1
    %s2467 = scalar_lea.sflag [#allocation3], 1
    %2468 = vsyncpa %s2467, 1

</llo_original>
